<compile_context>
chip_gen: v7x
topology: tpu7x:2x2x1
jax: 0.10.0
libtpu: 0.0.40
codegen_flags: <defaults>
</compile_context>

<pallas_src>
import numpy as np
import jax
import jax.numpy as jnp
from jax import lax
from jax.experimental import pallas as pl
from jax.experimental.pallas import tpu as pltpu

d_k = 64
d_v = 64
n_heads = 8
d_embedding = 512
LN_EPS = 1e-5


def mha_kernel(q_ref, k_ref, v_ref,
               wq_ref, bq_ref, wk_ref, bk_ref, wv_ref, bv_ref,
               wo_ref, bo_ref, gamma_ref, beta_ref,
               out_ref, attn_ref, ctx_ref):
    # One batch element per grid step; all heads computed inside the body.
    q = q_ref[0]                         # (S, D) f32 -- also the residual
    q_bf = q.astype(jnp.bfloat16)
    k_bf = k_ref[0].astype(jnp.bfloat16)
    v_bf = v_ref[0].astype(jnp.bfloat16)

    # Fused full-width projections (N = 512 MXU matmuls, f32 accumulation).
    # 1/sqrt(d_k) is already folded into wq/bq on the host.
    qh_all = (jnp.dot(q_bf, wq_ref[...], preferred_element_type=jnp.float32)
              + bq_ref[...]).astype(jnp.bfloat16)                     # (S, n_heads*d_k)
    kh_all = (jnp.dot(k_bf, wk_ref[...], preferred_element_type=jnp.float32)
              + bk_ref[...]).astype(jnp.bfloat16)                     # (S, n_heads*d_k)
    vh_all = (jnp.dot(v_bf, wv_ref[...], preferred_element_type=jnp.float32)
              + bv_ref[...]).astype(jnp.bfloat16)                     # (S, n_heads*d_v)

    # Statically unrolled per-head softmax / context.  Heads are cheap here; the MXU-wide
    # work (projections, W_O) is done outside this loop.
    for h in range(n_heads):
        qh = qh_all[:, h * d_k:(h + 1) * d_k]                         # (S, d_k) bf16
        kh = kh_all[:, h * d_k:(h + 1) * d_k]
        vh = vh_all[:, h * d_v:(h + 1) * d_v]

        # qd,kd->qk without transposing kh (feeds MXU directly, no XLU relayout).
        scores = lax.dot_general(qh, kh, (((1,), (1,)), ((), ())),
                                 preferred_element_type=jnp.float32)  # (S, S) f32
        # NOTE: attn_mask deliberately NOT applied (see faithfulness note above).
        m = jnp.max(scores, axis=-1, keepdims=True)
        e = jnp.exp(scores - m)
        w = e * pl.reciprocal(jnp.sum(e, axis=-1, keepdims=True), approx=True)
        attn_ref[0, h] = w.astype(attn_ref.dtype)

        ctx = jnp.dot(w.astype(jnp.bfloat16), vh,
                      preferred_element_type=jnp.float32)             # (S, d_v)
        ctx_ref[:, h * d_v:(h + 1) * d_v] = ctx.astype(jnp.bfloat16)

    # Single full-depth output projection (K = 512 contraction).
    proj = jnp.dot(ctx_ref[...], wo_ref[...],
                   preferred_element_type=jnp.float32)                # (S, D) f32

    # Epilogue: output bias + residual + LayerNorm (f32).
    y = proj + bo_ref[...] + q
    mean = jnp.mean(y, axis=-1, keepdims=True)
    var = jnp.mean(jnp.square(y - mean), axis=-1, keepdims=True)
    normed = (y - mean) * lax.rsqrt(var + LN_EPS)
    out_ref[0] = (normed * gamma_ref[...] + beta_ref[...]).astype(out_ref.dtype)


def multi_head_attention(Q, K, V, attn_mask, params):
    """Q, K, V: (B, S, d_embedding) float32.  attn_mask is ignored (matches PyTorch code)."""
    del attn_mask  # masked_fill result is discarded in the reference module
    B, S, D = Q.shape
    assert D == d_embedding

    wq, bq, wk, bk, wv, bv, wo, bo, gamma, beta = params

    # Fold the 1/sqrt(d_k) scale into the Q projection weights/bias on the host.
    scale = np.float32(1.0 / np.sqrt(d_k))
    wq_bf = (wq * scale).astype(jnp.bfloat16)             # (D, n_heads*d_k)
    wk_bf = wk.astype(jnp.bfloat16)
    wv_bf = wv.astype(jnp.bfloat16)
    wo_bf = wo.astype(jnp.bfloat16)                       # (n_heads*d_v, D)
    bq2 = (bq * scale).reshape(1, n_heads * d_k)
    bk2 = bk.reshape(1, n_heads * d_k)
    bv2 = bv.reshape(1, n_heads * d_v)
    bo2, gamma2, beta2 = bo.reshape(1, D), gamma.reshape(1, D), beta.reshape(1, D)

    act_spec = pl.BlockSpec((1, S, D), lambda b: (b, 0, 0))
    # Weights / biases: constant index maps -> DMA'd once, VMEM-resident across the grid.
    w_spec = pl.BlockSpec((D, n_heads * d_k), lambda b: (0, 0))
    wo_spec = pl.BlockSpec((n_heads * d_v, D), lambda b: (0, 0))
    bias_spec = pl.BlockSpec((1, n_heads * d_k), lambda b: (0, 0))
    vec_spec = pl.BlockSpec((1, D), lambda b: (0, 0))

    out, weights = pl.pallas_call(
        mha_kernel,
        out_shape=(
            jax.ShapeDtypeStruct((B, S, D), jnp.float32),
            jax.ShapeDtypeStruct((B, n_heads, S, S), jnp.float32),
        ),
        grid_spec=pltpu.PrefetchScalarGridSpec(
            num_scalar_prefetch=0,
            grid=(B,),
            in_specs=[
                act_spec, act_spec, act_spec,     # Q, K, V
                w_spec, bias_spec,                # W_Q (scaled), b_Q (scaled)
                w_spec, bias_spec,                # W_K, b_K
                w_spec, bias_spec,                # W_V, b_V
                wo_spec, vec_spec,                # W_O, b_O
                vec_spec, vec_spec,               # gamma, beta
            ],
            out_specs=[
                pl.BlockSpec((1, S, D), lambda b: (b, 0, 0)),
                pl.BlockSpec((1, n_heads, S, S), lambda b: (b, 0, 0, 0)),
            ],
            scratch_shapes=[pltpu.VMEM((S, n_heads * d_v), jnp.bfloat16)],  # ctx buffer
        ),
        compiler_params=pltpu.CompilerParams(
            dimension_semantics=("parallel",),
            vmem_limit_bytes=64 * 1024 * 1024),
    )(Q, K, V,
      wq_bf, bq2, wk_bf, bk2, wv_bf, bv2,
      wo_bf, bo2, gamma2, beta2)
    return out, weights


def reference(Q, K, V, params):
    """Pure-JAX f32 reference mirroring the PyTorch forward (mask is a no-op there)."""
    wq, bq, wk, bk, wv, bv, wo, bo, gamma, beta = params
    B, S, D = Q.shape

    def proj(x, w, b):
        return (x @ w + b).reshape(B, S, n_heads, d_k).transpose(0, 2, 1, 3)

    qs, ks, vs = proj(Q, wq, bq), proj(K, wk, bk), proj(V, wv, bv)
    scores = jnp.einsum("bhqd,bhkd->bhqk", qs, ks) / np.sqrt(d_k)
    w = jax.nn.softmax(scores, axis=-1)
    ctx = jnp.einsum("bhqk,bhkd->bhqd", w, vs).transpose(0, 2, 1, 3).reshape(B, S, n_heads * d_v)
    out = ctx @ wo + bo + Q
    mean = out.mean(-1, keepdims=True)
    var = ((out - mean) ** 2).mean(-1, keepdims=True)
    return (out - mean) / jnp.sqrt(var + LN_EPS) * gamma + beta, w


if __name__ == "__main__":
    key = jax.random.PRNGKey(0)
    B, S = 2, 8
    ks = jax.random.split(key, 16)

    Q = jax.random.normal(ks[0], (B, S, d_embedding), jnp.float32)
    K = jax.random.normal(ks[1], (B, S, d_embedding), jnp.float32)
    V = jax.random.normal(ks[2], (B, S, d_embedding), jnp.float32)
    attn_mask = jnp.zeros((B, S, S), dtype=bool)  # unused (see faithfulness note)

    scale = 0.02
    params = (
        scale * jax.random.normal(ks[3], (d_embedding, n_heads * d_k), jnp.float32),  # W_Q (in, out)
        scale * jax.random.normal(ks[4], (n_heads * d_k,), jnp.float32),               # b_Q
        scale * jax.random.normal(ks[5], (d_embedding, n_heads * d_k), jnp.float32),  # W_K
        scale * jax.random.normal(ks[6], (n_heads * d_k,), jnp.float32),               # b_K
        scale * jax.random.normal(ks[7], (d_embedding, n_heads * d_v), jnp.float32),  # W_V
        scale * jax.random.normal(ks[8], (n_heads * d_v,), jnp.float32),               # b_V
        scale * jax.random.normal(ks[9], (n_heads * d_v, d_embedding), jnp.float32),  # W_O (linear)
        scale * jax.random.normal(ks[10], (d_embedding,), jnp.float32),                # b_O
        jnp.ones((d_embedding,), jnp.float32),                                         # LN gamma
        jnp.zeros((d_embedding,), jnp.float32),                                        # LN beta
    )

    out, weights = multi_head_attention(Q, K, V, attn_mask, params)
    out = jax.block_until_ready(out)
    weights = jax.block_until_ready(weights)

    ref_out, ref_w = reference(Q, K, V, params)
    assert out.shape == (B, S, d_embedding) and weights.shape == (B, n_heads, S, S)
    # Tolerance covers bf16 MXU operands (f32 accumulation) vs the pure-f32 reference.
    np.testing.assert_allclose(np.asarray(out), np.asarray(ref_out), rtol=2e-2, atol=2e-2)
    np.testing.assert_allclose(np.asarray(weights), np.asarray(ref_w), rtol=2e-2, atol=2e-2)

    print("KERNEL_OK")
</pallas_src>

<mosaic_0001>
module attributes {stable_mosaic.version = 11 : i64} {
  func.func @mha_kernel(%arg0: i32, %arg1: memref<1x8x512xf32, #tpu.memory_space<vmem>>, %arg2: memref<1x8x512xf32, #tpu.memory_space<vmem>>, %arg3: memref<1x8x512xf32, #tpu.memory_space<vmem>>, %arg4: memref<512x512xbf16, #tpu.memory_space<vmem>>, %arg5: memref<1x512xf32, #tpu.memory_space<vmem>>, %arg6: memref<512x512xbf16, #tpu.memory_space<vmem>>, %arg7: memref<1x512xf32, #tpu.memory_space<vmem>>, %arg8: memref<512x512xbf16, #tpu.memory_space<vmem>>, %arg9: memref<1x512xf32, #tpu.memory_space<vmem>>, %arg10: memref<512x512xbf16, #tpu.memory_space<vmem>>, %arg11: memref<1x512xf32, #tpu.memory_space<vmem>>, %arg12: memref<1x512xf32, #tpu.memory_space<vmem>>, %arg13: memref<1x512xf32, #tpu.memory_space<vmem>>, %arg14: memref<1x8x512xf32, #tpu.memory_space<vmem>>, %arg15: memref<1x8x8x8xf32, #tpu.memory_space<vmem>>, %arg16: memref<8x512xbf16, #tpu.memory_space<vmem>>) attributes {dimension_semantics = [#tpu.dimension_semantics<parallel>], iteration_bounds = array<i64: 2>, scalar_prefetch = 0 : i64, scratch_operands = 1 : i64, tpu.core_type = #tpu.core_type<tc>, window_params = [{transform_indices = @transform_0, window_bounds = array<i64: 1, 8, 512>}, {transform_indices = @transform_1, window_bounds = array<i64: 1, 8, 512>}, {transform_indices = @transform_2, window_bounds = array<i64: 1, 8, 512>}, {pipeline_mode = #tpu.pipeline_mode<synchronous>, transform_indices = @transform_3, window_bounds = array<i64: 512, 512>}, {pipeline_mode = #tpu.pipeline_mode<synchronous>, transform_indices = @transform_4, window_bounds = array<i64: 1, 512>}, {pipeline_mode = #tpu.pipeline_mode<synchronous>, transform_indices = @transform_5, window_bounds = array<i64: 512, 512>}, {pipeline_mode = #tpu.pipeline_mode<synchronous>, transform_indices = @transform_6, window_bounds = array<i64: 1, 512>}, {pipeline_mode = #tpu.pipeline_mode<synchronous>, transform_indices = @transform_7, window_bounds = array<i64: 512, 512>}, {pipeline_mode = #tpu.pipeline_mode<synchronous>, transform_indices = @transform_8, window_bounds = array<i64: 1, 512>}, {pipeline_mode = #tpu.pipeline_mode<synchronous>, transform_indices = @transform_9, window_bounds = array<i64: 512, 512>}, {pipeline_mode = #tpu.pipeline_mode<synchronous>, transform_indices = @transform_10, window_bounds = array<i64: 1, 512>}, {pipeline_mode = #tpu.pipeline_mode<synchronous>, transform_indices = @transform_11, window_bounds = array<i64: 1, 512>}, {pipeline_mode = #tpu.pipeline_mode<synchronous>, transform_indices = @transform_12, window_bounds = array<i64: 1, 512>}, {transform_indices = @transform_13, window_bounds = array<i64: 1, 8, 512>}, {transform_indices = @transform_14, window_bounds = array<i64: 1, 8, 8, 8>}]} {
    %c0 = arith.constant 0 : index
    %c0_0 = arith.constant 0 : index
    %c0_1 = arith.constant 0 : index
    %0 = vector.load %arg1[%c0, %c0_0, %c0_1] : memref<1x8x512xf32, #tpu.memory_space<vmem>>, vector<1x8x512xf32>
    %1 = vector.shape_cast %0 : vector<1x8x512xf32> to vector<8x512xf32>
    %2 = arith.truncf %1 : vector<8x512xf32> to vector<8x512xbf16>
    %c0_2 = arith.constant 0 : index
    %c0_3 = arith.constant 0 : index
    %c0_4 = arith.constant 0 : index
    %3 = vector.load %arg2[%c0_2, %c0_3, %c0_4] : memref<1x8x512xf32, #tpu.memory_space<vmem>>, vector<1x8x512xf32>
    %4 = vector.shape_cast %3 : vector<1x8x512xf32> to vector<8x512xf32>
    %5 = arith.truncf %4 : vector<8x512xf32> to vector<8x512xbf16>
    %c0_5 = arith.constant 0 : index
    %c0_6 = arith.constant 0 : index
    %c0_7 = arith.constant 0 : index
    %6 = vector.load %arg3[%c0_5, %c0_6, %c0_7] : memref<1x8x512xf32, #tpu.memory_space<vmem>>, vector<1x8x512xf32>
    %7 = vector.shape_cast %6 : vector<1x8x512xf32> to vector<8x512xf32>
    %8 = arith.truncf %7 : vector<8x512xf32> to vector<8x512xbf16>
    %c0_8 = arith.constant 0 : index
    %c0_9 = arith.constant 0 : index
    %9 = vector.load %arg4[%c0_8, %c0_9] : memref<512x512xbf16, #tpu.memory_space<vmem>>, vector<512x512xbf16>
    %cst = arith.constant dense<0.000000e+00> : vector<8x512xf32>
    %10 = tpu.matmul %2, %9, %cst {dimension_numbers = #tpu.dot_dimension_numbers<[1], [0], [0], [1], [0, 0, 1, 1], [], []>} : vector<8x512xbf16>, vector<512x512xbf16>, vector<8x512xf32> -> vector<8x512xf32>
    %c0_10 = arith.constant 0 : index
    %c0_11 = arith.constant 0 : index
    %11 = vector.load %arg5[%c0_10, %c0_11] : memref<1x512xf32, #tpu.memory_space<vmem>>, vector<1x512xf32>
    %12 = vector.broadcast %11 : vector<1x512xf32> to vector<8x512xf32>
    %13 = arith.addf %10, %12 : vector<8x512xf32>
    %14 = arith.truncf %13 : vector<8x512xf32> to vector<8x512xbf16>
    %c0_12 = arith.constant 0 : index
    %c0_13 = arith.constant 0 : index
    %15 = vector.load %arg6[%c0_12, %c0_13] : memref<512x512xbf16, #tpu.memory_space<vmem>>, vector<512x512xbf16>
    %cst_14 = arith.constant dense<0.000000e+00> : vector<8x512xf32>
    %16 = tpu.matmul %5, %15, %cst_14 {dimension_numbers = #tpu.dot_dimension_numbers<[1], [0], [0], [1], [0, 0, 1, 1], [], []>} : vector<8x512xbf16>, vector<512x512xbf16>, vector<8x512xf32> -> vector<8x512xf32>
    %c0_15 = arith.constant 0 : index
    %c0_16 = arith.constant 0 : index
    %17 = vector.load %arg7[%c0_15, %c0_16] : memref<1x512xf32, #tpu.memory_space<vmem>>, vector<1x512xf32>
    %18 = vector.broadcast %17 : vector<1x512xf32> to vector<8x512xf32>
    %19 = arith.addf %16, %18 : vector<8x512xf32>
    %20 = arith.truncf %19 : vector<8x512xf32> to vector<8x512xbf16>
    %c0_17 = arith.constant 0 : index
    %c0_18 = arith.constant 0 : index
    %21 = vector.load %arg8[%c0_17, %c0_18] : memref<512x512xbf16, #tpu.memory_space<vmem>>, vector<512x512xbf16>
    %cst_19 = arith.constant dense<0.000000e+00> : vector<8x512xf32>
    %22 = tpu.matmul %8, %21, %cst_19 {dimension_numbers = #tpu.dot_dimension_numbers<[1], [0], [0], [1], [0, 0, 1, 1], [], []>} : vector<8x512xbf16>, vector<512x512xbf16>, vector<8x512xf32> -> vector<8x512xf32>
    %c0_20 = arith.constant 0 : index
    %c0_21 = arith.constant 0 : index
    %23 = vector.load %arg9[%c0_20, %c0_21] : memref<1x512xf32, #tpu.memory_space<vmem>>, vector<1x512xf32>
    %24 = vector.broadcast %23 : vector<1x512xf32> to vector<8x512xf32>
    %25 = arith.addf %22, %24 : vector<8x512xf32>
    %26 = arith.truncf %25 : vector<8x512xf32> to vector<8x512xbf16>
    %27 = vector.extract_strided_slice %14 {offsets = [0, 0], sizes = [8, 64], strides = [1, 1]} : vector<8x512xbf16> to vector<8x64xbf16>
    %28 = vector.extract_strided_slice %20 {offsets = [0, 0], sizes = [8, 64], strides = [1, 1]} : vector<8x512xbf16> to vector<8x64xbf16>
    %29 = vector.extract_strided_slice %26 {offsets = [0, 0], sizes = [8, 64], strides = [1, 1]} : vector<8x512xbf16> to vector<8x64xbf16>
    %cst_22 = arith.constant dense<0.000000e+00> : vector<8x8xf32>
    %30 = tpu.matmul %27, %28, %cst_22 {dimension_numbers = #tpu.dot_dimension_numbers<[1], [1], [0], [0], [0, 0, 1, 0], [], []>} : vector<8x64xbf16>, vector<8x64xbf16>, vector<8x8xf32> -> vector<8x8xf32>
    %cst_23 = arith.constant dense<0xFF800000> : vector<8xf32>
    %31 = vector.multi_reduction <maximumf>, %30, %cst_23 [1] : vector<8x8xf32> to vector<8xf32>
    %32 = vector.shape_cast %31 : vector<8xf32> to vector<8x1xf32>
    %33 = vector.broadcast %32 : vector<8x1xf32> to vector<8x8xf32>
    %34 = arith.subf %30, %33 : vector<8x8xf32>
    %35 = math.exp %34 : vector<8x8xf32>
    %cst_24 = arith.constant dense<0.000000e+00> : vector<8xf32>
    %36 = vector.multi_reduction <add>, %35, %cst_24 [1] : vector<8x8xf32> to vector<8xf32>
    %37 = vector.shape_cast %36 : vector<8xf32> to vector<8x1xf32>
    %38 = tpu.reciprocal %37 {approx = true} : vector<8x1xf32> -> vector<8x1xf32>
    %39 = vector.broadcast %38 : vector<8x1xf32> to vector<8x8xf32>
    %40 = arith.mulf %35, %39 : vector<8x8xf32>
    %c0_25 = arith.constant 0 : index
    %c0_26 = arith.constant 0 : index
    %c0_27 = arith.constant 0 : index
    %c0_28 = arith.constant 0 : index
    %41 = vector.load %arg15[%c0_25, %c0_26, %c0_27, %c0_28] : memref<1x8x8x8xf32, #tpu.memory_space<vmem>>, vector<1x1x8x8xf32>
    %42 = vector.shape_cast %41 : vector<1x1x8x8xf32> to vector<8x8xf32>
    %43 = vector.shape_cast %40 : vector<8x8xf32> to vector<1x1x8x8xf32>
    tpu.vector_store %arg15[%c0_25, %c0_26, %c0_27, %c0_28], %43 {strides = array<i32>} : memref<1x8x8x8xf32, #tpu.memory_space<vmem>>, vector<1x1x8x8xf32>,
    %44 = arith.truncf %40 : vector<8x8xf32> to vector<8x8xbf16>
    %cst_29 = arith.constant dense<0.000000e+00> : vector<8x64xf32>
    %45 = tpu.matmul %44, %29, %cst_29 {dimension_numbers = #tpu.dot_dimension_numbers<[1], [0], [0], [1], [0, 0, 1, 1], [], []>} : vector<8x8xbf16>, vector<8x64xbf16>, vector<8x64xf32> -> vector<8x64xf32>
    %46 = arith.truncf %45 : vector<8x64xf32> to vector<8x64xbf16>
    %c0_30 = arith.constant 0 : index
    %c0_31 = arith.constant 0 : index
    %47 = vector.load %arg16[%c0_30, %c0_31] : memref<8x512xbf16, #tpu.memory_space<vmem>>, vector<8x64xbf16>
    tpu.vector_store %arg16[%c0_30, %c0_31], %46 {strides = array<i32>} : memref<8x512xbf16, #tpu.memory_space<vmem>>, vector<8x64xbf16>,
    %48 = vector.extract_strided_slice %14 {offsets = [0, 64], sizes = [8, 64], strides = [1, 1]} : vector<8x512xbf16> to vector<8x64xbf16>
    %49 = vector.extract_strided_slice %20 {offsets = [0, 64], sizes = [8, 64], strides = [1, 1]} : vector<8x512xbf16> to vector<8x64xbf16>
    %50 = vector.extract_strided_slice %26 {offsets = [0, 64], sizes = [8, 64], strides = [1, 1]} : vector<8x512xbf16> to vector<8x64xbf16>
    %cst_32 = arith.constant dense<0.000000e+00> : vector<8x8xf32>
    %51 = tpu.matmul %48, %49, %cst_32 {dimension_numbers = #tpu.dot_dimension_numbers<[1], [1], [0], [0], [0, 0, 1, 0], [], []>} : vector<8x64xbf16>, vector<8x64xbf16>, vector<8x8xf32> -> vector<8x8xf32>
    %cst_33 = arith.constant dense<0xFF800000> : vector<8xf32>
    %52 = vector.multi_reduction <maximumf>, %51, %cst_33 [1] : vector<8x8xf32> to vector<8xf32>
    %53 = vector.shape_cast %52 : vector<8xf32> to vector<8x1xf32>
    %54 = vector.broadcast %53 : vector<8x1xf32> to vector<8x8xf32>
    %55 = arith.subf %51, %54 : vector<8x8xf32>
    %56 = math.exp %55 : vector<8x8xf32>
    %cst_34 = arith.constant dense<0.000000e+00> : vector<8xf32>
    %57 = vector.multi_reduction <add>, %56, %cst_34 [1] : vector<8x8xf32> to vector<8xf32>
    %58 = vector.shape_cast %57 : vector<8xf32> to vector<8x1xf32>
    %59 = tpu.reciprocal %58 {approx = true} : vector<8x1xf32> -> vector<8x1xf32>
    %60 = vector.broadcast %59 : vector<8x1xf32> to vector<8x8xf32>
    %61 = arith.mulf %56, %60 : vector<8x8xf32>
    %c0_35 = arith.constant 0 : index
    %c1 = arith.constant 1 : index
    %c0_36 = arith.constant 0 : index
    %c0_37 = arith.constant 0 : index
    %62 = vector.load %arg15[%c0_35, %c1, %c0_36, %c0_37] : memref<1x8x8x8xf32, #tpu.memory_space<vmem>>, vector<1x1x8x8xf32>
    %63 = vector.shape_cast %62 : vector<1x1x8x8xf32> to vector<8x8xf32>
    %64 = vector.shape_cast %61 : vector<8x8xf32> to vector<1x1x8x8xf32>
    tpu.vector_store %arg15[%c0_35, %c1, %c0_36, %c0_37], %64 {strides = array<i32>} : memref<1x8x8x8xf32, #tpu.memory_space<vmem>>, vector<1x1x8x8xf32>,
    %65 = arith.truncf %61 : vector<8x8xf32> to vector<8x8xbf16>
    %cst_38 = arith.constant dense<0.000000e+00> : vector<8x64xf32>
    %66 = tpu.matmul %65, %50, %cst_38 {dimension_numbers = #tpu.dot_dimension_numbers<[1], [0], [0], [1], [0, 0, 1, 1], [], []>} : vector<8x8xbf16>, vector<8x64xbf16>, vector<8x64xf32> -> vector<8x64xf32>
    %67 = arith.truncf %66 : vector<8x64xf32> to vector<8x64xbf16>
    %c0_39 = arith.constant 0 : index
    %c64 = arith.constant 64 : index
    %68 = vector.load %arg16[%c0_39, %c64] : memref<8x512xbf16, #tpu.memory_space<vmem>>, vector<8x64xbf16>
    tpu.vector_store %arg16[%c0_39, %c64], %67 {strides = array<i32>} : memref<8x512xbf16, #tpu.memory_space<vmem>>, vector<8x64xbf16>,
    %69 = vector.extract_strided_slice %14 {offsets = [0, 128], sizes = [8, 64], strides = [1, 1]} : vector<8x512xbf16> to vector<8x64xbf16>
    %70 = vector.extract_strided_slice %20 {offsets = [0, 128], sizes = [8, 64], strides = [1, 1]} : vector<8x512xbf16> to vector<8x64xbf16>
    %71 = vector.extract_strided_slice %26 {offsets = [0, 128], sizes = [8, 64], strides = [1, 1]} : vector<8x512xbf16> to vector<8x64xbf16>
    %cst_40 = arith.constant dense<0.000000e+00> : vector<8x8xf32>
    %72 = tpu.matmul %69, %70, %cst_40 {dimension_numbers = #tpu.dot_dimension_numbers<[1], [1], [0], [0], [0, 0, 1, 0], [], []>} : vector<8x64xbf16>, vector<8x64xbf16>, vector<8x8xf32> -> vector<8x8xf32>
    %cst_41 = arith.constant dense<0xFF800000> : vector<8xf32>
    %73 = vector.multi_reduction <maximumf>, %72, %cst_41 [1] : vector<8x8xf32> to vector<8xf32>
    %74 = vector.shape_cast %73 : vector<8xf32> to vector<8x1xf32>
    %75 = vector.broadcast %74 : vector<8x1xf32> to vector<8x8xf32>
    %76 = arith.subf %72, %75 : vector<8x8xf32>
    %77 = math.exp %76 : vector<8x8xf32>
    %cst_42 = arith.constant dense<0.000000e+00> : vector<8xf32>
    %78 = vector.multi_reduction <add>, %77, %cst_42 [1] : vector<8x8xf32> to vector<8xf32>
    %79 = vector.shape_cast %78 : vector<8xf32> to vector<8x1xf32>
    %80 = tpu.reciprocal %79 {approx = true} : vector<8x1xf32> -> vector<8x1xf32>
    %81 = vector.broadcast %80 : vector<8x1xf32> to vector<8x8xf32>
    %82 = arith.mulf %77, %81 : vector<8x8xf32>
    %c0_43 = arith.constant 0 : index
    %c2 = arith.constant 2 : index
    %c0_44 = arith.constant 0 : index
    %c0_45 = arith.constant 0 : index
    %83 = vector.load %arg15[%c0_43, %c2, %c0_44, %c0_45] : memref<1x8x8x8xf32, #tpu.memory_space<vmem>>, vector<1x1x8x8xf32>
    %84 = vector.shape_cast %83 : vector<1x1x8x8xf32> to vector<8x8xf32>
    %85 = vector.shape_cast %82 : vector<8x8xf32> to vector<1x1x8x8xf32>
    tpu.vector_store %arg15[%c0_43, %c2, %c0_44, %c0_45], %85 {strides = array<i32>} : memref<1x8x8x8xf32, #tpu.memory_space<vmem>>, vector<1x1x8x8xf32>,
    %86 = arith.truncf %82 : vector<8x8xf32> to vector<8x8xbf16>
    %cst_46 = arith.constant dense<0.000000e+00> : vector<8x64xf32>
    %87 = tpu.matmul %86, %71, %cst_46 {dimension_numbers = #tpu.dot_dimension_numbers<[1], [0], [0], [1], [0, 0, 1, 1], [], []>} : vector<8x8xbf16>, vector<8x64xbf16>, vector<8x64xf32> -> vector<8x64xf32>
    %88 = arith.truncf %87 : vector<8x64xf32> to vector<8x64xbf16>
    %c0_47 = arith.constant 0 : index
    %c128 = arith.constant 128 : index
    %89 = vector.load %arg16[%c0_47, %c128] : memref<8x512xbf16, #tpu.memory_space<vmem>>, vector<8x64xbf16>
    tpu.vector_store %arg16[%c0_47, %c128], %88 {strides = array<i32>} : memref<8x512xbf16, #tpu.memory_space<vmem>>, vector<8x64xbf16>,
    %90 = vector.extract_strided_slice %14 {offsets = [0, 192], sizes = [8, 64], strides = [1, 1]} : vector<8x512xbf16> to vector<8x64xbf16>
    %91 = vector.extract_strided_slice %20 {offsets = [0, 192], sizes = [8, 64], strides = [1, 1]} : vector<8x512xbf16> to vector<8x64xbf16>
    %92 = vector.extract_strided_slice %26 {offsets = [0, 192], sizes = [8, 64], strides = [1, 1]} : vector<8x512xbf16> to vector<8x64xbf16>
    %cst_48 = arith.constant dense<0.000000e+00> : vector<8x8xf32>
    %93 = tpu.matmul %90, %91, %cst_48 {dimension_numbers = #tpu.dot_dimension_numbers<[1], [1], [0], [0], [0, 0, 1, 0], [], []>} : vector<8x64xbf16>, vector<8x64xbf16>, vector<8x8xf32> -> vector<8x8xf32>
    %cst_49 = arith.constant dense<0xFF800000> : vector<8xf32>
    %94 = vector.multi_reduction <maximumf>, %93, %cst_49 [1] : vector<8x8xf32> to vector<8xf32>
    %95 = vector.shape_cast %94 : vector<8xf32> to vector<8x1xf32>
    %96 = vector.broadcast %95 : vector<8x1xf32> to vector<8x8xf32>
    %97 = arith.subf %93, %96 : vector<8x8xf32>
    %98 = math.exp %97 : vector<8x8xf32>
    %cst_50 = arith.constant dense<0.000000e+00> : vector<8xf32>
    %99 = vector.multi_reduction <add>, %98, %cst_50 [1] : vector<8x8xf32> to vector<8xf32>
    %100 = vector.shape_cast %99 : vector<8xf32> to vector<8x1xf32>
    %101 = tpu.reciprocal %100 {approx = true} : vector<8x1xf32> -> vector<8x1xf32>
    %102 = vector.broadcast %101 : vector<8x1xf32> to vector<8x8xf32>
    %103 = arith.mulf %98, %102 : vector<8x8xf32>
    %c0_51 = arith.constant 0 : index
    %c3 = arith.constant 3 : index
    %c0_52 = arith.constant 0 : index
    %c0_53 = arith.constant 0 : index
    %104 = vector.load %arg15[%c0_51, %c3, %c0_52, %c0_53] : memref<1x8x8x8xf32, #tpu.memory_space<vmem>>, vector<1x1x8x8xf32>
    %105 = vector.shape_cast %104 : vector<1x1x8x8xf32> to vector<8x8xf32>
    %106 = vector.shape_cast %103 : vector<8x8xf32> to vector<1x1x8x8xf32>
    tpu.vector_store %arg15[%c0_51, %c3, %c0_52, %c0_53], %106 {strides = array<i32>} : memref<1x8x8x8xf32, #tpu.memory_space<vmem>>, vector<1x1x8x8xf32>,
    %107 = arith.truncf %103 : vector<8x8xf32> to vector<8x8xbf16>
    %cst_54 = arith.constant dense<0.000000e+00> : vector<8x64xf32>
    %108 = tpu.matmul %107, %92, %cst_54 {dimension_numbers = #tpu.dot_dimension_numbers<[1], [0], [0], [1], [0, 0, 1, 1], [], []>} : vector<8x8xbf16>, vector<8x64xbf16>, vector<8x64xf32> -> vector<8x64xf32>
    %109 = arith.truncf %108 : vector<8x64xf32> to vector<8x64xbf16>
    %c0_55 = arith.constant 0 : index
    %c192 = arith.constant 192 : index
    %110 = vector.load %arg16[%c0_55, %c192] : memref<8x512xbf16, #tpu.memory_space<vmem>>, vector<8x64xbf16>
    tpu.vector_store %arg16[%c0_55, %c192], %109 {strides = array<i32>} : memref<8x512xbf16, #tpu.memory_space<vmem>>, vector<8x64xbf16>,
    %111 = vector.extract_strided_slice %14 {offsets = [0, 256], sizes = [8, 64], strides = [1, 1]} : vector<8x512xbf16> to vector<8x64xbf16>
    %112 = vector.extract_strided_slice %20 {offsets = [0, 256], sizes = [8, 64], strides = [1, 1]} : vector<8x512xbf16> to vector<8x64xbf16>
    %113 = vector.extract_strided_slice %26 {offsets = [0, 256], sizes = [8, 64], strides = [1, 1]} : vector<8x512xbf16> to vector<8x64xbf16>
    %cst_56 = arith.constant dense<0.000000e+00> : vector<8x8xf32>
    %114 = tpu.matmul %111, %112, %cst_56 {dimension_numbers = #tpu.dot_dimension_numbers<[1], [1], [0], [0], [0, 0, 1, 0], [], []>} : vector<8x64xbf16>, vector<8x64xbf16>, vector<8x8xf32> -> vector<8x8xf32>
    %cst_57 = arith.constant dense<0xFF800000> : vector<8xf32>
    %115 = vector.multi_reduction <maximumf>, %114, %cst_57 [1] : vector<8x8xf32> to vector<8xf32>
    %116 = vector.shape_cast %115 : vector<8xf32> to vector<8x1xf32>
    %117 = vector.broadcast %116 : vector<8x1xf32> to vector<8x8xf32>
    %118 = arith.subf %114, %117 : vector<8x8xf32>
    %119 = math.exp %118 : vector<8x8xf32>
    %cst_58 = arith.constant dense<0.000000e+00> : vector<8xf32>
    %120 = vector.multi_reduction <add>, %119, %cst_58 [1] : vector<8x8xf32> to vector<8xf32>
    %121 = vector.shape_cast %120 : vector<8xf32> to vector<8x1xf32>
    %122 = tpu.reciprocal %121 {approx = true} : vector<8x1xf32> -> vector<8x1xf32>
    %123 = vector.broadcast %122 : vector<8x1xf32> to vector<8x8xf32>
    %124 = arith.mulf %119, %123 : vector<8x8xf32>
    %c0_59 = arith.constant 0 : index
    %c4 = arith.constant 4 : index
    %c0_60 = arith.constant 0 : index
    %c0_61 = arith.constant 0 : index
    %125 = vector.load %arg15[%c0_59, %c4, %c0_60, %c0_61] : memref<1x8x8x8xf32, #tpu.memory_space<vmem>>, vector<1x1x8x8xf32>
    %126 = vector.shape_cast %125 : vector<1x1x8x8xf32> to vector<8x8xf32>
    %127 = vector.shape_cast %124 : vector<8x8xf32> to vector<1x1x8x8xf32>
    tpu.vector_store %arg15[%c0_59, %c4, %c0_60, %c0_61], %127 {strides = array<i32>} : memref<1x8x8x8xf32, #tpu.memory_space<vmem>>, vector<1x1x8x8xf32>,
    %128 = arith.truncf %124 : vector<8x8xf32> to vector<8x8xbf16>
    %cst_62 = arith.constant dense<0.000000e+00> : vector<8x64xf32>
    %129 = tpu.matmul %128, %113, %cst_62 {dimension_numbers = #tpu.dot_dimension_numbers<[1], [0], [0], [1], [0, 0, 1, 1], [], []>} : vector<8x8xbf16>, vector<8x64xbf16>, vector<8x64xf32> -> vector<8x64xf32>
    %130 = arith.truncf %129 : vector<8x64xf32> to vector<8x64xbf16>
    %c0_63 = arith.constant 0 : index
    %c256 = arith.constant 256 : index
    %131 = vector.load %arg16[%c0_63, %c256] : memref<8x512xbf16, #tpu.memory_space<vmem>>, vector<8x64xbf16>
    tpu.vector_store %arg16[%c0_63, %c256], %130 {strides = array<i32>} : memref<8x512xbf16, #tpu.memory_space<vmem>>, vector<8x64xbf16>,
    %132 = vector.extract_strided_slice %14 {offsets = [0, 320], sizes = [8, 64], strides = [1, 1]} : vector<8x512xbf16> to vector<8x64xbf16>
    %133 = vector.extract_strided_slice %20 {offsets = [0, 320], sizes = [8, 64], strides = [1, 1]} : vector<8x512xbf16> to vector<8x64xbf16>
    %134 = vector.extract_strided_slice %26 {offsets = [0, 320], sizes = [8, 64], strides = [1, 1]} : vector<8x512xbf16> to vector<8x64xbf16>
    %cst_64 = arith.constant dense<0.000000e+00> : vector<8x8xf32>
    %135 = tpu.matmul %132, %133, %cst_64 {dimension_numbers = #tpu.dot_dimension_numbers<[1], [1], [0], [0], [0, 0, 1, 0], [], []>} : vector<8x64xbf16>, vector<8x64xbf16>, vector<8x8xf32> -> vector<8x8xf32>
    %cst_65 = arith.constant dense<0xFF800000> : vector<8xf32>
    %136 = vector.multi_reduction <maximumf>, %135, %cst_65 [1] : vector<8x8xf32> to vector<8xf32>
    %137 = vector.shape_cast %136 : vector<8xf32> to vector<8x1xf32>
    %138 = vector.broadcast %137 : vector<8x1xf32> to vector<8x8xf32>
    %139 = arith.subf %135, %138 : vector<8x8xf32>
    %140 = math.exp %139 : vector<8x8xf32>
    %cst_66 = arith.constant dense<0.000000e+00> : vector<8xf32>
    %141 = vector.multi_reduction <add>, %140, %cst_66 [1] : vector<8x8xf32> to vector<8xf32>
    %142 = vector.shape_cast %141 : vector<8xf32> to vector<8x1xf32>
    %143 = tpu.reciprocal %142 {approx = true} : vector<8x1xf32> -> vector<8x1xf32>
    %144 = vector.broadcast %143 : vector<8x1xf32> to vector<8x8xf32>
    %145 = arith.mulf %140, %144 : vector<8x8xf32>
    %c0_67 = arith.constant 0 : index
    %c5 = arith.constant 5 : index
    %c0_68 = arith.constant 0 : index
    %c0_69 = arith.constant 0 : index
    %146 = vector.load %arg15[%c0_67, %c5, %c0_68, %c0_69] : memref<1x8x8x8xf32, #tpu.memory_space<vmem>>, vector<1x1x8x8xf32>
    %147 = vector.shape_cast %146 : vector<1x1x8x8xf32> to vector<8x8xf32>
    %148 = vector.shape_cast %145 : vector<8x8xf32> to vector<1x1x8x8xf32>
    tpu.vector_store %arg15[%c0_67, %c5, %c0_68, %c0_69], %148 {strides = array<i32>} : memref<1x8x8x8xf32, #tpu.memory_space<vmem>>, vector<1x1x8x8xf32>,
    %149 = arith.truncf %145 : vector<8x8xf32> to vector<8x8xbf16>
    %cst_70 = arith.constant dense<0.000000e+00> : vector<8x64xf32>
    %150 = tpu.matmul %149, %134, %cst_70 {dimension_numbers = #tpu.dot_dimension_numbers<[1], [0], [0], [1], [0, 0, 1, 1], [], []>} : vector<8x8xbf16>, vector<8x64xbf16>, vector<8x64xf32> -> vector<8x64xf32>
    %151 = arith.truncf %150 : vector<8x64xf32> to vector<8x64xbf16>
    %c0_71 = arith.constant 0 : index
    %c320 = arith.constant 320 : index
    %152 = vector.load %arg16[%c0_71, %c320] : memref<8x512xbf16, #tpu.memory_space<vmem>>, vector<8x64xbf16>
    tpu.vector_store %arg16[%c0_71, %c320], %151 {strides = array<i32>} : memref<8x512xbf16, #tpu.memory_space<vmem>>, vector<8x64xbf16>,
    %153 = vector.extract_strided_slice %14 {offsets = [0, 384], sizes = [8, 64], strides = [1, 1]} : vector<8x512xbf16> to vector<8x64xbf16>
    %154 = vector.extract_strided_slice %20 {offsets = [0, 384], sizes = [8, 64], strides = [1, 1]} : vector<8x512xbf16> to vector<8x64xbf16>
    %155 = vector.extract_strided_slice %26 {offsets = [0, 384], sizes = [8, 64], strides = [1, 1]} : vector<8x512xbf16> to vector<8x64xbf16>
    %cst_72 = arith.constant dense<0.000000e+00> : vector<8x8xf32>
    %156 = tpu.matmul %153, %154, %cst_72 {dimension_numbers = #tpu.dot_dimension_numbers<[1], [1], [0], [0], [0, 0, 1, 0], [], []>} : vector<8x64xbf16>, vector<8x64xbf16>, vector<8x8xf32> -> vector<8x8xf32>
    %cst_73 = arith.constant dense<0xFF800000> : vector<8xf32>
    %157 = vector.multi_reduction <maximumf>, %156, %cst_73 [1] : vector<8x8xf32> to vector<8xf32>
    %158 = vector.shape_cast %157 : vector<8xf32> to vector<8x1xf32>
    %159 = vector.broadcast %158 : vector<8x1xf32> to vector<8x8xf32>
    %160 = arith.subf %156, %159 : vector<8x8xf32>
    %161 = math.exp %160 : vector<8x8xf32>
    %cst_74 = arith.constant dense<0.000000e+00> : vector<8xf32>
    %162 = vector.multi_reduction <add>, %161, %cst_74 [1] : vector<8x8xf32> to vector<8xf32>
    %163 = vector.shape_cast %162 : vector<8xf32> to vector<8x1xf32>
    %164 = tpu.reciprocal %163 {approx = true} : vector<8x1xf32> -> vector<8x1xf32>
    %165 = vector.broadcast %164 : vector<8x1xf32> to vector<8x8xf32>
    %166 = arith.mulf %161, %165 : vector<8x8xf32>
    %c0_75 = arith.constant 0 : index
    %c6 = arith.constant 6 : index
    %c0_76 = arith.constant 0 : index
    %c0_77 = arith.constant 0 : index
    %167 = vector.load %arg15[%c0_75, %c6, %c0_76, %c0_77] : memref<1x8x8x8xf32, #tpu.memory_space<vmem>>, vector<1x1x8x8xf32>
    %168 = vector.shape_cast %167 : vector<1x1x8x8xf32> to vector<8x8xf32>
    %169 = vector.shape_cast %166 : vector<8x8xf32> to vector<1x1x8x8xf32>
    tpu.vector_store %arg15[%c0_75, %c6, %c0_76, %c0_77], %169 {strides = array<i32>} : memref<1x8x8x8xf32, #tpu.memory_space<vmem>>, vector<1x1x8x8xf32>,
    %170 = arith.truncf %166 : vector<8x8xf32> to vector<8x8xbf16>
    %cst_78 = arith.constant dense<0.000000e+00> : vector<8x64xf32>
    %171 = tpu.matmul %170, %155, %cst_78 {dimension_numbers = #tpu.dot_dimension_numbers<[1], [0], [0], [1], [0, 0, 1, 1], [], []>} : vector<8x8xbf16>, vector<8x64xbf16>, vector<8x64xf32> -> vector<8x64xf32>
    %172 = arith.truncf %171 : vector<8x64xf32> to vector<8x64xbf16>
    %c0_79 = arith.constant 0 : index
    %c384 = arith.constant 384 : index
    %173 = vector.load %arg16[%c0_79, %c384] : memref<8x512xbf16, #tpu.memory_space<vmem>>, vector<8x64xbf16>
    tpu.vector_store %arg16[%c0_79, %c384], %172 {strides = array<i32>} : memref<8x512xbf16, #tpu.memory_space<vmem>>, vector<8x64xbf16>,
    %174 = vector.extract_strided_slice %14 {offsets = [0, 448], sizes = [8, 64], strides = [1, 1]} : vector<8x512xbf16> to vector<8x64xbf16>
    %175 = vector.extract_strided_slice %20 {offsets = [0, 448], sizes = [8, 64], strides = [1, 1]} : vector<8x512xbf16> to vector<8x64xbf16>
    %176 = vector.extract_strided_slice %26 {offsets = [0, 448], sizes = [8, 64], strides = [1, 1]} : vector<8x512xbf16> to vector<8x64xbf16>
    %cst_80 = arith.constant dense<0.000000e+00> : vector<8x8xf32>
    %177 = tpu.matmul %174, %175, %cst_80 {dimension_numbers = #tpu.dot_dimension_numbers<[1], [1], [0], [0], [0, 0, 1, 0], [], []>} : vector<8x64xbf16>, vector<8x64xbf16>, vector<8x8xf32> -> vector<8x8xf32>
    %cst_81 = arith.constant dense<0xFF800000> : vector<8xf32>
    %178 = vector.multi_reduction <maximumf>, %177, %cst_81 [1] : vector<8x8xf32> to vector<8xf32>
    %179 = vector.shape_cast %178 : vector<8xf32> to vector<8x1xf32>
    %180 = vector.broadcast %179 : vector<8x1xf32> to vector<8x8xf32>
    %181 = arith.subf %177, %180 : vector<8x8xf32>
    %182 = math.exp %181 : vector<8x8xf32>
    %cst_82 = arith.constant dense<0.000000e+00> : vector<8xf32>
    %183 = vector.multi_reduction <add>, %182, %cst_82 [1] : vector<8x8xf32> to vector<8xf32>
    %184 = vector.shape_cast %183 : vector<8xf32> to vector<8x1xf32>
    %185 = tpu.reciprocal %184 {approx = true} : vector<8x1xf32> -> vector<8x1xf32>
    %186 = vector.broadcast %185 : vector<8x1xf32> to vector<8x8xf32>
    %187 = arith.mulf %182, %186 : vector<8x8xf32>
    %c0_83 = arith.constant 0 : index
    %c7 = arith.constant 7 : index
    %c0_84 = arith.constant 0 : index
    %c0_85 = arith.constant 0 : index
    %188 = vector.load %arg15[%c0_83, %c7, %c0_84, %c0_85] : memref<1x8x8x8xf32, #tpu.memory_space<vmem>>, vector<1x1x8x8xf32>
    %189 = vector.shape_cast %188 : vector<1x1x8x8xf32> to vector<8x8xf32>
    %190 = vector.shape_cast %187 : vector<8x8xf32> to vector<1x1x8x8xf32>
    tpu.vector_store %arg15[%c0_83, %c7, %c0_84, %c0_85], %190 {strides = array<i32>} : memref<1x8x8x8xf32, #tpu.memory_space<vmem>>, vector<1x1x8x8xf32>,
    %191 = arith.truncf %187 : vector<8x8xf32> to vector<8x8xbf16>
    %cst_86 = arith.constant dense<0.000000e+00> : vector<8x64xf32>
    %192 = tpu.matmul %191, %176, %cst_86 {dimension_numbers = #tpu.dot_dimension_numbers<[1], [0], [0], [1], [0, 0, 1, 1], [], []>} : vector<8x8xbf16>, vector<8x64xbf16>, vector<8x64xf32> -> vector<8x64xf32>
    %193 = arith.truncf %192 : vector<8x64xf32> to vector<8x64xbf16>
    %c0_87 = arith.constant 0 : index
    %c448 = arith.constant 448 : index
    %194 = vector.load %arg16[%c0_87, %c448] : memref<8x512xbf16, #tpu.memory_space<vmem>>, vector<8x64xbf16>
    tpu.vector_store %arg16[%c0_87, %c448], %193 {strides = array<i32>} : memref<8x512xbf16, #tpu.memory_space<vmem>>, vector<8x64xbf16>,
    %c0_88 = arith.constant 0 : index
    %c0_89 = arith.constant 0 : index
    %195 = vector.load %arg16[%c0_88, %c0_89] : memref<8x512xbf16, #tpu.memory_space<vmem>>, vector<8x512xbf16>
    %c0_90 = arith.constant 0 : index
    %c0_91 = arith.constant 0 : index
    %196 = vector.load %arg10[%c0_90, %c0_91] : memref<512x512xbf16, #tpu.memory_space<vmem>>, vector<512x512xbf16>
    %cst_92 = arith.constant dense<0.000000e+00> : vector<8x512xf32>
    %197 = tpu.matmul %195, %196, %cst_92 {dimension_numbers = #tpu.dot_dimension_numbers<[1], [0], [0], [1], [0, 0, 1, 1], [], []>} : vector<8x512xbf16>, vector<512x512xbf16>, vector<8x512xf32> -> vector<8x512xf32>
    %c0_93 = arith.constant 0 : index
    %c0_94 = arith.constant 0 : index
    %198 = vector.load %arg11[%c0_93, %c0_94] : memref<1x512xf32, #tpu.memory_space<vmem>>, vector<1x512xf32>
    %199 = vector.broadcast %198 : vector<1x512xf32> to vector<8x512xf32>
    %200 = arith.addf %197, %199 : vector<8x512xf32>
    %201 = arith.addf %200, %1 : vector<8x512xf32>
    %cst_95 = arith.constant dense<0.000000e+00> : vector<8xf32>
    %202 = vector.multi_reduction <add>, %201, %cst_95 [1] : vector<8x512xf32> to vector<8xf32>
    %203 = vector.shape_cast %202 : vector<8xf32> to vector<8x1xf32>
    %cst_96 = arith.constant 5.120000e+02 : f32
    %204 = vector.broadcast %cst_96 : f32 to vector<8x1xf32>
    %205 = arith.divf %203, %204 : vector<8x1xf32>
    %206 = vector.broadcast %205 : vector<8x1xf32> to vector<8x512xf32>
    %207 = arith.subf %201, %206 : vector<8x512xf32>
    %208 = arith.mulf %207, %207 : vector<8x512xf32>
    %cst_97 = arith.constant dense<0.000000e+00> : vector<8xf32>
    %209 = vector.multi_reduction <add>, %208, %cst_97 [1] : vector<8x512xf32> to vector<8xf32>
    %210 = vector.shape_cast %209 : vector<8xf32> to vector<8x1xf32>
    %cst_98 = arith.constant 5.120000e+02 : f32
    %211 = vector.broadcast %cst_98 : f32 to vector<8x1xf32>
    %212 = arith.divf %210, %211 : vector<8x1xf32>
    %213 = vector.broadcast %205 : vector<8x1xf32> to vector<8x512xf32>
    %214 = arith.subf %201, %213 : vector<8x512xf32>
    %cst_99 = arith.constant 9.99999974E-6 : f32
    %215 = vector.broadcast %cst_99 : f32 to vector<8x1xf32>
    %216 = arith.addf %212, %215 : vector<8x1xf32>
    %217 = math.rsqrt %216 : vector<8x1xf32>
    %218 = vector.broadcast %217 : vector<8x1xf32> to vector<8x512xf32>
    %219 = arith.mulf %214, %218 : vector<8x512xf32>
    %c0_100 = arith.constant 0 : index
    %c0_101 = arith.constant 0 : index
    %220 = vector.load %arg12[%c0_100, %c0_101] : memref<1x512xf32, #tpu.memory_space<vmem>>, vector<1x512xf32>
    %221 = vector.broadcast %220 : vector<1x512xf32> to vector<8x512xf32>
    %222 = arith.mulf %219, %221 : vector<8x512xf32>
    %c0_102 = arith.constant 0 : index
    %c0_103 = arith.constant 0 : index
    %223 = vector.load %arg13[%c0_102, %c0_103] : memref<1x512xf32, #tpu.memory_space<vmem>>, vector<1x512xf32>
    %224 = vector.broadcast %223 : vector<1x512xf32> to vector<8x512xf32>
    %225 = arith.addf %222, %224 : vector<8x512xf32>
    %c0_104 = arith.constant 0 : index
    %c0_105 = arith.constant 0 : index
    %c0_106 = arith.constant 0 : index
    %226 = vector.load %arg14[%c0_104, %c0_105, %c0_106] : memref<1x8x512xf32, #tpu.memory_space<vmem>>, vector<1x8x512xf32>
    %227 = vector.shape_cast %226 : vector<1x8x512xf32> to vector<8x512xf32>
    %228 = vector.shape_cast %225 : vector<8x512xf32> to vector<1x8x512xf32>
    tpu.vector_store %arg14[%c0_104, %c0_105, %c0_106], %228 {strides = array<i32>} : memref<1x8x512xf32, #tpu.memory_space<vmem>>, vector<1x8x512xf32>,
    return
  }
  func.func @transform_0(%arg0: i32) -> (i32, i32, i32) {
    %c0_i32 = arith.constant 0 : i32
    %c0_i32_0 = arith.constant 0 : i32
    %c0_i32_1 = arith.constant 0 : i32
    return %arg0, %c0_i32, %c0_i32_0 : i32, i32, i32
  }
  func.func @transform_1(%arg0: i32) -> (i32, i32, i32) {
    %c0_i32 = arith.constant 0 : i32
    %c0_i32_0 = arith.constant 0 : i32
    %c0_i32_1 = arith.constant 0 : i32
    return %arg0, %c0_i32, %c0_i32_0 : i32, i32, i32
  }
  func.func @transform_2(%arg0: i32) -> (i32, i32, i32) {
    %c0_i32 = arith.constant 0 : i32
    %c0_i32_0 = arith.constant 0 : i32
    %c0_i32_1 = arith.constant 0 : i32
    return %arg0, %c0_i32, %c0_i32_0 : i32, i32, i32
  }
  func.func @transform_3(%arg0: i32) -> (i32, i32) {
    %c0_i32 = arith.constant 0 : i32
    %c0_i32_0 = arith.constant 0 : i32
    %c0_i32_1 = arith.constant 0 : i32
    return %c0_i32, %c0_i32_0 : i32, i32
  }
  func.func @transform_4(%arg0: i32) -> (i32, i32) {
    %c0_i32 = arith.constant 0 : i32
    %c0_i32_0 = arith.constant 0 : i32
    %c0_i32_1 = arith.constant 0 : i32
    return %c0_i32, %c0_i32_0 : i32, i32
  }
  func.func @transform_5(%arg0: i32) -> (i32, i32) {
    %c0_i32 = arith.constant 0 : i32
    %c0_i32_0 = arith.constant 0 : i32
    %c0_i32_1 = arith.constant 0 : i32
    return %c0_i32, %c0_i32_0 : i32, i32
  }
  func.func @transform_6(%arg0: i32) -> (i32, i32) {
    %c0_i32 = arith.constant 0 : i32
    %c0_i32_0 = arith.constant 0 : i32
    %c0_i32_1 = arith.constant 0 : i32
    return %c0_i32, %c0_i32_0 : i32, i32
  }
  func.func @transform_7(%arg0: i32) -> (i32, i32) {
    %c0_i32 = arith.constant 0 : i32
    %c0_i32_0 = arith.constant 0 : i32
    %c0_i32_1 = arith.constant 0 : i32
    return %c0_i32, %c0_i32_0 : i32, i32
  }
  func.func @transform_8(%arg0: i32) -> (i32, i32) {
    %c0_i32 = arith.constant 0 : i32
    %c0_i32_0 = arith.constant 0 : i32
    %c0_i32_1 = arith.constant 0 : i32
    return %c0_i32, %c0_i32_0 : i32, i32
  }
  func.func @transform_9(%arg0: i32) -> (i32, i32) {
    %c0_i32 = arith.constant 0 : i32
    %c0_i32_0 = arith.constant 0 : i32
    %c0_i32_1 = arith.constant 0 : i32
    return %c0_i32, %c0_i32_0 : i32, i32
  }
  func.func @transform_10(%arg0: i32) -> (i32, i32) {
    %c0_i32 = arith.constant 0 : i32
    %c0_i32_0 = arith.constant 0 : i32
    %c0_i32_1 = arith.constant 0 : i32
    return %c0_i32, %c0_i32_0 : i32, i32
  }
  func.func @transform_11(%arg0: i32) -> (i32, i32) {
    %c0_i32 = arith.constant 0 : i32
    %c0_i32_0 = arith.constant 0 : i32
    %c0_i32_1 = arith.constant 0 : i32
    return %c0_i32, %c0_i32_0 : i32, i32
  }
  func.func @transform_12(%arg0: i32) -> (i32, i32) {
    %c0_i32 = arith.constant 0 : i32
    %c0_i32_0 = arith.constant 0 : i32
    %c0_i32_1 = arith.constant 0 : i32
    return %c0_i32, %c0_i32_0 : i32, i32
  }
  func.func @transform_13(%arg0: i32) -> (i32, i32, i32) {
    %c0_i32 = arith.constant 0 : i32
    %c0_i32_0 = arith.constant 0 : i32
    %c0_i32_1 = arith.constant 0 : i32
    return %arg0, %c0_i32, %c0_i32_0 : i32, i32, i32
  }
  func.func @transform_14(%arg0: i32) -> (i32, i32, i32, i32) {
    %c0_i32 = arith.constant 0 : i32
    %c0_i32_0 = arith.constant 0 : i32
    %c0_i32_1 = arith.constant 0 : i32
    %c0_i32_2 = arith.constant 0 : i32
    return %arg0, %c0_i32, %c0_i32_0, %c0_i32_1 : i32, i32, i32, i32
  }
}

</mosaic_0001>

<llo_original>
// kernel: tpu_custom_call.1
$region0: #{tpu_custom_call.1}
  #allocation0 [shape = 'u32[]', space=smem, size = 0x4, offset = 0x4, fixed_abs, tag = 'smem constant byte address 0x4 - core index']
  #allocation1 [shape = 'u32[144,128]{1,0:T(1,128)}', space=vmem, size = 0x12000, scoped, tag = 'internal scratch']
  #allocation2 [shape = 'bf16[8,512]{1,0:T(8,128)(2,1)}', space=vmem, size = 0x2000, scoped, tag = 'scratch operand']
  %s0 = inlined_call_operand.hbm [shape: f32[2,8,512], index: 0, kind: input, shape index: {}]
  %s1 = inlined_call_operand.hbm [shape: f32[2,8,512], index: 1, kind: input, shape index: {}]
  %s2 = inlined_call_operand.hbm [shape: f32[2,8,512], index: 2, kind: input, shape index: {}]
  %s3 = inlined_call_operand.hbm [shape: bf16[512,512], index: 3, kind: input, shape index: {}]
  %s4 = inlined_call_operand.hbm [shape: f32[1,512], index: 4, kind: input, shape index: {}]
  %s5 = inlined_call_operand.hbm [shape: bf16[512,512], index: 5, kind: input, shape index: {}]
  %s6 = inlined_call_operand.hbm [shape: f32[1,512], index: 6, kind: input, shape index: {}]
  %s7 = inlined_call_operand.hbm [shape: bf16[512,512], index: 7, kind: input, shape index: {}]
  %s8 = inlined_call_operand.hbm [shape: f32[1,512], index: 8, kind: input, shape index: {}]
  %s9 = inlined_call_operand.hbm [shape: bf16[512,512], index: 9, kind: input, shape index: {}]
  %s10 = inlined_call_operand.hbm [shape: f32[1,512], index: 10, kind: input, shape index: {}]
  %s11 = inlined_call_operand.hbm [shape: f32[1,512], index: 11, kind: input, shape index: {}]
  %s12 = inlined_call_operand.hbm [shape: f32[1,512], index: 12, kind: input, shape index: {}]
  %s13 = inlined_call_operand.hbm [shape: f32[2,8,512], index: 13, kind: output, shape index: {0}]
  %s14 = inlined_call_operand.hbm [shape: f32[2,8,8,8], index: 14, kind: output, shape index: {1}]
  %15 = xla_tuple %s13, %s14
  %s16 = sld [smem:[#allocation0]]
  $region145: #{tpu_custom_call.1} parent=0
    _
  %s18 = ssub.s32 1, %s16
  %s19 = scalar_select 0, %s18, %s16
  $region1: #{tpu_custom_call.1} parent=0
    #allocation3 [shape = 'u8[32768]{0}', space=vmem, size = 0x8000, scoped, tag = 'input window, operand 0']
    #allocation4 [shape = 's32[2]{0}', space=sflag, size = 0x8, scoped, tag = 'scoped memory for tpu_custom_call.1']
    #allocation5 [shape = 's32[2]{0}', space=sflag, size = 0x8, scoped, tag = 'scoped memory for tpu_custom_call.1']
    #allocation6 [shape = 'u8[32768]{0}', space=vmem, size = 0x8000, scoped, tag = 'input window, operand 1']
    #allocation7 [shape = 's32[2]{0}', space=sflag, size = 0x8, scoped, tag = 'scoped memory for tpu_custom_call.1']
    #allocation8 [shape = 'u8[32768]{0}', space=vmem, size = 0x8000, scoped, tag = 'input window, operand 2']
    #allocation9 [shape = 'u8[524288]{0}', space=vmem, size = 0x80000, scoped, tag = 'input window, operand 3, single buffered']
    #allocation10 [shape = 's32[1]{0}', space=sflag, size = 0x4, scoped, tag = 'scoped memory for tpu_custom_call.1']
    #allocation11 [shape = 'u8[2048]{0}', space=vmem, size = 0x800, scoped, tag = 'input window, operand 4, single buffered']
    #allocation12 [shape = 'u8[524288]{0}', space=vmem, size = 0x80000, scoped, tag = 'input window, operand 5, single buffered']
    #allocation13 [shape = 's32[1]{0}', space=sflag, size = 0x4, scoped, tag = 'scoped memory for tpu_custom_call.1']
    #allocation14 [shape = 'u8[2048]{0}', space=vmem, size = 0x800, scoped, tag = 'input window, operand 6, single buffered']
    #allocation15 [shape = 'u8[524288]{0}', space=vmem, size = 0x80000, scoped, tag = 'input window, operand 7, single buffered']
    #allocation16 [shape = 's32[1]{0}', space=sflag, size = 0x4, scoped, tag = 'scoped memory for tpu_custom_call.1']
    #allocation17 [shape = 'u8[2048]{0}', space=vmem, size = 0x800, scoped, tag = 'input window, operand 8, single buffered']
    #allocation18 [shape = 'u8[524288]{0}', space=vmem, size = 0x80000, scoped, tag = 'input window, operand 9, single buffered']
    #allocation19 [shape = 's32[1]{0}', space=sflag, size = 0x4, scoped, tag = 'scoped memory for tpu_custom_call.1']
    #allocation20 [shape = 'u8[2048]{0}', space=vmem, size = 0x800, scoped, tag = 'input window, operand 10, single buffered']
    #allocation21 [shape = 'u8[2048]{0}', space=vmem, size = 0x800, scoped, tag = 'input window, operand 11, single buffered']
    #allocation22 [shape = 's32[1]{0}', space=sflag, size = 0x4, scoped, tag = 'scoped memory for tpu_custom_call.1']
    #allocation23 [shape = 'u8[2048]{0}', space=vmem, size = 0x800, scoped, tag = 'input window, operand 12, single buffered']
    #allocation24 [shape = 'u8[32768]{0}', space=vmem, size = 0x8000, scoped, tag = 'output window, operand 0']
    #allocation25 [shape = 'u8[65536]{0}', space=vmem, size = 0x10000, scoped, tag = 'output window, operand 1']
    #allocation26 [shape = 's32[2]{0}', space=sflag, size = 0x8, scoped, tag = 'scoped memory for tpu_custom_call.1']
    %20 = vsyncpa [#allocation4], 0
    %s21 = scalar_lea.sflag [#allocation4], 1
    %22 = vsyncpa %s21, 0
    %23 = vsyncpa [#allocation7], 0
    %s24 = scalar_lea.sflag [#allocation7], 1
    %25 = vsyncpa %s24, 0
    %26 = vsyncpa [#allocation10], 0
    %27 = vsyncpa [#allocation13], 0
    %28 = vsyncpa [#allocation16], 0
    %29 = vsyncpa [#allocation19], 0
    %30 = vsyncpa [#allocation22], 0
    %31 = vsyncpa [#allocation5], 0
    %s32 = scalar_lea.sflag [#allocation5], 1
    %33 = vsyncpa %s32, 0
    %34 = vsyncpa [#allocation26], 0
    %s35 = scalar_lea.sflag [#allocation26], 1
    %36 = vsyncpa %s35, 0
    loop: start=0, step=1, limit=4
    $region2: #{tpu_custom_call.1} parent=1 // loop_pre_header
      _
    $region3: #{tpu_custom_call.1} parent=1 // loop_header
      %s38 = sphi 0, %s42
      %p39 = scmp.ge.s32.totalorder %s38, 4
      %s48 = sphi 0, %s50
      %s51 = sphi 0, %s48
      %s52 = sphi 0, %s51
      %s68 = sphi 0, %s52
      %s74 = sphi 0, %s76
      %s77 = sphi 0, %s74
      %s78 = sphi 0, %s77
      %s94 = sphi 0, %s78
      %s100 = sphi 0, %s102
      %s103 = sphi 0, %s100
      %s104 = sphi 0, %s103
      %s120 = sphi 0, %s104
      %s124 = sphi 0, %s124
      %s126 = sphi 0, %s124
      %s127 = sphi 0, %s126
      %s141 = sphi 0, %s127
      %s145 = sphi 0, %s145
      %s147 = sphi 0, %s145
      %s148 = sphi 0, %s147
      %s162 = sphi 0, %s148
      %s166 = sphi 0, %s166
      %s168 = sphi 0, %s166
      %s169 = sphi 0, %s168
      %s183 = sphi 0, %s169
      %s187 = sphi 0, %s187
      %s189 = sphi 0, %s187
      %s190 = sphi 0, %s189
      %s204 = sphi 0, %s190
      %s208 = sphi 0, %s208
      %s210 = sphi 0, %s208
      %s211 = sphi 0, %s210
      %s225 = sphi 0, %s211
      %s229 = sphi 0, %s229
      %s231 = sphi 0, %s229
      %s232 = sphi 0, %s231
      %s246 = sphi 0, %s232
      %s250 = sphi 0, %s250
      %s252 = sphi 0, %s250
      %s253 = sphi 0, %s252
      %s267 = sphi 0, %s253
      %s271 = sphi 0, %s271
      %s273 = sphi 0, %s271
      %s274 = sphi 0, %s273
      %s288 = sphi 0, %s274
      %s292 = sphi 0, %s292
      %s294 = sphi 0, %s292
      %s295 = sphi 0, %s294
      %s309 = sphi 0, %s295
      %s313 = sphi 0, %s313
      %s315 = sphi 0, %s313
      %s316 = sphi 0, %s315
      %s330 = sphi 0, %s316
      %s336 = sphi 0, %s338
      %s339 = sphi 0, %s336
      %s340 = sphi 0, %s339
      %s356 = sphi 0, %s340
      %s362 = sphi 0, %s364
      %s365 = sphi 0, %s362
      %s366 = sphi 0, %s365
      %s382 = sphi 0, %s366
    $region4: #{tpu_custom_call.1} parent=1 // loop_header_branch
      %41 = sbr.rel (%p39) target = $region8
    $region5: #{tpu_custom_call.1} parent=1 // loop_body
      %s43 = ssub.s32 %s38, 1
      %s44 = ssub.s32 %s38, 2
      %s45 = sadd.s32 %s38, 1
      %s46 = ssub.s32 %s38, %s45
      %p47 = scmp.eq.s32.totalorder %s46, 0
      %s49 = sadd.s32 %s48, 1
      %s50 = scalar_select %p47, %s48, %s49
      %p53 = pneg %p47
      %p54 = scmp.eq.s32.totalorder %s38, 1
      %p55 = por %p53, %p54
      %p56 = scmp.ne.s32.totalorder %s48, %s51
      %p57 = scmp.eq.s32.totalorder %s38, 0
      %p58 = por %p56, %p57
      %p59 = scmp.ne.s32.totalorder %s48, %s51
      %p60 = scmp.eq.s32.totalorder %s43, 1
      %p61 = por %p59, %p60
      %p62 = scmp.ne.s32.totalorder %s51, %s52
      %p63 = scmp.eq.s32.totalorder %s43, 0
      %p64 = por %p62, %p63
      %p65 = scmp.ne.s32.totalorder %s51, %s52
      %p66 = scmp.eq.s32.totalorder %s44, 1
      %p67 = por %p65, %p66
      %p69 = scmp.ne.s32.totalorder %s52, %s68
      %p70 = scmp.eq.s32.totalorder %s44, 0
      %p71 = por %p69, %p70
      %s72 = ssub.s32 %s38, %s45
      %p73 = scmp.eq.s32.totalorder %s72, 0
      %s75 = sadd.s32 %s74, 1
      %s76 = scalar_select %p73, %s74, %s75
      %p79 = pneg %p73
      %p80 = scmp.eq.s32.totalorder %s38, 1
      %p81 = por %p79, %p80
      %p82 = scmp.ne.s32.totalorder %s74, %s77
      %p83 = scmp.eq.s32.totalorder %s38, 0
      %p84 = por %p82, %p83
      %p85 = scmp.ne.s32.totalorder %s74, %s77
      %p86 = scmp.eq.s32.totalorder %s43, 1
      %p87 = por %p85, %p86
      %p88 = scmp.ne.s32.totalorder %s77, %s78
      %p89 = scmp.eq.s32.totalorder %s43, 0
      %p90 = por %p88, %p89
      %p91 = scmp.ne.s32.totalorder %s77, %s78
      %p92 = scmp.eq.s32.totalorder %s44, 1
      %p93 = por %p91, %p92
      %p95 = scmp.ne.s32.totalorder %s78, %s94
      %p96 = scmp.eq.s32.totalorder %s44, 0
      %p97 = por %p95, %p96
      %s98 = ssub.s32 %s38, %s45
      %p99 = scmp.eq.s32.totalorder %s98, 0
      %s101 = sadd.s32 %s100, 1
      %s102 = scalar_select %p99, %s100, %s101
      %p105 = pneg %p99
      %p106 = scmp.eq.s32.totalorder %s38, 1
      %p107 = por %p105, %p106
      %p108 = scmp.ne.s32.totalorder %s100, %s103
      %p109 = scmp.eq.s32.totalorder %s38, 0
      %p110 = por %p108, %p109
      %p111 = scmp.ne.s32.totalorder %s100, %s103
      %p112 = scmp.eq.s32.totalorder %s43, 1
      %p113 = por %p111, %p112
      %p114 = scmp.ne.s32.totalorder %s103, %s104
      %p115 = scmp.eq.s32.totalorder %s43, 0
      %p116 = por %p114, %p115
      %p117 = scmp.ne.s32.totalorder %s103, %s104
      %p118 = scmp.eq.s32.totalorder %s44, 1
      %p119 = por %p117, %p118
      %p121 = scmp.ne.s32.totalorder %s104, %s120
      %p122 = scmp.eq.s32.totalorder %s44, 0
      %p123 = por %p121, %p122
      %s125 = sadd.s32 %s124, 1
      %p128 = scmp.eq.s32.totalorder %s38, 1
      %p129 = scmp.ne.s32.totalorder %s124, %s126
      %p130 = scmp.eq.s32.totalorder %s38, 0
      %p131 = por %p129, %p130
      %p132 = scmp.ne.s32.totalorder %s124, %s126
      %p133 = scmp.eq.s32.totalorder %s43, 1
      %p134 = por %p132, %p133
      %p135 = scmp.ne.s32.totalorder %s126, %s127
      %p136 = scmp.eq.s32.totalorder %s43, 0
      %p137 = por %p135, %p136
      %p138 = scmp.ne.s32.totalorder %s126, %s127
      %p139 = scmp.eq.s32.totalorder %s44, 1
      %p140 = por %p138, %p139
      %p142 = scmp.ne.s32.totalorder %s127, %s141
      %p143 = scmp.eq.s32.totalorder %s44, 0
      %p144 = por %p142, %p143
      %s146 = sadd.s32 %s145, 1
      %p149 = scmp.eq.s32.totalorder %s38, 1
      %p150 = scmp.ne.s32.totalorder %s145, %s147
      %p151 = scmp.eq.s32.totalorder %s38, 0
      %p152 = por %p150, %p151
      %p153 = scmp.ne.s32.totalorder %s145, %s147
      %p154 = scmp.eq.s32.totalorder %s43, 1
      %p155 = por %p153, %p154
      %p156 = scmp.ne.s32.totalorder %s147, %s148
      %p157 = scmp.eq.s32.totalorder %s43, 0
      %p158 = por %p156, %p157
      %p159 = scmp.ne.s32.totalorder %s147, %s148
      %p160 = scmp.eq.s32.totalorder %s44, 1
      %p161 = por %p159, %p160
      %p163 = scmp.ne.s32.totalorder %s148, %s162
      %p164 = scmp.eq.s32.totalorder %s44, 0
      %p165 = por %p163, %p164
      %s167 = sadd.s32 %s166, 1
      %p170 = scmp.eq.s32.totalorder %s38, 1
      %p171 = scmp.ne.s32.totalorder %s166, %s168
      %p172 = scmp.eq.s32.totalorder %s38, 0
      %p173 = por %p171, %p172
      %p174 = scmp.ne.s32.totalorder %s166, %s168
      %p175 = scmp.eq.s32.totalorder %s43, 1
      %p176 = por %p174, %p175
      %p177 = scmp.ne.s32.totalorder %s168, %s169
      %p178 = scmp.eq.s32.totalorder %s43, 0
      %p179 = por %p177, %p178
      %p180 = scmp.ne.s32.totalorder %s168, %s169
      %p181 = scmp.eq.s32.totalorder %s44, 1
      %p182 = por %p180, %p181
      %p184 = scmp.ne.s32.totalorder %s169, %s183
      %p185 = scmp.eq.s32.totalorder %s44, 0
      %p186 = por %p184, %p185
      %s188 = sadd.s32 %s187, 1
      %p191 = scmp.eq.s32.totalorder %s38, 1
      %p192 = scmp.ne.s32.totalorder %s187, %s189
      %p193 = scmp.eq.s32.totalorder %s38, 0
      %p194 = por %p192, %p193
      %p195 = scmp.ne.s32.totalorder %s187, %s189
      %p196 = scmp.eq.s32.totalorder %s43, 1
      %p197 = por %p195, %p196
      %p198 = scmp.ne.s32.totalorder %s189, %s190
      %p199 = scmp.eq.s32.totalorder %s43, 0
      %p200 = por %p198, %p199
      %p201 = scmp.ne.s32.totalorder %s189, %s190
      %p202 = scmp.eq.s32.totalorder %s44, 1
      %p203 = por %p201, %p202
      %p205 = scmp.ne.s32.totalorder %s190, %s204
      %p206 = scmp.eq.s32.totalorder %s44, 0
      %p207 = por %p205, %p206
      %s209 = sadd.s32 %s208, 1
      %p212 = scmp.eq.s32.totalorder %s38, 1
      %p213 = scmp.ne.s32.totalorder %s208, %s210
      %p214 = scmp.eq.s32.totalorder %s38, 0
      %p215 = por %p213, %p214
      %p216 = scmp.ne.s32.totalorder %s208, %s210
      %p217 = scmp.eq.s32.totalorder %s43, 1
      %p218 = por %p216, %p217
      %p219 = scmp.ne.s32.totalorder %s210, %s211
      %p220 = scmp.eq.s32.totalorder %s43, 0
      %p221 = por %p219, %p220
      %p222 = scmp.ne.s32.totalorder %s210, %s211
      %p223 = scmp.eq.s32.totalorder %s44, 1
      %p224 = por %p222, %p223
      %p226 = scmp.ne.s32.totalorder %s211, %s225
      %p227 = scmp.eq.s32.totalorder %s44, 0
      %p228 = por %p226, %p227
      %s230 = sadd.s32 %s229, 1
      %p233 = scmp.eq.s32.totalorder %s38, 1
      %p234 = scmp.ne.s32.totalorder %s229, %s231
      %p235 = scmp.eq.s32.totalorder %s38, 0
      %p236 = por %p234, %p235
      %p237 = scmp.ne.s32.totalorder %s229, %s231
      %p238 = scmp.eq.s32.totalorder %s43, 1
      %p239 = por %p237, %p238
      %p240 = scmp.ne.s32.totalorder %s231, %s232
      %p241 = scmp.eq.s32.totalorder %s43, 0
      %p242 = por %p240, %p241
      %p243 = scmp.ne.s32.totalorder %s231, %s232
      %p244 = scmp.eq.s32.totalorder %s44, 1
      %p245 = por %p243, %p244
      %p247 = scmp.ne.s32.totalorder %s232, %s246
      %p248 = scmp.eq.s32.totalorder %s44, 0
      %p249 = por %p247, %p248
      %s251 = sadd.s32 %s250, 1
      %p254 = scmp.eq.s32.totalorder %s38, 1
      %p255 = scmp.ne.s32.totalorder %s250, %s252
      %p256 = scmp.eq.s32.totalorder %s38, 0
      %p257 = por %p255, %p256
      %p258 = scmp.ne.s32.totalorder %s250, %s252
      %p259 = scmp.eq.s32.totalorder %s43, 1
      %p260 = por %p258, %p259
      %p261 = scmp.ne.s32.totalorder %s252, %s253
      %p262 = scmp.eq.s32.totalorder %s43, 0
      %p263 = por %p261, %p262
      %p264 = scmp.ne.s32.totalorder %s252, %s253
      %p265 = scmp.eq.s32.totalorder %s44, 1
      %p266 = por %p264, %p265
      %p268 = scmp.ne.s32.totalorder %s253, %s267
      %p269 = scmp.eq.s32.totalorder %s44, 0
      %p270 = por %p268, %p269
      %s272 = sadd.s32 %s271, 1
      %p275 = scmp.eq.s32.totalorder %s38, 1
      %p276 = scmp.ne.s32.totalorder %s271, %s273
      %p277 = scmp.eq.s32.totalorder %s38, 0
      %p278 = por %p276, %p277
      %p279 = scmp.ne.s32.totalorder %s271, %s273
      %p280 = scmp.eq.s32.totalorder %s43, 1
      %p281 = por %p279, %p280
      %p282 = scmp.ne.s32.totalorder %s273, %s274
      %p283 = scmp.eq.s32.totalorder %s43, 0
      %p284 = por %p282, %p283
      %p285 = scmp.ne.s32.totalorder %s273, %s274
      %p286 = scmp.eq.s32.totalorder %s44, 1
      %p287 = por %p285, %p286
      %p289 = scmp.ne.s32.totalorder %s274, %s288
      %p290 = scmp.eq.s32.totalorder %s44, 0
      %p291 = por %p289, %p290
      %s293 = sadd.s32 %s292, 1
      %p296 = scmp.eq.s32.totalorder %s38, 1
      %p297 = scmp.ne.s32.totalorder %s292, %s294
      %p298 = scmp.eq.s32.totalorder %s38, 0
      %p299 = por %p297, %p298
      %p300 = scmp.ne.s32.totalorder %s292, %s294
      %p301 = scmp.eq.s32.totalorder %s43, 1
      %p302 = por %p300, %p301
      %p303 = scmp.ne.s32.totalorder %s294, %s295
      %p304 = scmp.eq.s32.totalorder %s43, 0
      %p305 = por %p303, %p304
      %p306 = scmp.ne.s32.totalorder %s294, %s295
      %p307 = scmp.eq.s32.totalorder %s44, 1
      %p308 = por %p306, %p307
      %p310 = scmp.ne.s32.totalorder %s295, %s309
      %p311 = scmp.eq.s32.totalorder %s44, 0
      %p312 = por %p310, %p311
      %s314 = sadd.s32 %s313, 1
      %p317 = scmp.eq.s32.totalorder %s38, 1
      %p318 = scmp.ne.s32.totalorder %s313, %s315
      %p319 = scmp.eq.s32.totalorder %s38, 0
      %p320 = por %p318, %p319
      %p321 = scmp.ne.s32.totalorder %s313, %s315
      %p322 = scmp.eq.s32.totalorder %s43, 1
      %p323 = por %p321, %p322
      %p324 = scmp.ne.s32.totalorder %s315, %s316
      %p325 = scmp.eq.s32.totalorder %s43, 0
      %p326 = por %p324, %p325
      %p327 = scmp.ne.s32.totalorder %s315, %s316
      %p328 = scmp.eq.s32.totalorder %s44, 1
      %p329 = por %p327, %p328
      %p331 = scmp.ne.s32.totalorder %s316, %s330
      %p332 = scmp.eq.s32.totalorder %s44, 0
      %p333 = por %p331, %p332
      %s334 = ssub.s32 %s38, %s45
      %p335 = scmp.eq.s32.totalorder %s334, 0
      %s337 = sadd.s32 %s336, 1
      %s338 = scalar_select %p335, %s336, %s337
      %p341 = pneg %p335
      %p342 = scmp.eq.s32.totalorder %s38, 1
      %p343 = por %p341, %p342
      %p344 = scmp.ne.s32.totalorder %s336, %s339
      %p345 = scmp.eq.s32.totalorder %s38, 0
      %p346 = por %p344, %p345
      %p347 = scmp.ne.s32.totalorder %s336, %s339
      %p348 = scmp.eq.s32.totalorder %s43, 1
      %p349 = por %p347, %p348
      %p350 = scmp.ne.s32.totalorder %s339, %s340
      %p351 = scmp.eq.s32.totalorder %s43, 0
      %p352 = por %p350, %p351
      %p353 = scmp.ne.s32.totalorder %s339, %s340
      %p354 = scmp.eq.s32.totalorder %s44, 1
      %p355 = por %p353, %p354
      %p357 = scmp.ne.s32.totalorder %s340, %s356
      %p358 = scmp.eq.s32.totalorder %s44, 0
      %p359 = por %p357, %p358
      %s360 = ssub.s32 %s38, %s45
      %p361 = scmp.eq.s32.totalorder %s360, 0
      %s363 = sadd.s32 %s362, 1
      %s364 = scalar_select %p361, %s362, %s363
      %p367 = pneg %p361
      %p368 = scmp.eq.s32.totalorder %s38, 1
      %p369 = por %p367, %p368
      %p370 = scmp.ne.s32.totalorder %s362, %s365
      %p371 = scmp.eq.s32.totalorder %s38, 0
      %p372 = por %p370, %p371
      %p373 = scmp.ne.s32.totalorder %s362, %s365
      %p374 = scmp.eq.s32.totalorder %s43, 1
      %p375 = por %p373, %p374
      %p376 = scmp.ne.s32.totalorder %s365, %s366
      %p377 = scmp.eq.s32.totalorder %s43, 0
      %p378 = por %p376, %p377
      %p379 = scmp.ne.s32.totalorder %s365, %s366
      %p380 = scmp.eq.s32.totalorder %s44, 1
      %p381 = por %p379, %p380
      %p383 = scmp.ne.s32.totalorder %s366, %s382
      %p384 = scmp.eq.s32.totalorder %s44, 0
      %p385 = por %p383, %p384
      %p386 = scmp.le.s32.totalorder 1, %s38
      %p387 = scmp.lt.s32.totalorder %s38, 3
      %p388 = pnand %p386, %p387
      %p389 = pneg %p388
      // Predicated region
      $region9: #{tpu_custom_call.1} parent=5 // pred_check
        _
      $region10: #{tpu_custom_call.1} parent=5 // pred_check_branch
        %391 = sbr.rel (%p388) target = $region12
      $region11: #{tpu_custom_call.1} parent=5 // pred_region
        %s392 = ssub.s32 %s38, 1
        // Predicated region
        $region13: #{tpu_custom_call.1} parent=11 // pred_check
          %p393 = pneg %p137
        $region14: #{tpu_custom_call.1} parent=11 // pred_check_branch
          %395 = sbr.rel (%p393) target = $region16
        $region15: #{tpu_custom_call.1} parent=11 // pred_region
          %s397 = ssub.s32 16384, 16384
          %398 = vsyncadd [#allocation10], %s397
          %s399 = sshll.u32 [#allocation9], 4
          %s400 = int_to_ptr.vmem [resolvable:$true] %s399
          %405 = dma.hbm_to_vmem [thread:$0]  %s3, 16384, %s400, [#allocation10], 256, 256, 16
        $region16: #{tpu_custom_call.1} parent=11 // pred_fallthru
          _
        // Predicated region
        $region17: #{tpu_custom_call.1} parent=11 // pred_check
          %p406 = pneg %p158
        $region18: #{tpu_custom_call.1} parent=11 // pred_check_branch
          %408 = sbr.rel (%p406) target = $region20
        $region19: #{tpu_custom_call.1} parent=11 // pred_region
          %s410 = ssub.s32 64, 64
          %411 = vsyncadd [#allocation10], %s410
          %s413 = sshll.u32 [#allocation11], 4
          %s414 = int_to_ptr.vmem [resolvable:$true] %s413
          %416 = dma.hbm_to_vmem [thread:$0]  %s4, 64, %s414, [#allocation10]
        $region20: #{tpu_custom_call.1} parent=11 // pred_fallthru
          _
        // Predicated region
        $region21: #{tpu_custom_call.1} parent=11 // pred_check
          %p417 = pneg %p179
        $region22: #{tpu_custom_call.1} parent=11 // pred_check_branch
          %419 = sbr.rel (%p417) target = $region24
        $region23: #{tpu_custom_call.1} parent=11 // pred_region
          %s421 = ssub.s32 16384, 16384
          %422 = vsyncadd [#allocation13], %s421
          %s423 = sshll.u32 [#allocation12], 4
          %s424 = int_to_ptr.vmem [resolvable:$true] %s423
          %429 = dma.hbm_to_vmem [thread:$0]  %s5, 16384, %s424, [#allocation13], 256, 256, 16
        $region24: #{tpu_custom_call.1} parent=11 // pred_fallthru
          _
        // Predicated region
        $region25: #{tpu_custom_call.1} parent=11 // pred_check
          %p430 = pneg %p200
        $region26: #{tpu_custom_call.1} parent=11 // pred_check_branch
          %432 = sbr.rel (%p430) target = $region28
        $region27: #{tpu_custom_call.1} parent=11 // pred_region
          %s434 = ssub.s32 64, 64
          %435 = vsyncadd [#allocation13], %s434
          %s437 = sshll.u32 [#allocation14], 4
          %s438 = int_to_ptr.vmem [resolvable:$true] %s437
          %440 = dma.hbm_to_vmem [thread:$0]  %s6, 64, %s438, [#allocation13]
        $region28: #{tpu_custom_call.1} parent=11 // pred_fallthru
          _
        // Predicated region
        $region29: #{tpu_custom_call.1} parent=11 // pred_check
          %p441 = pneg %p221
        $region30: #{tpu_custom_call.1} parent=11 // pred_check_branch
          %443 = sbr.rel (%p441) target = $region32
        $region31: #{tpu_custom_call.1} parent=11 // pred_region
          %s445 = ssub.s32 16384, 16384
          %446 = vsyncadd [#allocation16], %s445
          %s447 = sshll.u32 [#allocation15], 4
          %s448 = int_to_ptr.vmem [resolvable:$true] %s447
          %453 = dma.hbm_to_vmem [thread:$0]  %s7, 16384, %s448, [#allocation16], 256, 256, 16
        $region32: #{tpu_custom_call.1} parent=11 // pred_fallthru
          _
        // Predicated region
        $region33: #{tpu_custom_call.1} parent=11 // pred_check
          %p454 = pneg %p242
        $region34: #{tpu_custom_call.1} parent=11 // pred_check_branch
          %456 = sbr.rel (%p454) target = $region36
        $region35: #{tpu_custom_call.1} parent=11 // pred_region
          %s458 = ssub.s32 64, 64
          %459 = vsyncadd [#allocation16], %s458
          %s461 = sshll.u32 [#allocation17], 4
          %s462 = int_to_ptr.vmem [resolvable:$true] %s461
          %464 = dma.hbm_to_vmem [thread:$0]  %s8, 64, %s462, [#allocation16]
        $region36: #{tpu_custom_call.1} parent=11 // pred_fallthru
          _
        // Predicated region
        $region37: #{tpu_custom_call.1} parent=11 // pred_check
          %p465 = pneg %p263
        $region38: #{tpu_custom_call.1} parent=11 // pred_check_branch
          %467 = sbr.rel (%p465) target = $region40
        $region39: #{tpu_custom_call.1} parent=11 // pred_region
          %s469 = ssub.s32 16384, 16384
          %470 = vsyncadd [#allocation19], %s469
          %s471 = sshll.u32 [#allocation18], 4
          %s472 = int_to_ptr.vmem [resolvable:$true] %s471
          %477 = dma.hbm_to_vmem [thread:$0]  %s9, 16384, %s472, [#allocation19], 256, 256, 16
        $region40: #{tpu_custom_call.1} parent=11 // pred_fallthru
          _
        // Predicated region
        $region41: #{tpu_custom_call.1} parent=11 // pred_check
          %p478 = pneg %p284
        $region42: #{tpu_custom_call.1} parent=11 // pred_check_branch
          %480 = sbr.rel (%p478) target = $region44
        $region43: #{tpu_custom_call.1} parent=11 // pred_region
          %s482 = ssub.s32 64, 64
          %483 = vsyncadd [#allocation19], %s482
          %s485 = sshll.u32 [#allocation20], 4
          %s486 = int_to_ptr.vmem [resolvable:$true] %s485
          %488 = dma.hbm_to_vmem [thread:$0]  %s10, 64, %s486, [#allocation19]
        $region44: #{tpu_custom_call.1} parent=11 // pred_fallthru
          _
        // Predicated region
        $region45: #{tpu_custom_call.1} parent=11 // pred_check
          %p489 = pneg %p305
        $region46: #{tpu_custom_call.1} parent=11 // pred_check_branch
          %491 = sbr.rel (%p489) target = $region48
        $region47: #{tpu_custom_call.1} parent=11 // pred_region
          %s493 = ssub.s32 64, 64
          %494 = vsyncadd [#allocation22], %s493
          %s496 = sshll.u32 [#allocation21], 4
          %s497 = int_to_ptr.vmem [resolvable:$true] %s496
          %499 = dma.hbm_to_vmem [thread:$0]  %s11, 64, %s497, [#allocation22]
        $region48: #{tpu_custom_call.1} parent=11 // pred_fallthru
          _
        // Predicated region
        $region49: #{tpu_custom_call.1} parent=11 // pred_check
          %p500 = pneg %p326
        $region50: #{tpu_custom_call.1} parent=11 // pred_check_branch
          %502 = sbr.rel (%p500) target = $region52
        $region51: #{tpu_custom_call.1} parent=11 // pred_region
          %s504 = ssub.s32 64, 64
          %505 = vsyncadd [#allocation22], %s504
          %s507 = sshll.u32 [#allocation23], 4
          %s508 = int_to_ptr.vmem [resolvable:$true] %s507
          %510 = dma.hbm_to_vmem [thread:$0]  %s12, 64, %s508, [#allocation22]
        $region52: #{tpu_custom_call.1} parent=11 // pred_fallthru
          _
      $region12: #{tpu_custom_call.1} parent=5 // pred_fallthru
        _
      %p511 = scmp.lt.s32.totalorder %s38, 2
      // Predicated region
      $region53: #{tpu_custom_call.1} parent=5 // pred_check
        %p512 = pneg %p511
      $region54: #{tpu_custom_call.1} parent=5 // pred_check_branch
        %514 = sbr.rel (%p512) target = $region56
      $region55: #{tpu_custom_call.1} parent=5 // pred_region
        // Predicated region
        $region57: #{tpu_custom_call.1} parent=55 // pred_check
          %p515 = pneg %p58
        $region58: #{tpu_custom_call.1} parent=55 // pred_check_branch
          %517 = sbr.rel (%p515) target = $region60
        $region59: #{tpu_custom_call.1} parent=55 // pred_region
          %s518 = sand.u32 %s48, 1
          %s519 = scalar_lea.sflag [#allocation4], %s518
          %s520 = sand.u32 %s48, 1
          %s521 = smul.addr %s520, 32
          %s522 = scalar_lea.vmem [#allocation3], %s521
          %s524 = ssub.s32 512, 512
          %525 = vsyncadd %s519, %s524
          %s526 = smul.addr %s38, 4
          %s527 = smul.addr %s526, 128
          %s528 = scalar_lea.hbm %s0, %s527
          %s530 = sshll.u32 %s522, 4
          %s531 = int_to_ptr.vmem [resolvable:$true] %s530
          %533 = dma.hbm_to_vmem [thread:$0]  %s528, 512, %s531, %s519
        $region60: #{tpu_custom_call.1} parent=55 // pred_fallthru
          _
        // Predicated region
        $region61: #{tpu_custom_call.1} parent=55 // pred_check
          %p534 = pneg %p84
        $region62: #{tpu_custom_call.1} parent=55 // pred_check_branch
          %536 = sbr.rel (%p534) target = $region64
        $region63: #{tpu_custom_call.1} parent=55 // pred_region
          %s537 = sand.u32 %s38, 1
          %s538 = scalar_lea.sflag [#allocation7], %s537
          %s539 = sand.u32 %s74, 1
          %s540 = smul.addr %s539, 32
          %s541 = scalar_lea.vmem [#allocation6], %s540
          %s543 = ssub.s32 512, 512
          %544 = vsyncadd %s538, %s543
          %s545 = smul.addr %s38, 4
          %s546 = smul.addr %s545, 128
          %s547 = scalar_lea.hbm %s1, %s546
          %s549 = sshll.u32 %s541, 4
          %s550 = int_to_ptr.vmem [resolvable:$true] %s549
          %552 = dma.hbm_to_vmem [thread:$0]  %s547, 512, %s550, %s538
        $region64: #{tpu_custom_call.1} parent=55 // pred_fallthru
          _
        // Predicated region
        $region65: #{tpu_custom_call.1} parent=55 // pred_check
          %p553 = pneg %p110
        $region66: #{tpu_custom_call.1} parent=55 // pred_check_branch
          %555 = sbr.rel (%p553) target = $region68
        $region67: #{tpu_custom_call.1} parent=55 // pred_region
          %s556 = sand.u32 %s38, 1
          %s557 = scalar_lea.sflag [#allocation7], %s556
          %s558 = sand.u32 %s100, 1
          %s559 = smul.addr %s558, 32
          %s560 = scalar_lea.vmem [#allocation8], %s559
          %s562 = ssub.s32 512, 512
          %563 = vsyncadd %s557, %s562
          %s564 = smul.addr %s38, 4
          %s565 = smul.addr %s564, 128
          %s566 = scalar_lea.hbm %s2, %s565
          %s568 = sshll.u32 %s560, 4
          %s569 = int_to_ptr.vmem [resolvable:$true] %s568
          %571 = dma.hbm_to_vmem [thread:$0]  %s566, 512, %s569, %s557
        $region68: #{tpu_custom_call.1} parent=55 // pred_fallthru
          _
      $region56: #{tpu_custom_call.1} parent=5 // pred_fallthru
        _
      %p572 = scmp.le.s32.totalorder 1, %s38
      %p573 = scmp.lt.s32.totalorder %s38, 3
      %p574 = pnand %p572, %p573
      %p575 = pneg %p574
      // Predicated region
      $region69: #{tpu_custom_call.1} parent=5 // pred_check
        _
      $region70: #{tpu_custom_call.1} parent=5 // pred_check_branch
        %577 = sbr.rel (%p574) target = $region72
      $region71: #{tpu_custom_call.1} parent=5 // pred_region
        %s578 = ssub.s32 %s38, 1
        %s579 = sand.u32 %s51, 1
        %s580 = scalar_lea.sflag [#allocation4], %s579
        %s581 = sand.u32 %s51, 1
        %s582 = smul.addr %s581, 32
        %s583 = scalar_lea.vmem [#allocation3], %s582
        // Predicated region
        $region73: #{tpu_custom_call.1} parent=71 // pred_check
          %p584 = pneg %p64
        $region74: #{tpu_custom_call.1} parent=71 // pred_check_branch
          %586 = sbr.rel (%p584) target = $region76
        $region75: #{tpu_custom_call.1} parent=71 // pred_region
          %587 = dma.done %s580, 512
        $region76: #{tpu_custom_call.1} parent=71 // pred_fallthru
          _
        %s588 = sand.u32 %s43, 1
        %s589 = scalar_lea.sflag [#allocation7], %s588
        %s590 = sand.u32 %s77, 1
        %s591 = smul.addr %s590, 32
        %s592 = scalar_lea.vmem [#allocation6], %s591
        // Predicated region
        $region77: #{tpu_custom_call.1} parent=71 // pred_check
          %p593 = pneg %p90
        $region78: #{tpu_custom_call.1} parent=71 // pred_check_branch
          %595 = sbr.rel (%p593) target = $region80
        $region79: #{tpu_custom_call.1} parent=71 // pred_region
          %596 = dma.done %s589, 512
        $region80: #{tpu_custom_call.1} parent=71 // pred_fallthru
          _
        %s597 = sand.u32 %s43, 1
        %s598 = scalar_lea.sflag [#allocation7], %s597
        %s599 = sand.u32 %s103, 1
        %s600 = smul.addr %s599, 32
        %s601 = scalar_lea.vmem [#allocation8], %s600
        // Predicated region
        $region81: #{tpu_custom_call.1} parent=71 // pred_check
          %p602 = pneg %p116
        $region82: #{tpu_custom_call.1} parent=71 // pred_check_branch
          %604 = sbr.rel (%p602) target = $region84
        $region83: #{tpu_custom_call.1} parent=71 // pred_region
          %605 = dma.done %s598, 512
        $region84: #{tpu_custom_call.1} parent=71 // pred_fallthru
          _
        // Predicated region
        $region85: #{tpu_custom_call.1} parent=71 // pred_check
          %p606 = pneg %p137
        $region86: #{tpu_custom_call.1} parent=71 // pred_check_branch
          %608 = sbr.rel (%p606) target = $region88
        $region87: #{tpu_custom_call.1} parent=71 // pred_region
          %609 = dma.done [#allocation10], 16384
        $region88: #{tpu_custom_call.1} parent=71 // pred_fallthru
          _
        // Predicated region
        $region89: #{tpu_custom_call.1} parent=71 // pred_check
          %p610 = pneg %p158
        $region90: #{tpu_custom_call.1} parent=71 // pred_check_branch
          %612 = sbr.rel (%p610) target = $region92
        $region91: #{tpu_custom_call.1} parent=71 // pred_region
          %613 = dma.done [#allocation10], 64
        $region92: #{tpu_custom_call.1} parent=71 // pred_fallthru
          _
        // Predicated region
        $region93: #{tpu_custom_call.1} parent=71 // pred_check
          %p614 = pneg %p179
        $region94: #{tpu_custom_call.1} parent=71 // pred_check_branch
          %616 = sbr.rel (%p614) target = $region96
        $region95: #{tpu_custom_call.1} parent=71 // pred_region
          %617 = dma.done [#allocation13], 16384
        $region96: #{tpu_custom_call.1} parent=71 // pred_fallthru
          _
        // Predicated region
        $region97: #{tpu_custom_call.1} parent=71 // pred_check
          %p618 = pneg %p200
        $region98: #{tpu_custom_call.1} parent=71 // pred_check_branch
          %620 = sbr.rel (%p618) target = $region100
        $region99: #{tpu_custom_call.1} parent=71 // pred_region
          %621 = dma.done [#allocation13], 64
        $region100: #{tpu_custom_call.1} parent=71 // pred_fallthru
          _
        // Predicated region
        $region101: #{tpu_custom_call.1} parent=71 // pred_check
          %p622 = pneg %p221
        $region102: #{tpu_custom_call.1} parent=71 // pred_check_branch
          %624 = sbr.rel (%p622) target = $region104
        $region103: #{tpu_custom_call.1} parent=71 // pred_region
          %625 = dma.done [#allocation16], 16384
        $region104: #{tpu_custom_call.1} parent=71 // pred_fallthru
          _
        // Predicated region
        $region105: #{tpu_custom_call.1} parent=71 // pred_check
          %p626 = pneg %p242
        $region106: #{tpu_custom_call.1} parent=71 // pred_check_branch
          %628 = sbr.rel (%p626) target = $region108
        $region107: #{tpu_custom_call.1} parent=71 // pred_region
          %629 = dma.done [#allocation16], 64
        $region108: #{tpu_custom_call.1} parent=71 // pred_fallthru
          _
        // Predicated region
        $region109: #{tpu_custom_call.1} parent=71 // pred_check
          %p630 = pneg %p263
        $region110: #{tpu_custom_call.1} parent=71 // pred_check_branch
          %632 = sbr.rel (%p630) target = $region112
        $region111: #{tpu_custom_call.1} parent=71 // pred_region
          %633 = dma.done [#allocation19], 16384
        $region112: #{tpu_custom_call.1} parent=71 // pred_fallthru
          _
        // Predicated region
        $region113: #{tpu_custom_call.1} parent=71 // pred_check
          %p634 = pneg %p284
        $region114: #{tpu_custom_call.1} parent=71 // pred_check_branch
          %636 = sbr.rel (%p634) target = $region116
        $region115: #{tpu_custom_call.1} parent=71 // pred_region
          %637 = dma.done [#allocation19], 64
        $region116: #{tpu_custom_call.1} parent=71 // pred_fallthru
          _
        // Predicated region
        $region117: #{tpu_custom_call.1} parent=71 // pred_check
          %p638 = pneg %p305
        $region118: #{tpu_custom_call.1} parent=71 // pred_check_branch
          %640 = sbr.rel (%p638) target = $region120
        $region119: #{tpu_custom_call.1} parent=71 // pred_region
          %641 = dma.done [#allocation22], 64
        $region120: #{tpu_custom_call.1} parent=71 // pred_fallthru
          _
        // Predicated region
        $region121: #{tpu_custom_call.1} parent=71 // pred_check
          %p642 = pneg %p326
        $region122: #{tpu_custom_call.1} parent=71 // pred_check_branch
          %644 = sbr.rel (%p642) target = $region124
        $region123: #{tpu_custom_call.1} parent=71 // pred_region
          %645 = dma.done [#allocation22], 64
        $region124: #{tpu_custom_call.1} parent=71 // pred_fallthru
          _
        %s646 = sand.u32 %s51, 1
        %s647 = scalar_lea.sflag [#allocation4], %s646
        %s648 = sand.u32 %s51, 1
        %s649 = smul.addr %s648, 32
        %s650 = scalar_lea.vmem [#allocation3], %s649
        %p651 = pneg %p64
        %p652 = pneg %p61
        %s653 = sand.u32 %s43, 1
        %s654 = scalar_lea.sflag [#allocation7], %s653
        %s655 = sand.u32 %s77, 1
        %s656 = smul.addr %s655, 32
        %s657 = scalar_lea.vmem [#allocation6], %s656
        %p658 = pneg %p90
        %p659 = pneg %p87
        %s660 = sand.u32 %s43, 1
        %s661 = scalar_lea.sflag [#allocation7], %s660
        %s662 = sand.u32 %s103, 1
        %s663 = smul.addr %s662, 32
        %s664 = scalar_lea.vmem [#allocation8], %s663
        %p665 = pneg %p116
        %p666 = pneg %p113
        %p667 = pneg %p137
        %p668 = pneg %p134
        %p669 = pneg %p158
        %p670 = pneg %p155
        %p671 = pneg %p179
        %p672 = pneg %p176
        %p673 = pneg %p200
        %p674 = pneg %p197
        %p675 = pneg %p221
        %p676 = pneg %p218
        %p677 = pneg %p242
        %p678 = pneg %p239
        %p679 = pneg %p263
        %p680 = pneg %p260
        %p681 = pneg %p284
        %p682 = pneg %p281
        %p683 = pneg %p305
        %p684 = pneg %p302
        %p685 = pneg %p326
        %p686 = pneg %p323
        %p687 = pneg %p352
        %p688 = pneg %p349
        %s689 = sand.u32 %s339, 1
        %s690 = scalar_lea.sflag [#allocation5], %s689
        %s691 = sand.u32 %s339, 1
        %s692 = smul.addr %s691, 32
        %s693 = scalar_lea.vmem [#allocation24], %s692
        %p694 = pneg %p378
        %p695 = pneg %p375
        %s696 = sand.u32 %s365, 1
        %s697 = scalar_lea.sflag [#allocation26], %s696
        %s698 = sand.u32 %s365, 1
        %s699 = smul.addr %s698, 64
        %s700 = scalar_lea.vmem [#allocation25], %s699
        %v702 = vld [vmem:[%s583] sm:$0xff]
        %v703 = vld [vmem:[%s583 + $0x8] sm:$0xff]
        %v704 = vld [vmem:[%s583 + $0x10] sm:$0xff]
        %v705 = vld [vmem:[%s583 + $0x18] sm:$0xff]
        %v706 = vpack.c.bf16 %v702, %v702
        %v707 = vpack.c.bf16 %v703, %v703
        %v708 = vpack.c.bf16 %v704, %v704
        %v709 = vpack.c.bf16 %v705, %v705
        %v710 = vld [vmem:[%s592] sm:$0xff]
        %v711 = vld [vmem:[%s592 + $0x8] sm:$0xff]
        %v712 = vld [vmem:[%s592 + $0x10] sm:$0xff]
        %v713 = vld [vmem:[%s592 + $0x18] sm:$0xff]
        %v714 = vpack.c.bf16 %v710, %v710
        %v715 = vpack.c.bf16 %v711, %v711
        %v716 = vpack.c.bf16 %v712, %v712
        %v717 = vpack.c.bf16 %v713, %v713
        %v718 = vld [vmem:[%s601] sm:$0xff]
        %v719 = vld [vmem:[%s601 + $0x8] sm:$0xff]
        %v720 = vld [vmem:[%s601 + $0x10] sm:$0xff]
        %v721 = vld [vmem:[%s601 + $0x18] sm:$0xff]
        %v722 = vpack.c.bf16 %v718, %v718
        %v723 = vpack.c.bf16 %v719, %v719
        %v724 = vpack.c.bf16 %v720, %v720
        %v725 = vpack.c.bf16 %v721, %v721
        %v726 = vld [vmem:[#allocation9] sm:$0xff]
        %v727 = vld [vmem:[#allocation9 + $0x8] sm:$0xff]
        %v728 = vld [vmem:[#allocation9 + $0x10] sm:$0xff]
        %v729 = vld [vmem:[#allocation9 + $0x18] sm:$0xff]
        %v730 = vld [vmem:[#allocation9 + $0x20] sm:$0xff]
        %v731 = vld [vmem:[#allocation9 + $0x28] sm:$0xff]
        %v732 = vld [vmem:[#allocation9 + $0x30] sm:$0xff]
        %v733 = vld [vmem:[#allocation9 + $0x38] sm:$0xff]
        %v734 = vld [vmem:[#allocation9 + $0x40] sm:$0xff]
        %v735 = vld [vmem:[#allocation9 + $0x48] sm:$0xff]
        %v736 = vld [vmem:[#allocation9 + $0x50] sm:$0xff]
        %v737 = vld [vmem:[#allocation9 + $0x58] sm:$0xff]
        %v738 = vld [vmem:[#allocation9 + $0x60] sm:$0xff]
        %v739 = vld [vmem:[#allocation9 + $0x68] sm:$0xff]
        %v740 = vld [vmem:[#allocation9 + $0x70] sm:$0xff]
        %v741 = vld [vmem:[#allocation9 + $0x78] sm:$0xff]
        %v742 = vld [vmem:[#allocation9 + $0x80] sm:$0xff]
        %v743 = vld [vmem:[#allocation9 + $0x88] sm:$0xff]
        %v744 = vld [vmem:[#allocation9 + $0x90] sm:$0xff]
        %v745 = vld [vmem:[#allocation9 + $0x98] sm:$0xff]
        %v746 = vld [vmem:[#allocation9 + $0xa0] sm:$0xff]
        %v747 = vld [vmem:[#allocation9 + $0xa8] sm:$0xff]
        %v748 = vld [vmem:[#allocation9 + $0xb0] sm:$0xff]
        %v749 = vld [vmem:[#allocation9 + $0xb8] sm:$0xff]
        %v750 = vld [vmem:[#allocation9 + $0xc0] sm:$0xff]
        %v751 = vld [vmem:[#allocation9 + $0xc8] sm:$0xff]
        %v752 = vld [vmem:[#allocation9 + $0xd0] sm:$0xff]
        %v753 = vld [vmem:[#allocation9 + $0xd8] sm:$0xff]
        %v754 = vld [vmem:[#allocation9 + $0xe0] sm:$0xff]
        %v755 = vld [vmem:[#allocation9 + $0xe8] sm:$0xff]
        %v756 = vld [vmem:[#allocation9 + $0xf0] sm:$0xff]
        %v757 = vld [vmem:[#allocation9 + $0xf8] sm:$0xff]
        %v758 = vld [vmem:[#allocation9 + $0x100] sm:$0xff]
        %v759 = vld [vmem:[#allocation9 + $0x108] sm:$0xff]
        %v760 = vld [vmem:[#allocation9 + $0x110] sm:$0xff]
        %v761 = vld [vmem:[#allocation9 + $0x118] sm:$0xff]
        %v762 = vld [vmem:[#allocation9 + $0x120] sm:$0xff]
        %v763 = vld [vmem:[#allocation9 + $0x128] sm:$0xff]
        %v764 = vld [vmem:[#allocation9 + $0x130] sm:$0xff]
        %v765 = vld [vmem:[#allocation9 + $0x138] sm:$0xff]
        %v766 = vld [vmem:[#allocation9 + $0x140] sm:$0xff]
        %v767 = vld [vmem:[#allocation9 + $0x148] sm:$0xff]
        %v768 = vld [vmem:[#allocation9 + $0x150] sm:$0xff]
        %v769 = vld [vmem:[#allocation9 + $0x158] sm:$0xff]
        %v770 = vld [vmem:[#allocation9 + $0x160] sm:$0xff]
        %v771 = vld [vmem:[#allocation9 + $0x168] sm:$0xff]
        %v772 = vld [vmem:[#allocation9 + $0x170] sm:$0xff]
        %v773 = vld [vmem:[#allocation9 + $0x178] sm:$0xff]
        %v774 = vld [vmem:[#allocation9 + $0x180] sm:$0xff]
        %v775 = vld [vmem:[#allocation9 + $0x188] sm:$0xff]
        %v776 = vld [vmem:[#allocation9 + $0x190] sm:$0xff]
        %v777 = vld [vmem:[#allocation9 + $0x198] sm:$0xff]
        %v778 = vld [vmem:[#allocation9 + $0x1a0] sm:$0xff]
        %v779 = vld [vmem:[#allocation9 + $0x1a8] sm:$0xff]
        %v780 = vld [vmem:[#allocation9 + $0x1b0] sm:$0xff]
        %v781 = vld [vmem:[#allocation9 + $0x1b8] sm:$0xff]
        %v782 = vld [vmem:[#allocation9 + $0x1c0] sm:$0xff]
        %v783 = vld [vmem:[#allocation9 + $0x1c8] sm:$0xff]
        %v784 = vld [vmem:[#allocation9 + $0x1d0] sm:$0xff]
        %v785 = vld [vmem:[#allocation9 + $0x1d8] sm:$0xff]
        %v786 = vld [vmem:[#allocation9 + $0x1e0] sm:$0xff]
        %v787 = vld [vmem:[#allocation9 + $0x1e8] sm:$0xff]
        %v788 = vld [vmem:[#allocation9 + $0x1f0] sm:$0xff]
        %v789 = vld [vmem:[#allocation9 + $0x1f8] sm:$0xff]
        %v790 = vld [vmem:[#allocation9 + $0x200] sm:$0xff]
        %v791 = vld [vmem:[#allocation9 + $0x208] sm:$0xff]
        %v792 = vld [vmem:[#allocation9 + $0x210] sm:$0xff]
        %v793 = vld [vmem:[#allocation9 + $0x218] sm:$0xff]
        %v794 = vld [vmem:[#allocation9 + $0x220] sm:$0xff]
        %v795 = vld [vmem:[#allocation9 + $0x228] sm:$0xff]
        %v796 = vld [vmem:[#allocation9 + $0x230] sm:$0xff]
        %v797 = vld [vmem:[#allocation9 + $0x238] sm:$0xff]
        %v798 = vld [vmem:[#allocation9 + $0x240] sm:$0xff]
        %v799 = vld [vmem:[#allocation9 + $0x248] sm:$0xff]
        %v800 = vld [vmem:[#allocation9 + $0x250] sm:$0xff]
        %v801 = vld [vmem:[#allocation9 + $0x258] sm:$0xff]
        %v802 = vld [vmem:[#allocation9 + $0x260] sm:$0xff]
        %v803 = vld [vmem:[#allocation9 + $0x268] sm:$0xff]
        %v804 = vld [vmem:[#allocation9 + $0x270] sm:$0xff]
        %v805 = vld [vmem:[#allocation9 + $0x278] sm:$0xff]
        %v806 = vld [vmem:[#allocation9 + $0x280] sm:$0xff]
        %v807 = vld [vmem:[#allocation9 + $0x288] sm:$0xff]
        %v808 = vld [vmem:[#allocation9 + $0x290] sm:$0xff]
        %v809 = vld [vmem:[#allocation9 + $0x298] sm:$0xff]
        %v810 = vld [vmem:[#allocation9 + $0x2a0] sm:$0xff]
        %v811 = vld [vmem:[#allocation9 + $0x2a8] sm:$0xff]
        %v812 = vld [vmem:[#allocation9 + $0x2b0] sm:$0xff]
        %v813 = vld [vmem:[#allocation9 + $0x2b8] sm:$0xff]
        %v814 = vld [vmem:[#allocation9 + $0x2c0] sm:$0xff]
        %v815 = vld [vmem:[#allocation9 + $0x2c8] sm:$0xff]
        %v816 = vld [vmem:[#allocation9 + $0x2d0] sm:$0xff]
        %v817 = vld [vmem:[#allocation9 + $0x2d8] sm:$0xff]
        %v818 = vld [vmem:[#allocation9 + $0x2e0] sm:$0xff]
        %v819 = vld [vmem:[#allocation9 + $0x2e8] sm:$0xff]
        %v820 = vld [vmem:[#allocation9 + $0x2f0] sm:$0xff]
        %v821 = vld [vmem:[#allocation9 + $0x2f8] sm:$0xff]
        %v822 = vld [vmem:[#allocation9 + $0x300] sm:$0xff]
        %v823 = vld [vmem:[#allocation9 + $0x308] sm:$0xff]
        %v824 = vld [vmem:[#allocation9 + $0x310] sm:$0xff]
        %v825 = vld [vmem:[#allocation9 + $0x318] sm:$0xff]
        %v826 = vld [vmem:[#allocation9 + $0x320] sm:$0xff]
        %v827 = vld [vmem:[#allocation9 + $0x328] sm:$0xff]
        %v828 = vld [vmem:[#allocation9 + $0x330] sm:$0xff]
        %v829 = vld [vmem:[#allocation9 + $0x338] sm:$0xff]
        %v830 = vld [vmem:[#allocation9 + $0x340] sm:$0xff]
        %v831 = vld [vmem:[#allocation9 + $0x348] sm:$0xff]
        %v832 = vld [vmem:[#allocation9 + $0x350] sm:$0xff]
        %v833 = vld [vmem:[#allocation9 + $0x358] sm:$0xff]
        %v834 = vld [vmem:[#allocation9 + $0x360] sm:$0xff]
        %v835 = vld [vmem:[#allocation9 + $0x368] sm:$0xff]
        %v836 = vld [vmem:[#allocation9 + $0x370] sm:$0xff]
        %v837 = vld [vmem:[#allocation9 + $0x378] sm:$0xff]
        %v838 = vld [vmem:[#allocation9 + $0x380] sm:$0xff]
        %v839 = vld [vmem:[#allocation9 + $0x388] sm:$0xff]
        %v840 = vld [vmem:[#allocation9 + $0x390] sm:$0xff]
        %v841 = vld [vmem:[#allocation9 + $0x398] sm:$0xff]
        %v842 = vld [vmem:[#allocation9 + $0x3a0] sm:$0xff]
        %v843 = vld [vmem:[#allocation9 + $0x3a8] sm:$0xff]
        %v844 = vld [vmem:[#allocation9 + $0x3b0] sm:$0xff]
        %v845 = vld [vmem:[#allocation9 + $0x3b8] sm:$0xff]
        %v846 = vld [vmem:[#allocation9 + $0x3c0] sm:$0xff]
        %v847 = vld [vmem:[#allocation9 + $0x3c8] sm:$0xff]
        %v848 = vld [vmem:[#allocation9 + $0x3d0] sm:$0xff]
        %v849 = vld [vmem:[#allocation9 + $0x3d8] sm:$0xff]
        %v850 = vld [vmem:[#allocation9 + $0x3e0] sm:$0xff]
        %v851 = vld [vmem:[#allocation9 + $0x3e8] sm:$0xff]
        %v852 = vld [vmem:[#allocation9 + $0x3f0] sm:$0xff]
        %v853 = vld [vmem:[#allocation9 + $0x3f8] sm:$0xff]
        %v854 = vld [vmem:[#allocation11] sm:$0xf]
        %v856 = vlaneseq
        %v857 = vshrl.u32 %v856, 7
        %v858 = vsub.s32 0, %v857
        %v859 = vrot.slane %v854, %v858
        %v860 = vlaneseq
        %v861 = vshrl.u32 %v860, 7
        %v862 = vsub.s32 1, %v861
        %v863 = vrot.slane %v854, %v862
        %v864 = vlaneseq
        %v865 = vshrl.u32 %v864, 7
        %v866 = vsub.s32 2, %v865
        %v867 = vrot.slane %v854, %v866
        %v868 = vlaneseq
        %v869 = vshrl.u32 %v868, 7
        %v870 = vsub.s32 3, %v869
        %v871 = vrot.slane %v854, %v870
        %v1004 = vunpack.c.l.b16 %v726
        %v1005 = vunpack.c.h.b16 %v726
        %v1006 = vunpack.c.l.b16 %v727
        %v1007 = vunpack.c.h.b16 %v727
        %v1008 = vunpack.c.l.b16 %v728
        %v1009 = vunpack.c.h.b16 %v728
        %v1010 = vunpack.c.l.b16 %v729
        %v1011 = vunpack.c.h.b16 %v729
        %v1012 = vunpack.c.l.b16 %v730
        %v1013 = vunpack.c.h.b16 %v730
        %v1014 = vunpack.c.l.b16 %v731
        %v1015 = vunpack.c.h.b16 %v731
        %v1016 = vunpack.c.l.b16 %v732
        %v1017 = vunpack.c.h.b16 %v732
        %v1018 = vunpack.c.l.b16 %v733
        %v1019 = vunpack.c.h.b16 %v733
        %v1020 = vunpack.c.l.b16 %v734
        %v1021 = vunpack.c.h.b16 %v734
        %v1022 = vunpack.c.l.b16 %v735
        %v1023 = vunpack.c.h.b16 %v735
        %v1024 = vunpack.c.l.b16 %v736
        %v1025 = vunpack.c.h.b16 %v736
        %v1026 = vunpack.c.l.b16 %v737
        %v1027 = vunpack.c.h.b16 %v737
        %v1028 = vunpack.c.l.b16 %v738
        %v1029 = vunpack.c.h.b16 %v738
        %v1030 = vunpack.c.l.b16 %v739
        %v1031 = vunpack.c.h.b16 %v739
        %v1032 = vunpack.c.l.b16 %v740
        %v1033 = vunpack.c.h.b16 %v740
        %v1034 = vunpack.c.l.b16 %v741
        %v1035 = vunpack.c.h.b16 %v741
        %v1036 = vunpack.c.l.b16 %v742
        %v1037 = vunpack.c.h.b16 %v742
        %v1038 = vunpack.c.l.b16 %v743
        %v1039 = vunpack.c.h.b16 %v743
        %v1040 = vunpack.c.l.b16 %v744
        %v1041 = vunpack.c.h.b16 %v744
        %v1042 = vunpack.c.l.b16 %v745
        %v1043 = vunpack.c.h.b16 %v745
        %v1044 = vunpack.c.l.b16 %v746
        %v1045 = vunpack.c.h.b16 %v746
        %v1046 = vunpack.c.l.b16 %v747
        %v1047 = vunpack.c.h.b16 %v747
        %v1048 = vunpack.c.l.b16 %v748
        %v1049 = vunpack.c.h.b16 %v748
        %v1050 = vunpack.c.l.b16 %v749
        %v1051 = vunpack.c.h.b16 %v749
        %v1052 = vunpack.c.l.b16 %v750
        %v1053 = vunpack.c.h.b16 %v750
        %v1054 = vunpack.c.l.b16 %v751
        %v1055 = vunpack.c.h.b16 %v751
        %v1056 = vunpack.c.l.b16 %v752
        %v1057 = vunpack.c.h.b16 %v752
        %v1058 = vunpack.c.l.b16 %v753
        %v1059 = vunpack.c.h.b16 %v753
        %v1060 = vunpack.c.l.b16 %v754
        %v1061 = vunpack.c.h.b16 %v754
        %v1062 = vunpack.c.l.b16 %v755
        %v1063 = vunpack.c.h.b16 %v755
        %v1064 = vunpack.c.l.b16 %v756
        %v1065 = vunpack.c.h.b16 %v756
        %v1066 = vunpack.c.l.b16 %v757
        %v1067 = vunpack.c.h.b16 %v757
        %v1068 = vunpack.c.l.b16 %v758
        %v1069 = vunpack.c.h.b16 %v758
        %v1070 = vunpack.c.l.b16 %v759
        %v1071 = vunpack.c.h.b16 %v759
        %v1072 = vunpack.c.l.b16 %v760
        %v1073 = vunpack.c.h.b16 %v760
        %v1074 = vunpack.c.l.b16 %v761
        %v1075 = vunpack.c.h.b16 %v761
        %v1076 = vunpack.c.l.b16 %v762
        %v1077 = vunpack.c.h.b16 %v762
        %v1078 = vunpack.c.l.b16 %v763
        %v1079 = vunpack.c.h.b16 %v763
        %v1080 = vunpack.c.l.b16 %v764
        %v1081 = vunpack.c.h.b16 %v764
        %v1082 = vunpack.c.l.b16 %v765
        %v1083 = vunpack.c.h.b16 %v765
        %v1084 = vunpack.c.l.b16 %v766
        %v1085 = vunpack.c.h.b16 %v766
        %v1086 = vunpack.c.l.b16 %v767
        %v1087 = vunpack.c.h.b16 %v767
        %v1088 = vunpack.c.l.b16 %v768
        %v1089 = vunpack.c.h.b16 %v768
        %v1090 = vunpack.c.l.b16 %v769
        %v1091 = vunpack.c.h.b16 %v769
        %v1092 = vunpack.c.l.b16 %v770
        %v1093 = vunpack.c.h.b16 %v770
        %v1094 = vunpack.c.l.b16 %v771
        %v1095 = vunpack.c.h.b16 %v771
        %v1096 = vunpack.c.l.b16 %v772
        %v1097 = vunpack.c.h.b16 %v772
        %v1098 = vunpack.c.l.b16 %v773
        %v1099 = vunpack.c.h.b16 %v773
        %v1100 = vunpack.c.l.b16 %v774
        %v1101 = vunpack.c.h.b16 %v774
        %v1102 = vunpack.c.l.b16 %v775
        %v1103 = vunpack.c.h.b16 %v775
        %v1104 = vunpack.c.l.b16 %v776
        %v1105 = vunpack.c.h.b16 %v776
        %v1106 = vunpack.c.l.b16 %v777
        %v1107 = vunpack.c.h.b16 %v777
        %v1108 = vunpack.c.l.b16 %v778
        %v1109 = vunpack.c.h.b16 %v778
        %v1110 = vunpack.c.l.b16 %v779
        %v1111 = vunpack.c.h.b16 %v779
        %v1112 = vunpack.c.l.b16 %v780
        %v1113 = vunpack.c.h.b16 %v780
        %v1114 = vunpack.c.l.b16 %v781
        %v1115 = vunpack.c.h.b16 %v781
        %v1116 = vunpack.c.l.b16 %v782
        %v1117 = vunpack.c.h.b16 %v782
        %v1118 = vunpack.c.l.b16 %v783
        %v1119 = vunpack.c.h.b16 %v783
        %v1120 = vunpack.c.l.b16 %v784
        %v1121 = vunpack.c.h.b16 %v784
        %v1122 = vunpack.c.l.b16 %v785
        %v1123 = vunpack.c.h.b16 %v785
        %v1124 = vunpack.c.l.b16 %v786
        %v1125 = vunpack.c.h.b16 %v786
        %v1126 = vunpack.c.l.b16 %v787
        %v1127 = vunpack.c.h.b16 %v787
        %v1128 = vunpack.c.l.b16 %v788
        %v1129 = vunpack.c.h.b16 %v788
        %v1130 = vunpack.c.l.b16 %v789
        %v1131 = vunpack.c.h.b16 %v789
        %v1132 = vunpack.c.l.b16 %v790
        %v1133 = vunpack.c.h.b16 %v790
        %v1134 = vunpack.c.l.b16 %v791
        %v1135 = vunpack.c.h.b16 %v791
        %v1136 = vunpack.c.l.b16 %v792
        %v1137 = vunpack.c.h.b16 %v792
        %v1138 = vunpack.c.l.b16 %v793
        %v1139 = vunpack.c.h.b16 %v793
        %v1140 = vunpack.c.l.b16 %v794
        %v1141 = vunpack.c.h.b16 %v794
        %v1142 = vunpack.c.l.b16 %v795
        %v1143 = vunpack.c.h.b16 %v795
        %v1144 = vunpack.c.l.b16 %v796
        %v1145 = vunpack.c.h.b16 %v796
        %v1146 = vunpack.c.l.b16 %v797
        %v1147 = vunpack.c.h.b16 %v797
        %v1148 = vunpack.c.l.b16 %v798
        %v1149 = vunpack.c.h.b16 %v798
        %v1150 = vunpack.c.l.b16 %v799
        %v1151 = vunpack.c.h.b16 %v799
        %v1152 = vunpack.c.l.b16 %v800
        %v1153 = vunpack.c.h.b16 %v800
        %v1154 = vunpack.c.l.b16 %v801
        %v1155 = vunpack.c.h.b16 %v801
        %v1156 = vunpack.c.l.b16 %v802
        %v1157 = vunpack.c.h.b16 %v802
        %v1158 = vunpack.c.l.b16 %v803
        %v1159 = vunpack.c.h.b16 %v803
        %v1160 = vunpack.c.l.b16 %v804
        %v1161 = vunpack.c.h.b16 %v804
        %v1162 = vunpack.c.l.b16 %v805
        %v1163 = vunpack.c.h.b16 %v805
        %v1164 = vunpack.c.l.b16 %v806
        %v1165 = vunpack.c.h.b16 %v806
        %v1166 = vunpack.c.l.b16 %v807
        %v1167 = vunpack.c.h.b16 %v807
        %v1168 = vunpack.c.l.b16 %v808
        %v1169 = vunpack.c.h.b16 %v808
        %v1170 = vunpack.c.l.b16 %v809
        %v1171 = vunpack.c.h.b16 %v809
        %v1172 = vunpack.c.l.b16 %v810
        %v1173 = vunpack.c.h.b16 %v810
        %v1174 = vunpack.c.l.b16 %v811
        %v1175 = vunpack.c.h.b16 %v811
        %v1176 = vunpack.c.l.b16 %v812
        %v1177 = vunpack.c.h.b16 %v812
        %v1178 = vunpack.c.l.b16 %v813
        %v1179 = vunpack.c.h.b16 %v813
        %v1180 = vunpack.c.l.b16 %v814
        %v1181 = vunpack.c.h.b16 %v814
        %v1182 = vunpack.c.l.b16 %v815
        %v1183 = vunpack.c.h.b16 %v815
        %v1184 = vunpack.c.l.b16 %v816
        %v1185 = vunpack.c.h.b16 %v816
        %v1186 = vunpack.c.l.b16 %v817
        %v1187 = vunpack.c.h.b16 %v817
        %v1188 = vunpack.c.l.b16 %v818
        %v1189 = vunpack.c.h.b16 %v818
        %v1190 = vunpack.c.l.b16 %v819
        %v1191 = vunpack.c.h.b16 %v819
        %v1192 = vunpack.c.l.b16 %v820
        %v1193 = vunpack.c.h.b16 %v820
        %v1194 = vunpack.c.l.b16 %v821
        %v1195 = vunpack.c.h.b16 %v821
        %v1196 = vunpack.c.l.b16 %v822
        %v1197 = vunpack.c.h.b16 %v822
        %v1198 = vunpack.c.l.b16 %v823
        %v1199 = vunpack.c.h.b16 %v823
        %v1200 = vunpack.c.l.b16 %v824
        %v1201 = vunpack.c.h.b16 %v824
        %v1202 = vunpack.c.l.b16 %v825
        %v1203 = vunpack.c.h.b16 %v825
        %v1204 = vunpack.c.l.b16 %v826
        %v1205 = vunpack.c.h.b16 %v826
        %v1206 = vunpack.c.l.b16 %v827
        %v1207 = vunpack.c.h.b16 %v827
        %v1208 = vunpack.c.l.b16 %v828
        %v1209 = vunpack.c.h.b16 %v828
        %v1210 = vunpack.c.l.b16 %v829
        %v1211 = vunpack.c.h.b16 %v829
        %v1212 = vunpack.c.l.b16 %v830
        %v1213 = vunpack.c.h.b16 %v830
        %v1214 = vunpack.c.l.b16 %v831
        %v1215 = vunpack.c.h.b16 %v831
        %v1216 = vunpack.c.l.b16 %v832
        %v1217 = vunpack.c.h.b16 %v832
        %v1218 = vunpack.c.l.b16 %v833
        %v1219 = vunpack.c.h.b16 %v833
        %v1220 = vunpack.c.l.b16 %v834
        %v1221 = vunpack.c.h.b16 %v834
        %v1222 = vunpack.c.l.b16 %v835
        %v1223 = vunpack.c.h.b16 %v835
        %v1224 = vunpack.c.l.b16 %v836
        %v1225 = vunpack.c.h.b16 %v836
        %v1226 = vunpack.c.l.b16 %v837
        %v1227 = vunpack.c.h.b16 %v837
        %v1228 = vunpack.c.l.b16 %v838
        %v1229 = vunpack.c.h.b16 %v838
        %v1230 = vunpack.c.l.b16 %v839
        %v1231 = vunpack.c.h.b16 %v839
        %v1232 = vunpack.c.l.b16 %v840
        %v1233 = vunpack.c.h.b16 %v840
        %v1234 = vunpack.c.l.b16 %v841
        %v1235 = vunpack.c.h.b16 %v841
        %v1236 = vunpack.c.l.b16 %v842
        %v1237 = vunpack.c.h.b16 %v842
        %v1238 = vunpack.c.l.b16 %v843
        %v1239 = vunpack.c.h.b16 %v843
        %v1240 = vunpack.c.l.b16 %v844
        %v1241 = vunpack.c.h.b16 %v844
        %v1242 = vunpack.c.l.b16 %v845
        %v1243 = vunpack.c.h.b16 %v845
        %v1244 = vunpack.c.l.b16 %v846
        %v1245 = vunpack.c.h.b16 %v846
        %v1246 = vunpack.c.l.b16 %v847
        %v1247 = vunpack.c.h.b16 %v847
        %v1248 = vunpack.c.l.b16 %v848
        %v1249 = vunpack.c.h.b16 %v848
        %v1250 = vunpack.c.l.b16 %v849
        %v1251 = vunpack.c.h.b16 %v849
        %v1252 = vunpack.c.l.b16 %v850
        %v1253 = vunpack.c.h.b16 %v850
        %v1254 = vunpack.c.l.b16 %v851
        %v1255 = vunpack.c.h.b16 %v851
        %v1256 = vunpack.c.l.b16 %v852
        %v1257 = vunpack.c.h.b16 %v852
        %v1258 = vunpack.c.l.b16 %v853
        %v1259 = vunpack.c.h.b16 %v853
        %v1260 = vpack.c.b16 %v1008, %v1004
        %v1261 = vpack.c.b16 %v1009, %v1005
        %v1262 = vpack.c.b16 %v1010, %v1006
        %v1263 = vpack.c.b16 %v1011, %v1007
        %v1264 = vpack.c.b16 %v1016, %v1012
        %v1265 = vpack.c.b16 %v1017, %v1013
        %v1266 = vpack.c.b16 %v1018, %v1014
        %v1267 = vpack.c.b16 %v1019, %v1015
        %v1268 = vpack.c.b16 %v1024, %v1020
        %v1269 = vpack.c.b16 %v1025, %v1021
        %v1270 = vpack.c.b16 %v1026, %v1022
        %v1271 = vpack.c.b16 %v1027, %v1023
        %v1272 = vpack.c.b16 %v1032, %v1028
        %v1273 = vpack.c.b16 %v1033, %v1029
        %v1274 = vpack.c.b16 %v1034, %v1030
        %v1275 = vpack.c.b16 %v1035, %v1031
        %v1276 = vpack.c.b16 %v1040, %v1036
        %v1277 = vpack.c.b16 %v1041, %v1037
        %v1278 = vpack.c.b16 %v1042, %v1038
        %v1279 = vpack.c.b16 %v1043, %v1039
        %v1280 = vpack.c.b16 %v1048, %v1044
        %v1281 = vpack.c.b16 %v1049, %v1045
        %v1282 = vpack.c.b16 %v1050, %v1046
        %v1283 = vpack.c.b16 %v1051, %v1047
        %v1284 = vpack.c.b16 %v1056, %v1052
        %v1285 = vpack.c.b16 %v1057, %v1053
        %v1286 = vpack.c.b16 %v1058, %v1054
        %v1287 = vpack.c.b16 %v1059, %v1055
        %v1288 = vpack.c.b16 %v1064, %v1060
        %v1289 = vpack.c.b16 %v1065, %v1061
        %v1290 = vpack.c.b16 %v1066, %v1062
        %v1291 = vpack.c.b16 %v1067, %v1063
        %v1292 = vpack.c.b16 %v1072, %v1068
        %v1293 = vpack.c.b16 %v1073, %v1069
        %v1294 = vpack.c.b16 %v1074, %v1070
        %v1295 = vpack.c.b16 %v1075, %v1071
        %v1296 = vpack.c.b16 %v1080, %v1076
        %v1297 = vpack.c.b16 %v1081, %v1077
        %v1298 = vpack.c.b16 %v1082, %v1078
        %v1299 = vpack.c.b16 %v1083, %v1079
        %v1300 = vpack.c.b16 %v1088, %v1084
        %v1301 = vpack.c.b16 %v1089, %v1085
        %v1302 = vpack.c.b16 %v1090, %v1086
        %v1303 = vpack.c.b16 %v1091, %v1087
        %v1304 = vpack.c.b16 %v1096, %v1092
        %v1305 = vpack.c.b16 %v1097, %v1093
        %v1306 = vpack.c.b16 %v1098, %v1094
        %v1307 = vpack.c.b16 %v1099, %v1095
        %v1308 = vpack.c.b16 %v1104, %v1100
        %v1309 = vpack.c.b16 %v1105, %v1101
        %v1310 = vpack.c.b16 %v1106, %v1102
        %v1311 = vpack.c.b16 %v1107, %v1103
        %v1312 = vpack.c.b16 %v1112, %v1108
        %v1313 = vpack.c.b16 %v1113, %v1109
        %v1314 = vpack.c.b16 %v1114, %v1110
        %v1315 = vpack.c.b16 %v1115, %v1111
        %v1316 = vpack.c.b16 %v1120, %v1116
        %v1317 = vpack.c.b16 %v1121, %v1117
        %v1318 = vpack.c.b16 %v1122, %v1118
        %v1319 = vpack.c.b16 %v1123, %v1119
        %v1320 = vpack.c.b16 %v1128, %v1124
        %v1321 = vpack.c.b16 %v1129, %v1125
        %v1322 = vpack.c.b16 %v1130, %v1126
        %v1323 = vpack.c.b16 %v1131, %v1127
        %v1324 = vpack.c.b16 %v1136, %v1132
        %v1325 = vpack.c.b16 %v1137, %v1133
        %v1326 = vpack.c.b16 %v1138, %v1134
        %v1327 = vpack.c.b16 %v1139, %v1135
        %v1328 = vpack.c.b16 %v1144, %v1140
        %v1329 = vpack.c.b16 %v1145, %v1141
        %v1330 = vpack.c.b16 %v1146, %v1142
        %v1331 = vpack.c.b16 %v1147, %v1143
        %v1332 = vpack.c.b16 %v1152, %v1148
        %v1333 = vpack.c.b16 %v1153, %v1149
        %v1334 = vpack.c.b16 %v1154, %v1150
        %v1335 = vpack.c.b16 %v1155, %v1151
        %v1336 = vpack.c.b16 %v1160, %v1156
        %v1337 = vpack.c.b16 %v1161, %v1157
        %v1338 = vpack.c.b16 %v1162, %v1158
        %v1339 = vpack.c.b16 %v1163, %v1159
        %v1340 = vpack.c.b16 %v1168, %v1164
        %v1341 = vpack.c.b16 %v1169, %v1165
        %v1342 = vpack.c.b16 %v1170, %v1166
        %v1343 = vpack.c.b16 %v1171, %v1167
        %v1344 = vpack.c.b16 %v1176, %v1172
        %v1345 = vpack.c.b16 %v1177, %v1173
        %v1346 = vpack.c.b16 %v1178, %v1174
        %v1347 = vpack.c.b16 %v1179, %v1175
        %v1348 = vpack.c.b16 %v1184, %v1180
        %v1349 = vpack.c.b16 %v1185, %v1181
        %v1350 = vpack.c.b16 %v1186, %v1182
        %v1351 = vpack.c.b16 %v1187, %v1183
        %v1352 = vpack.c.b16 %v1192, %v1188
        %v1353 = vpack.c.b16 %v1193, %v1189
        %v1354 = vpack.c.b16 %v1194, %v1190
        %v1355 = vpack.c.b16 %v1195, %v1191
        %v1356 = vpack.c.b16 %v1200, %v1196
        %v1357 = vpack.c.b16 %v1201, %v1197
        %v1358 = vpack.c.b16 %v1202, %v1198
        %v1359 = vpack.c.b16 %v1203, %v1199
        %v1360 = vpack.c.b16 %v1208, %v1204
        %v1361 = vpack.c.b16 %v1209, %v1205
        %v1362 = vpack.c.b16 %v1210, %v1206
        %v1363 = vpack.c.b16 %v1211, %v1207
        %v1364 = vpack.c.b16 %v1216, %v1212
        %v1365 = vpack.c.b16 %v1217, %v1213
        %v1366 = vpack.c.b16 %v1218, %v1214
        %v1367 = vpack.c.b16 %v1219, %v1215
        %v1368 = vpack.c.b16 %v1224, %v1220
        %v1369 = vpack.c.b16 %v1225, %v1221
        %v1370 = vpack.c.b16 %v1226, %v1222
        %v1371 = vpack.c.b16 %v1227, %v1223
        %v1372 = vpack.c.b16 %v1232, %v1228
        %v1373 = vpack.c.b16 %v1233, %v1229
        %v1374 = vpack.c.b16 %v1234, %v1230
        %v1375 = vpack.c.b16 %v1235, %v1231
        %v1376 = vpack.c.b16 %v1240, %v1236
        %v1377 = vpack.c.b16 %v1241, %v1237
        %v1378 = vpack.c.b16 %v1242, %v1238
        %v1379 = vpack.c.b16 %v1243, %v1239
        %v1380 = vpack.c.b16 %v1248, %v1244
        %v1381 = vpack.c.b16 %v1249, %v1245
        %v1382 = vpack.c.b16 %v1250, %v1246
        %v1383 = vpack.c.b16 %v1251, %v1247
        %v1384 = vpack.c.b16 %v1256, %v1252
        %v1385 = vpack.c.b16 %v1257, %v1253
        %v1386 = vpack.c.b16 %v1258, %v1254
        %v1387 = vpack.c.b16 %v1259, %v1255
        %1516 = vmatprep.subr.bf16.mxu0 %v1261
        %1517 = vmatpush1.bf16.msra.mxu0 %v1260
        %1518 = vmatprep.subr.bf16.mxu0 %v1265
        %1519 = vmatpush1.bf16.msra.mxu0 %v1264
        %1520 = vmatprep.subr.bf16.mxu0 %v1269
        %1521 = vmatpush1.bf16.msra.mxu0 %v1268
        %1522 = vmatprep.subr.bf16.mxu0 %v1273
        %1523 = vmatpush1.bf16.msra.mxu0 %v1272
        %1524 = vmatprep.subr.bf16.mxu0 %v1277
        %1525 = vmatpush1.bf16.msra.mxu0 %v1276
        %1526 = vmatprep.subr.bf16.mxu0 %v1281
        %1527 = vmatpush1.bf16.msra.mxu0 %v1280
        %1528 = vmatprep.subr.bf16.mxu0 %v1285
        %1529 = vmatpush1.bf16.msra.mxu0 %v1284
        %1530 = vmatprep.subr.bf16.mxu0 %v1289
        %1531 = vmatpush1.bf16.msra.mxu0 %v1288
        %1532 = vmatprep.subr.bf16.mxu0 %v1293
        %1533 = vmatpush1.bf16.msra.mxu0 %v1292
        %1534 = vmatprep.subr.bf16.mxu0 %v1297
        %1535 = vmatpush1.bf16.msra.mxu0 %v1296
        %1536 = vmatprep.subr.bf16.mxu0 %v1301
        %1537 = vmatpush1.bf16.msra.mxu0 %v1300
        %1538 = vmatprep.subr.bf16.mxu0 %v1305
        %1539 = vmatpush1.bf16.msra.mxu0 %v1304
        %1540 = vmatprep.subr.bf16.mxu0 %v1309
        %1541 = vmatpush1.bf16.msra.mxu0 %v1308
        %1542 = vmatprep.subr.bf16.mxu0 %v1313
        %1543 = vmatpush1.bf16.msra.mxu0 %v1312
        %1544 = vmatprep.subr.bf16.mxu0 %v1317
        %1545 = vmatpush1.bf16.msra.mxu0 %v1316
        %1546 = vmatprep.subr.bf16.mxu0 %v1321
        %1547 = vmatpush1.bf16.msra.mxu0 %v1320
        %1548 = vmatprep.mubr.bf16.mxu0 %v707
        %1549 = vmatmul.mubr.bf16.gmra.mrb[0].mxu0 %v706
        %v1550 = vpop.f32.mrb[0].mxu0
        %v1551 = vadd.f32 %v859, %v1550
        %v1552 = vpop.f32.mrb[0].mxu0
        %v1553 = vadd.f32 %v863, %v1552
        %v1554 = vpop.f32.mrb[0].mxu0
        %v1555 = vpop.f32.mrb[0].mxu0
        %1556 = vdwg.mxu0
        %1557 = vmatprep.subr.bf16.mxu0 %v1325
        %1558 = vmatpush1.bf16.msra.mxu0 %v1324
        %1559 = vmatprep.subr.bf16.mxu0 %v1329
        %1560 = vmatpush1.bf16.msra.mxu0 %v1328
        %1561 = vmatprep.subr.bf16.mxu0 %v1333
        %1562 = vmatpush1.bf16.msra.mxu0 %v1332
        %1563 = vmatprep.subr.bf16.mxu0 %v1337
        %1564 = vmatpush1.bf16.msra.mxu0 %v1336
        %1565 = vmatprep.subr.bf16.mxu0 %v1341
        %1566 = vmatpush1.bf16.msra.mxu0 %v1340
        %1567 = vmatprep.subr.bf16.mxu0 %v1345
        %1568 = vmatpush1.bf16.msra.mxu0 %v1344
        %1569 = vmatprep.subr.bf16.mxu0 %v1349
        %1570 = vmatpush1.bf16.msra.mxu0 %v1348
        %1571 = vmatprep.subr.bf16.mxu0 %v1353
        %1572 = vmatpush1.bf16.msra.mxu0 %v1352
        %1573 = vmatprep.subr.bf16.mxu0 %v1357
        %1574 = vmatpush1.bf16.msra.mxu0 %v1356
        %1575 = vmatprep.subr.bf16.mxu0 %v1361
        %1576 = vmatpush1.bf16.msra.mxu0 %v1360
        %1577 = vmatprep.subr.bf16.mxu0 %v1365
        %1578 = vmatpush1.bf16.msra.mxu0 %v1364
        %1579 = vmatprep.subr.bf16.mxu0 %v1369
        %1580 = vmatpush1.bf16.msra.mxu0 %v1368
        %1581 = vmatprep.subr.bf16.mxu0 %v1373
        %1582 = vmatpush1.bf16.msra.mxu0 %v1372
        %1583 = vmatprep.subr.bf16.mxu0 %v1377
        %1584 = vmatpush1.bf16.msra.mxu0 %v1376
        %1585 = vmatprep.subr.bf16.mxu0 %v1381
        %1586 = vmatpush1.bf16.msra.mxu0 %v1380
        %1587 = vmatprep.subr.bf16.mxu0 %v1385
        %1588 = vmatpush1.bf16.msra.mxu0 %v1384
        %1589 = vmatprep.mubr.bf16.mxu0 %v709
        %1590 = vmatmul.mubr.bf16.gmra.mrb[0].mxu0 %v708
        %v1591 = vpop.f32.mrb[0].mxu0
        %v1592 = vadd.f32 %v1551, %v1591
        %v1593 = vpop.f32.mrb[0].mxu0
        %v1594 = vadd.f32 %v1553, %v1593
        %v1595 = vpop.f32.mrb[0].mxu0
        %v1596 = vpop.f32.mrb[0].mxu0
        %1597 = vdwg.mxu0
        %1598 = vmatprep.subr.bf16.mxu0 %v1263
        %1599 = vmatpush1.bf16.msra.mxu0 %v1262
        %1600 = vmatprep.subr.bf16.mxu0 %v1267
        %1601 = vmatpush1.bf16.msra.mxu0 %v1266
        %1602 = vmatprep.subr.bf16.mxu0 %v1271
        %1603 = vmatpush1.bf16.msra.mxu0 %v1270
        %1604 = vmatprep.subr.bf16.mxu0 %v1275
        %1605 = vmatpush1.bf16.msra.mxu0 %v1274
        %1606 = vmatprep.subr.bf16.mxu0 %v1279
        %1607 = vmatpush1.bf16.msra.mxu0 %v1278
        %1608 = vmatprep.subr.bf16.mxu0 %v1283
        %1609 = vmatpush1.bf16.msra.mxu0 %v1282
        %1610 = vmatprep.subr.bf16.mxu0 %v1287
        %1611 = vmatpush1.bf16.msra.mxu0 %v1286
        %1612 = vmatprep.subr.bf16.mxu0 %v1291
        %1613 = vmatpush1.bf16.msra.mxu0 %v1290
        %1614 = vmatprep.subr.bf16.mxu0 %v1295
        %1615 = vmatpush1.bf16.msra.mxu0 %v1294
        %1616 = vmatprep.subr.bf16.mxu0 %v1299
        %1617 = vmatpush1.bf16.msra.mxu0 %v1298
        %1618 = vmatprep.subr.bf16.mxu0 %v1303
        %1619 = vmatpush1.bf16.msra.mxu0 %v1302
        %1620 = vmatprep.subr.bf16.mxu0 %v1307
        %1621 = vmatpush1.bf16.msra.mxu0 %v1306
        %1622 = vmatprep.subr.bf16.mxu0 %v1311
        %1623 = vmatpush1.bf16.msra.mxu0 %v1310
        %1624 = vmatprep.subr.bf16.mxu0 %v1315
        %1625 = vmatpush1.bf16.msra.mxu0 %v1314
        %1626 = vmatprep.subr.bf16.mxu0 %v1319
        %1627 = vmatpush1.bf16.msra.mxu0 %v1318
        %1628 = vmatprep.subr.bf16.mxu0 %v1323
        %1629 = vmatpush1.bf16.msra.mxu0 %v1322
        %1630 = vmatprep.mubr.bf16.mxu0 %v707
        %1631 = vmatmul.mubr.bf16.gmra.mrb[0].mxu0 %v706
        %v1632 = vpop.f32.mrb[0].mxu0
        %v1633 = vadd.f32 %v867, %v1632
        %v1634 = vpop.f32.mrb[0].mxu0
        %v1635 = vadd.f32 %v871, %v1634
        %v1636 = vpop.f32.mrb[0].mxu0
        %v1637 = vpop.f32.mrb[0].mxu0
        %1638 = vdwg.mxu0
        %1639 = vmatprep.subr.bf16.mxu0 %v1327
        %1640 = vmatpush1.bf16.msra.mxu0 %v1326
        %1641 = vmatprep.subr.bf16.mxu0 %v1331
        %1642 = vmatpush1.bf16.msra.mxu0 %v1330
        %1643 = vmatprep.subr.bf16.mxu0 %v1335
        %1644 = vmatpush1.bf16.msra.mxu0 %v1334
        %1645 = vmatprep.subr.bf16.mxu0 %v1339
        %1646 = vmatpush1.bf16.msra.mxu0 %v1338
        %1647 = vmatprep.subr.bf16.mxu0 %v1343
        %1648 = vmatpush1.bf16.msra.mxu0 %v1342
        %1649 = vmatprep.subr.bf16.mxu0 %v1347
        %1650 = vmatpush1.bf16.msra.mxu0 %v1346
        %1651 = vmatprep.subr.bf16.mxu0 %v1351
        %1652 = vmatpush1.bf16.msra.mxu0 %v1350
        %1653 = vmatprep.subr.bf16.mxu0 %v1355
        %1654 = vmatpush1.bf16.msra.mxu0 %v1354
        %1655 = vmatprep.subr.bf16.mxu0 %v1359
        %1656 = vmatpush1.bf16.msra.mxu0 %v1358
        %1657 = vmatprep.subr.bf16.mxu0 %v1363
        %1658 = vmatpush1.bf16.msra.mxu0 %v1362
        %1659 = vmatprep.subr.bf16.mxu0 %v1367
        %1660 = vmatpush1.bf16.msra.mxu0 %v1366
        %1661 = vmatprep.subr.bf16.mxu0 %v1371
        %1662 = vmatpush1.bf16.msra.mxu0 %v1370
        %1663 = vmatprep.subr.bf16.mxu0 %v1375
        %1664 = vmatpush1.bf16.msra.mxu0 %v1374
        %1665 = vmatprep.subr.bf16.mxu0 %v1379
        %1666 = vmatpush1.bf16.msra.mxu0 %v1378
        %1667 = vmatprep.subr.bf16.mxu0 %v1383
        %1668 = vmatpush1.bf16.msra.mxu0 %v1382
        %1669 = vmatprep.subr.bf16.mxu0 %v1387
        %1670 = vmatpush1.bf16.msra.mxu0 %v1386
        %1671 = vmatprep.mubr.bf16.mxu0 %v709
        %1672 = vmatmul.mubr.bf16.gmra.mrb[0].mxu0 %v708
        %v1673 = vpop.f32.mrb[0].mxu0
        %v1674 = vadd.f32 %v1633, %v1673
        %v1675 = vpop.f32.mrb[0].mxu0
        %v1676 = vadd.f32 %v1635, %v1675
        %v1677 = vpop.f32.mrb[0].mxu0
        %v1678 = vpop.f32.mrb[0].mxu0
        %1679 = vdwg.mxu0
        %v1680 = vpack.c.bf16 %v1592, %v1592
        %v1681 = vpack.c.bf16 %v1594, %v1594
        %v1682 = vpack.c.bf16 %v1674, %v1674
        %v1683 = vpack.c.bf16 %v1676, %v1676
        %v1684 = vld [vmem:[#allocation12] sm:$0xff]
        %v1685 = vld [vmem:[#allocation12 + $0x8] sm:$0xff]
        %v1686 = vld [vmem:[#allocation12 + $0x10] sm:$0xff]
        %v1687 = vld [vmem:[#allocation12 + $0x18] sm:$0xff]
        %v1688 = vld [vmem:[#allocation12 + $0x20] sm:$0xff]
        %v1689 = vld [vmem:[#allocation12 + $0x28] sm:$0xff]
        %v1690 = vld [vmem:[#allocation12 + $0x30] sm:$0xff]
        %v1691 = vld [vmem:[#allocation12 + $0x38] sm:$0xff]
        %v1692 = vld [vmem:[#allocation12 + $0x40] sm:$0xff]
        %v1693 = vld [vmem:[#allocation12 + $0x48] sm:$0xff]
        %v1694 = vld [vmem:[#allocation12 + $0x50] sm:$0xff]
        %v1695 = vld [vmem:[#allocation12 + $0x58] sm:$0xff]
        %v1696 = vld [vmem:[#allocation12 + $0x60] sm:$0xff]
        %v1697 = vld [vmem:[#allocation12 + $0x68] sm:$0xff]
        %v1698 = vld [vmem:[#allocation12 + $0x70] sm:$0xff]
        %v1699 = vld [vmem:[#allocation12 + $0x78] sm:$0xff]
        %v1700 = vld [vmem:[#allocation12 + $0x80] sm:$0xff]
        %v1701 = vld [vmem:[#allocation12 + $0x88] sm:$0xff]
        %v1702 = vld [vmem:[#allocation12 + $0x90] sm:$0xff]
        %v1703 = vld [vmem:[#allocation12 + $0x98] sm:$0xff]
        %v1704 = vld [vmem:[#allocation12 + $0xa0] sm:$0xff]
        %v1705 = vld [vmem:[#allocation12 + $0xa8] sm:$0xff]
        %v1706 = vld [vmem:[#allocation12 + $0xb0] sm:$0xff]
        %v1707 = vld [vmem:[#allocation12 + $0xb8] sm:$0xff]
        %v1708 = vld [vmem:[#allocation12 + $0xc0] sm:$0xff]
        %v1709 = vld [vmem:[#allocation12 + $0xc8] sm:$0xff]
        %v1710 = vld [vmem:[#allocation12 + $0xd0] sm:$0xff]
        %v1711 = vld [vmem:[#allocation12 + $0xd8] sm:$0xff]
        %v1712 = vld [vmem:[#allocation12 + $0xe0] sm:$0xff]
        %v1713 = vld [vmem:[#allocation12 + $0xe8] sm:$0xff]
        %v1714 = vld [vmem:[#allocation12 + $0xf0] sm:$0xff]
        %v1715 = vld [vmem:[#allocation12 + $0xf8] sm:$0xff]
        %v1716 = vld [vmem:[#allocation12 + $0x100] sm:$0xff]
        %v1717 = vld [vmem:[#allocation12 + $0x108] sm:$0xff]
        %v1718 = vld [vmem:[#allocation12 + $0x110] sm:$0xff]
        %v1719 = vld [vmem:[#allocation12 + $0x118] sm:$0xff]
        %v1720 = vld [vmem:[#allocation12 + $0x120] sm:$0xff]
        %v1721 = vld [vmem:[#allocation12 + $0x128] sm:$0xff]
        %v1722 = vld [vmem:[#allocation12 + $0x130] sm:$0xff]
        %v1723 = vld [vmem:[#allocation12 + $0x138] sm:$0xff]
        %v1724 = vld [vmem:[#allocation12 + $0x140] sm:$0xff]
        %v1725 = vld [vmem:[#allocation12 + $0x148] sm:$0xff]
        %v1726 = vld [vmem:[#allocation12 + $0x150] sm:$0xff]
        %v1727 = vld [vmem:[#allocation12 + $0x158] sm:$0xff]
        %v1728 = vld [vmem:[#allocation12 + $0x160] sm:$0xff]
        %v1729 = vld [vmem:[#allocation12 + $0x168] sm:$0xff]
        %v1730 = vld [vmem:[#allocation12 + $0x170] sm:$0xff]
        %v1731 = vld [vmem:[#allocation12 + $0x178] sm:$0xff]
        %v1732 = vld [vmem:[#allocation12 + $0x180] sm:$0xff]
        %v1733 = vld [vmem:[#allocation12 + $0x188] sm:$0xff]
        %v1734 = vld [vmem:[#allocation12 + $0x190] sm:$0xff]
        %v1735 = vld [vmem:[#allocation12 + $0x198] sm:$0xff]
        %v1736 = vld [vmem:[#allocation12 + $0x1a0] sm:$0xff]
        %v1737 = vld [vmem:[#allocation12 + $0x1a8] sm:$0xff]
        %v1738 = vld [vmem:[#allocation12 + $0x1b0] sm:$0xff]
        %v1739 = vld [vmem:[#allocation12 + $0x1b8] sm:$0xff]
        %v1740 = vld [vmem:[#allocation12 + $0x1c0] sm:$0xff]
        %v1741 = vld [vmem:[#allocation12 + $0x1c8] sm:$0xff]
        %v1742 = vld [vmem:[#allocation12 + $0x1d0] sm:$0xff]
        %v1743 = vld [vmem:[#allocation12 + $0x1d8] sm:$0xff]
        %v1744 = vld [vmem:[#allocation12 + $0x1e0] sm:$0xff]
        %v1745 = vld [vmem:[#allocation12 + $0x1e8] sm:$0xff]
        %v1746 = vld [vmem:[#allocation12 + $0x1f0] sm:$0xff]
        %v1747 = vld [vmem:[#allocation12 + $0x1f8] sm:$0xff]
        %v1748 = vld [vmem:[#allocation12 + $0x200] sm:$0xff]
        %v1749 = vld [vmem:[#allocation12 + $0x208] sm:$0xff]
        %v1750 = vld [vmem:[#allocation12 + $0x210] sm:$0xff]
        %v1751 = vld [vmem:[#allocation12 + $0x218] sm:$0xff]
        %v1752 = vld [vmem:[#allocation12 + $0x220] sm:$0xff]
        %v1753 = vld [vmem:[#allocation12 + $0x228] sm:$0xff]
        %v1754 = vld [vmem:[#allocation12 + $0x230] sm:$0xff]
        %v1755 = vld [vmem:[#allocation12 + $0x238] sm:$0xff]
        %v1756 = vld [vmem:[#allocation12 + $0x240] sm:$0xff]
        %v1757 = vld [vmem:[#allocation12 + $0x248] sm:$0xff]
        %v1758 = vld [vmem:[#allocation12 + $0x250] sm:$0xff]
        %v1759 = vld [vmem:[#allocation12 + $0x258] sm:$0xff]
        %v1760 = vld [vmem:[#allocation12 + $0x260] sm:$0xff]
        %v1761 = vld [vmem:[#allocation12 + $0x268] sm:$0xff]
        %v1762 = vld [vmem:[#allocation12 + $0x270] sm:$0xff]
        %v1763 = vld [vmem:[#allocation12 + $0x278] sm:$0xff]
        %v1764 = vld [vmem:[#allocation12 + $0x280] sm:$0xff]
        %v1765 = vld [vmem:[#allocation12 + $0x288] sm:$0xff]
        %v1766 = vld [vmem:[#allocation12 + $0x290] sm:$0xff]
        %v1767 = vld [vmem:[#allocation12 + $0x298] sm:$0xff]
        %v1768 = vld [vmem:[#allocation12 + $0x2a0] sm:$0xff]
        %v1769 = vld [vmem:[#allocation12 + $0x2a8] sm:$0xff]
        %v1770 = vld [vmem:[#allocation12 + $0x2b0] sm:$0xff]
        %v1771 = vld [vmem:[#allocation12 + $0x2b8] sm:$0xff]
        %v1772 = vld [vmem:[#allocation12 + $0x2c0] sm:$0xff]
        %v1773 = vld [vmem:[#allocation12 + $0x2c8] sm:$0xff]
        %v1774 = vld [vmem:[#allocation12 + $0x2d0] sm:$0xff]
        %v1775 = vld [vmem:[#allocation12 + $0x2d8] sm:$0xff]
        %v1776 = vld [vmem:[#allocation12 + $0x2e0] sm:$0xff]
        %v1777 = vld [vmem:[#allocation12 + $0x2e8] sm:$0xff]
        %v1778 = vld [vmem:[#allocation12 + $0x2f0] sm:$0xff]
        %v1779 = vld [vmem:[#allocation12 + $0x2f8] sm:$0xff]
        %v1780 = vld [vmem:[#allocation12 + $0x300] sm:$0xff]
        %v1781 = vld [vmem:[#allocation12 + $0x308] sm:$0xff]
        %v1782 = vld [vmem:[#allocation12 + $0x310] sm:$0xff]
        %v1783 = vld [vmem:[#allocation12 + $0x318] sm:$0xff]
        %v1784 = vld [vmem:[#allocation12 + $0x320] sm:$0xff]
        %v1785 = vld [vmem:[#allocation12 + $0x328] sm:$0xff]
        %v1786 = vld [vmem:[#allocation12 + $0x330] sm:$0xff]
        %v1787 = vld [vmem:[#allocation12 + $0x338] sm:$0xff]
        %v1788 = vld [vmem:[#allocation12 + $0x340] sm:$0xff]
        %v1789 = vld [vmem:[#allocation12 + $0x348] sm:$0xff]
        %v1790 = vld [vmem:[#allocation12 + $0x350] sm:$0xff]
        %v1791 = vld [vmem:[#allocation12 + $0x358] sm:$0xff]
        %v1792 = vld [vmem:[#allocation12 + $0x360] sm:$0xff]
        %v1793 = vld [vmem:[#allocation12 + $0x368] sm:$0xff]
        %v1794 = vld [vmem:[#allocation12 + $0x370] sm:$0xff]
        %v1795 = vld [vmem:[#allocation12 + $0x378] sm:$0xff]
        %v1796 = vld [vmem:[#allocation12 + $0x380] sm:$0xff]
        %v1797 = vld [vmem:[#allocation12 + $0x388] sm:$0xff]
        %v1798 = vld [vmem:[#allocation12 + $0x390] sm:$0xff]
        %v1799 = vld [vmem:[#allocation12 + $0x398] sm:$0xff]
        %v1800 = vld [vmem:[#allocation12 + $0x3a0] sm:$0xff]
        %v1801 = vld [vmem:[#allocation12 + $0x3a8] sm:$0xff]
        %v1802 = vld [vmem:[#allocation12 + $0x3b0] sm:$0xff]
        %v1803 = vld [vmem:[#allocation12 + $0x3b8] sm:$0xff]
        %v1804 = vld [vmem:[#allocation12 + $0x3c0] sm:$0xff]
        %v1805 = vld [vmem:[#allocation12 + $0x3c8] sm:$0xff]
        %v1806 = vld [vmem:[#allocation12 + $0x3d0] sm:$0xff]
        %v1807 = vld [vmem:[#allocation12 + $0x3d8] sm:$0xff]
        %v1808 = vld [vmem:[#allocation12 + $0x3e0] sm:$0xff]
        %v1809 = vld [vmem:[#allocation12 + $0x3e8] sm:$0xff]
        %v1810 = vld [vmem:[#allocation12 + $0x3f0] sm:$0xff]
        %v1811 = vld [vmem:[#allocation12 + $0x3f8] sm:$0xff]
        %v1812 = vld [vmem:[#allocation14] sm:$0xf]
        %v1814 = vlaneseq
        %v1815 = vshrl.u32 %v1814, 7
        %v1816 = vsub.s32 0, %v1815
        %v1817 = vrot.slane %v1812, %v1816
        %v1818 = vlaneseq
        %v1819 = vshrl.u32 %v1818, 7
        %v1820 = vsub.s32 1, %v1819
        %v1821 = vrot.slane %v1812, %v1820
        %v1822 = vlaneseq
        %v1823 = vshrl.u32 %v1822, 7
        %v1824 = vsub.s32 2, %v1823
        %v1825 = vrot.slane %v1812, %v1824
        %v1826 = vlaneseq
        %v1827 = vshrl.u32 %v1826, 7
        %v1828 = vsub.s32 3, %v1827
        %v1829 = vrot.slane %v1812, %v1828
        %v1962 = vunpack.c.l.b16 %v1684
        %v1963 = vunpack.c.h.b16 %v1684
        %v1964 = vunpack.c.l.b16 %v1685
        %v1965 = vunpack.c.h.b16 %v1685
        %v1966 = vunpack.c.l.b16 %v1686
        %v1967 = vunpack.c.h.b16 %v1686
        %v1968 = vunpack.c.l.b16 %v1687
        %v1969 = vunpack.c.h.b16 %v1687
        %v1970 = vunpack.c.l.b16 %v1688
        %v1971 = vunpack.c.h.b16 %v1688
        %v1972 = vunpack.c.l.b16 %v1689
        %v1973 = vunpack.c.h.b16 %v1689
        %v1974 = vunpack.c.l.b16 %v1690
        %v1975 = vunpack.c.h.b16 %v1690
        %v1976 = vunpack.c.l.b16 %v1691
        %v1977 = vunpack.c.h.b16 %v1691
        %v1978 = vunpack.c.l.b16 %v1692
        %v1979 = vunpack.c.h.b16 %v1692
        %v1980 = vunpack.c.l.b16 %v1693
        %v1981 = vunpack.c.h.b16 %v1693
        %v1982 = vunpack.c.l.b16 %v1694
        %v1983 = vunpack.c.h.b16 %v1694
        %v1984 = vunpack.c.l.b16 %v1695
        %v1985 = vunpack.c.h.b16 %v1695
        %v1986 = vunpack.c.l.b16 %v1696
        %v1987 = vunpack.c.h.b16 %v1696
        %v1988 = vunpack.c.l.b16 %v1697
        %v1989 = vunpack.c.h.b16 %v1697
        %v1990 = vunpack.c.l.b16 %v1698
        %v1991 = vunpack.c.h.b16 %v1698
        %v1992 = vunpack.c.l.b16 %v1699
        %v1993 = vunpack.c.h.b16 %v1699
        %v1994 = vunpack.c.l.b16 %v1700
        %v1995 = vunpack.c.h.b16 %v1700
        %v1996 = vunpack.c.l.b16 %v1701
        %v1997 = vunpack.c.h.b16 %v1701
        %v1998 = vunpack.c.l.b16 %v1702
        %v1999 = vunpack.c.h.b16 %v1702
        %v2000 = vunpack.c.l.b16 %v1703
        %v2001 = vunpack.c.h.b16 %v1703
        %v2002 = vunpack.c.l.b16 %v1704
        %v2003 = vunpack.c.h.b16 %v1704
        %v2004 = vunpack.c.l.b16 %v1705
        %v2005 = vunpack.c.h.b16 %v1705
        %v2006 = vunpack.c.l.b16 %v1706
        %v2007 = vunpack.c.h.b16 %v1706
        %v2008 = vunpack.c.l.b16 %v1707
        %v2009 = vunpack.c.h.b16 %v1707
        %v2010 = vunpack.c.l.b16 %v1708
        %v2011 = vunpack.c.h.b16 %v1708
        %v2012 = vunpack.c.l.b16 %v1709
        %v2013 = vunpack.c.h.b16 %v1709
        %v2014 = vunpack.c.l.b16 %v1710
        %v2015 = vunpack.c.h.b16 %v1710
        %v2016 = vunpack.c.l.b16 %v1711
        %v2017 = vunpack.c.h.b16 %v1711
        %v2018 = vunpack.c.l.b16 %v1712
        %v2019 = vunpack.c.h.b16 %v1712
        %v2020 = vunpack.c.l.b16 %v1713
        %v2021 = vunpack.c.h.b16 %v1713
        %v2022 = vunpack.c.l.b16 %v1714
        %v2023 = vunpack.c.h.b16 %v1714
        %v2024 = vunpack.c.l.b16 %v1715
        %v2025 = vunpack.c.h.b16 %v1715
        %v2026 = vunpack.c.l.b16 %v1716
        %v2027 = vunpack.c.h.b16 %v1716
        %v2028 = vunpack.c.l.b16 %v1717
        %v2029 = vunpack.c.h.b16 %v1717
        %v2030 = vunpack.c.l.b16 %v1718
        %v2031 = vunpack.c.h.b16 %v1718
        %v2032 = vunpack.c.l.b16 %v1719
        %v2033 = vunpack.c.h.b16 %v1719
        %v2034 = vunpack.c.l.b16 %v1720
        %v2035 = vunpack.c.h.b16 %v1720
        %v2036 = vunpack.c.l.b16 %v1721
        %v2037 = vunpack.c.h.b16 %v1721
        %v2038 = vunpack.c.l.b16 %v1722
        %v2039 = vunpack.c.h.b16 %v1722
        %v2040 = vunpack.c.l.b16 %v1723
        %v2041 = vunpack.c.h.b16 %v1723
        %v2042 = vunpack.c.l.b16 %v1724
        %v2043 = vunpack.c.h.b16 %v1724
        %v2044 = vunpack.c.l.b16 %v1725
        %v2045 = vunpack.c.h.b16 %v1725
        %v2046 = vunpack.c.l.b16 %v1726
        %v2047 = vunpack.c.h.b16 %v1726
        %v2048 = vunpack.c.l.b16 %v1727
        %v2049 = vunpack.c.h.b16 %v1727
        %v2050 = vunpack.c.l.b16 %v1728
        %v2051 = vunpack.c.h.b16 %v1728
        %v2052 = vunpack.c.l.b16 %v1729
        %v2053 = vunpack.c.h.b16 %v1729
        %v2054 = vunpack.c.l.b16 %v1730
        %v2055 = vunpack.c.h.b16 %v1730
        %v2056 = vunpack.c.l.b16 %v1731
        %v2057 = vunpack.c.h.b16 %v1731
        %v2058 = vunpack.c.l.b16 %v1732
        %v2059 = vunpack.c.h.b16 %v1732
        %v2060 = vunpack.c.l.b16 %v1733
        %v2061 = vunpack.c.h.b16 %v1733
        %v2062 = vunpack.c.l.b16 %v1734
        %v2063 = vunpack.c.h.b16 %v1734
        %v2064 = vunpack.c.l.b16 %v1735
        %v2065 = vunpack.c.h.b16 %v1735
        %v2066 = vunpack.c.l.b16 %v1736
        %v2067 = vunpack.c.h.b16 %v1736
        %v2068 = vunpack.c.l.b16 %v1737
        %v2069 = vunpack.c.h.b16 %v1737
        %v2070 = vunpack.c.l.b16 %v1738
        %v2071 = vunpack.c.h.b16 %v1738
        %v2072 = vunpack.c.l.b16 %v1739
        %v2073 = vunpack.c.h.b16 %v1739
        %v2074 = vunpack.c.l.b16 %v1740
        %v2075 = vunpack.c.h.b16 %v1740
        %v2076 = vunpack.c.l.b16 %v1741
        %v2077 = vunpack.c.h.b16 %v1741
        %v2078 = vunpack.c.l.b16 %v1742
        %v2079 = vunpack.c.h.b16 %v1742
        %v2080 = vunpack.c.l.b16 %v1743
        %v2081 = vunpack.c.h.b16 %v1743
        %v2082 = vunpack.c.l.b16 %v1744
        %v2083 = vunpack.c.h.b16 %v1744
        %v2084 = vunpack.c.l.b16 %v1745
        %v2085 = vunpack.c.h.b16 %v1745
        %v2086 = vunpack.c.l.b16 %v1746
        %v2087 = vunpack.c.h.b16 %v1746
        %v2088 = vunpack.c.l.b16 %v1747
        %v2089 = vunpack.c.h.b16 %v1747
        %v2090 = vunpack.c.l.b16 %v1748
        %v2091 = vunpack.c.h.b16 %v1748
        %v2092 = vunpack.c.l.b16 %v1749
        %v2093 = vunpack.c.h.b16 %v1749
        %v2094 = vunpack.c.l.b16 %v1750
        %v2095 = vunpack.c.h.b16 %v1750
        %v2096 = vunpack.c.l.b16 %v1751
        %v2097 = vunpack.c.h.b16 %v1751
        %v2098 = vunpack.c.l.b16 %v1752
        %v2099 = vunpack.c.h.b16 %v1752
        %v2100 = vunpack.c.l.b16 %v1753
        %v2101 = vunpack.c.h.b16 %v1753
        %v2102 = vunpack.c.l.b16 %v1754
        %v2103 = vunpack.c.h.b16 %v1754
        %v2104 = vunpack.c.l.b16 %v1755
        %v2105 = vunpack.c.h.b16 %v1755
        %v2106 = vunpack.c.l.b16 %v1756
        %v2107 = vunpack.c.h.b16 %v1756
        %v2108 = vunpack.c.l.b16 %v1757
        %v2109 = vunpack.c.h.b16 %v1757
        %v2110 = vunpack.c.l.b16 %v1758
        %v2111 = vunpack.c.h.b16 %v1758
        %v2112 = vunpack.c.l.b16 %v1759
        %v2113 = vunpack.c.h.b16 %v1759
        %v2114 = vunpack.c.l.b16 %v1760
        %v2115 = vunpack.c.h.b16 %v1760
        %v2116 = vunpack.c.l.b16 %v1761
        %v2117 = vunpack.c.h.b16 %v1761
        %v2118 = vunpack.c.l.b16 %v1762
        %v2119 = vunpack.c.h.b16 %v1762
        %v2120 = vunpack.c.l.b16 %v1763
        %v2121 = vunpack.c.h.b16 %v1763
        %v2122 = vunpack.c.l.b16 %v1764
        %v2123 = vunpack.c.h.b16 %v1764
        %v2124 = vunpack.c.l.b16 %v1765
        %v2125 = vunpack.c.h.b16 %v1765
        %v2126 = vunpack.c.l.b16 %v1766
        %v2127 = vunpack.c.h.b16 %v1766
        %v2128 = vunpack.c.l.b16 %v1767
        %v2129 = vunpack.c.h.b16 %v1767
        %v2130 = vunpack.c.l.b16 %v1768
        %v2131 = vunpack.c.h.b16 %v1768
        %v2132 = vunpack.c.l.b16 %v1769
        %v2133 = vunpack.c.h.b16 %v1769
        %v2134 = vunpack.c.l.b16 %v1770
        %v2135 = vunpack.c.h.b16 %v1770
        %v2136 = vunpack.c.l.b16 %v1771
        %v2137 = vunpack.c.h.b16 %v1771
        %v2138 = vunpack.c.l.b16 %v1772
        %v2139 = vunpack.c.h.b16 %v1772
        %v2140 = vunpack.c.l.b16 %v1773
        %v2141 = vunpack.c.h.b16 %v1773
        %v2142 = vunpack.c.l.b16 %v1774
        %v2143 = vunpack.c.h.b16 %v1774
        %v2144 = vunpack.c.l.b16 %v1775
        %v2145 = vunpack.c.h.b16 %v1775
        %v2146 = vunpack.c.l.b16 %v1776
        %v2147 = vunpack.c.h.b16 %v1776
        %v2148 = vunpack.c.l.b16 %v1777
        %v2149 = vunpack.c.h.b16 %v1777
        %v2150 = vunpack.c.l.b16 %v1778
        %v2151 = vunpack.c.h.b16 %v1778
        %v2152 = vunpack.c.l.b16 %v1779
        %v2153 = vunpack.c.h.b16 %v1779
        %v2154 = vunpack.c.l.b16 %v1780
        %v2155 = vunpack.c.h.b16 %v1780
        %v2156 = vunpack.c.l.b16 %v1781
        %v2157 = vunpack.c.h.b16 %v1781
        %v2158 = vunpack.c.l.b16 %v1782
        %v2159 = vunpack.c.h.b16 %v1782
        %v2160 = vunpack.c.l.b16 %v1783
        %v2161 = vunpack.c.h.b16 %v1783
        %v2162 = vunpack.c.l.b16 %v1784
        %v2163 = vunpack.c.h.b16 %v1784
        %v2164 = vunpack.c.l.b16 %v1785
        %v2165 = vunpack.c.h.b16 %v1785
        %v2166 = vunpack.c.l.b16 %v1786
        %v2167 = vunpack.c.h.b16 %v1786
        %v2168 = vunpack.c.l.b16 %v1787
        %v2169 = vunpack.c.h.b16 %v1787
        %v2170 = vunpack.c.l.b16 %v1788
        %v2171 = vunpack.c.h.b16 %v1788
        %v2172 = vunpack.c.l.b16 %v1789
        %v2173 = vunpack.c.h.b16 %v1789
        %v2174 = vunpack.c.l.b16 %v1790
        %v2175 = vunpack.c.h.b16 %v1790
        %v2176 = vunpack.c.l.b16 %v1791
        %v2177 = vunpack.c.h.b16 %v1791
        %v2178 = vunpack.c.l.b16 %v1792
        %v2179 = vunpack.c.h.b16 %v1792
        %v2180 = vunpack.c.l.b16 %v1793
        %v2181 = vunpack.c.h.b16 %v1793
        %v2182 = vunpack.c.l.b16 %v1794
        %v2183 = vunpack.c.h.b16 %v1794
        %v2184 = vunpack.c.l.b16 %v1795
        %v2185 = vunpack.c.h.b16 %v1795
        %v2186 = vunpack.c.l.b16 %v1796
        %v2187 = vunpack.c.h.b16 %v1796
        %v2188 = vunpack.c.l.b16 %v1797
        %v2189 = vunpack.c.h.b16 %v1797
        %v2190 = vunpack.c.l.b16 %v1798
        %v2191 = vunpack.c.h.b16 %v1798
        %v2192 = vunpack.c.l.b16 %v1799
        %v2193 = vunpack.c.h.b16 %v1799
        %v2194 = vunpack.c.l.b16 %v1800
        %v2195 = vunpack.c.h.b16 %v1800
        %v2196 = vunpack.c.l.b16 %v1801
        %v2197 = vunpack.c.h.b16 %v1801
        %v2198 = vunpack.c.l.b16 %v1802
        %v2199 = vunpack.c.h.b16 %v1802
        %v2200 = vunpack.c.l.b16 %v1803
        %v2201 = vunpack.c.h.b16 %v1803
        %v2202 = vunpack.c.l.b16 %v1804
        %v2203 = vunpack.c.h.b16 %v1804
        %v2204 = vunpack.c.l.b16 %v1805
        %v2205 = vunpack.c.h.b16 %v1805
        %v2206 = vunpack.c.l.b16 %v1806
        %v2207 = vunpack.c.h.b16 %v1806
        %v2208 = vunpack.c.l.b16 %v1807
        %v2209 = vunpack.c.h.b16 %v1807
        %v2210 = vunpack.c.l.b16 %v1808
        %v2211 = vunpack.c.h.b16 %v1808
        %v2212 = vunpack.c.l.b16 %v1809
        %v2213 = vunpack.c.h.b16 %v1809
        %v2214 = vunpack.c.l.b16 %v1810
        %v2215 = vunpack.c.h.b16 %v1810
        %v2216 = vunpack.c.l.b16 %v1811
        %v2217 = vunpack.c.h.b16 %v1811
        %v2218 = vpack.c.b16 %v1966, %v1962
        %v2219 = vpack.c.b16 %v1967, %v1963
        %v2220 = vpack.c.b16 %v1968, %v1964
        %v2221 = vpack.c.b16 %v1969, %v1965
        %v2222 = vpack.c.b16 %v1974, %v1970
        %v2223 = vpack.c.b16 %v1975, %v1971
        %v2224 = vpack.c.b16 %v1976, %v1972
        %v2225 = vpack.c.b16 %v1977, %v1973
        %v2226 = vpack.c.b16 %v1982, %v1978
        %v2227 = vpack.c.b16 %v1983, %v1979
        %v2228 = vpack.c.b16 %v1984, %v1980
        %v2229 = vpack.c.b16 %v1985, %v1981
        %v2230 = vpack.c.b16 %v1990, %v1986
        %v2231 = vpack.c.b16 %v1991, %v1987
        %v2232 = vpack.c.b16 %v1992, %v1988
        %v2233 = vpack.c.b16 %v1993, %v1989
        %v2234 = vpack.c.b16 %v1998, %v1994
        %v2235 = vpack.c.b16 %v1999, %v1995
        %v2236 = vpack.c.b16 %v2000, %v1996
        %v2237 = vpack.c.b16 %v2001, %v1997
        %v2238 = vpack.c.b16 %v2006, %v2002
        %v2239 = vpack.c.b16 %v2007, %v2003
        %v2240 = vpack.c.b16 %v2008, %v2004
        %v2241 = vpack.c.b16 %v2009, %v2005
        %v2242 = vpack.c.b16 %v2014, %v2010
        %v2243 = vpack.c.b16 %v2015, %v2011
        %v2244 = vpack.c.b16 %v2016, %v2012
        %v2245 = vpack.c.b16 %v2017, %v2013
        %v2246 = vpack.c.b16 %v2022, %v2018
        %v2247 = vpack.c.b16 %v2023, %v2019
        %v2248 = vpack.c.b16 %v2024, %v2020
        %v2249 = vpack.c.b16 %v2025, %v2021
        %v2250 = vpack.c.b16 %v2030, %v2026
        %v2251 = vpack.c.b16 %v2031, %v2027
        %v2252 = vpack.c.b16 %v2032, %v2028
        %v2253 = vpack.c.b16 %v2033, %v2029
        %v2254 = vpack.c.b16 %v2038, %v2034
        %v2255 = vpack.c.b16 %v2039, %v2035
        %v2256 = vpack.c.b16 %v2040, %v2036
        %v2257 = vpack.c.b16 %v2041, %v2037
        %v2258 = vpack.c.b16 %v2046, %v2042
        %v2259 = vpack.c.b16 %v2047, %v2043
        %v2260 = vpack.c.b16 %v2048, %v2044
        %v2261 = vpack.c.b16 %v2049, %v2045
        %v2262 = vpack.c.b16 %v2054, %v2050
        %v2263 = vpack.c.b16 %v2055, %v2051
        %v2264 = vpack.c.b16 %v2056, %v2052
        %v2265 = vpack.c.b16 %v2057, %v2053
        %v2266 = vpack.c.b16 %v2062, %v2058
        %v2267 = vpack.c.b16 %v2063, %v2059
        %v2268 = vpack.c.b16 %v2064, %v2060
        %v2269 = vpack.c.b16 %v2065, %v2061
        %v2270 = vpack.c.b16 %v2070, %v2066
        %v2271 = vpack.c.b16 %v2071, %v2067
        %v2272 = vpack.c.b16 %v2072, %v2068
        %v2273 = vpack.c.b16 %v2073, %v2069
        %v2274 = vpack.c.b16 %v2078, %v2074
        %v2275 = vpack.c.b16 %v2079, %v2075
        %v2276 = vpack.c.b16 %v2080, %v2076
        %v2277 = vpack.c.b16 %v2081, %v2077
        %v2278 = vpack.c.b16 %v2086, %v2082
        %v2279 = vpack.c.b16 %v2087, %v2083
        %v2280 = vpack.c.b16 %v2088, %v2084
        %v2281 = vpack.c.b16 %v2089, %v2085
        %v2282 = vpack.c.b16 %v2094, %v2090
        %v2283 = vpack.c.b16 %v2095, %v2091
        %v2284 = vpack.c.b16 %v2096, %v2092
        %v2285 = vpack.c.b16 %v2097, %v2093
        %v2286 = vpack.c.b16 %v2102, %v2098
        %v2287 = vpack.c.b16 %v2103, %v2099
        %v2288 = vpack.c.b16 %v2104, %v2100
        %v2289 = vpack.c.b16 %v2105, %v2101
        %v2290 = vpack.c.b16 %v2110, %v2106
        %v2291 = vpack.c.b16 %v2111, %v2107
        %v2292 = vpack.c.b16 %v2112, %v2108
        %v2293 = vpack.c.b16 %v2113, %v2109
        %v2294 = vpack.c.b16 %v2118, %v2114
        %v2295 = vpack.c.b16 %v2119, %v2115
        %v2296 = vpack.c.b16 %v2120, %v2116
        %v2297 = vpack.c.b16 %v2121, %v2117
        %v2298 = vpack.c.b16 %v2126, %v2122
        %v2299 = vpack.c.b16 %v2127, %v2123
        %v2300 = vpack.c.b16 %v2128, %v2124
        %v2301 = vpack.c.b16 %v2129, %v2125
        %v2302 = vpack.c.b16 %v2134, %v2130
        %v2303 = vpack.c.b16 %v2135, %v2131
        %v2304 = vpack.c.b16 %v2136, %v2132
        %v2305 = vpack.c.b16 %v2137, %v2133
        %v2306 = vpack.c.b16 %v2142, %v2138
        %v2307 = vpack.c.b16 %v2143, %v2139
        %v2308 = vpack.c.b16 %v2144, %v2140
        %v2309 = vpack.c.b16 %v2145, %v2141
        %v2310 = vpack.c.b16 %v2150, %v2146
        %v2311 = vpack.c.b16 %v2151, %v2147
        %v2312 = vpack.c.b16 %v2152, %v2148
        %v2313 = vpack.c.b16 %v2153, %v2149
        %v2314 = vpack.c.b16 %v2158, %v2154
        %v2315 = vpack.c.b16 %v2159, %v2155
        %v2316 = vpack.c.b16 %v2160, %v2156
        %v2317 = vpack.c.b16 %v2161, %v2157
        %v2318 = vpack.c.b16 %v2166, %v2162
        %v2319 = vpack.c.b16 %v2167, %v2163
        %v2320 = vpack.c.b16 %v2168, %v2164
        %v2321 = vpack.c.b16 %v2169, %v2165
        %v2322 = vpack.c.b16 %v2174, %v2170
        %v2323 = vpack.c.b16 %v2175, %v2171
        %v2324 = vpack.c.b16 %v2176, %v2172
        %v2325 = vpack.c.b16 %v2177, %v2173
        %v2326 = vpack.c.b16 %v2182, %v2178
        %v2327 = vpack.c.b16 %v2183, %v2179
        %v2328 = vpack.c.b16 %v2184, %v2180
        %v2329 = vpack.c.b16 %v2185, %v2181
        %v2330 = vpack.c.b16 %v2190, %v2186
        %v2331 = vpack.c.b16 %v2191, %v2187
        %v2332 = vpack.c.b16 %v2192, %v2188
        %v2333 = vpack.c.b16 %v2193, %v2189
        %v2334 = vpack.c.b16 %v2198, %v2194
        %v2335 = vpack.c.b16 %v2199, %v2195
        %v2336 = vpack.c.b16 %v2200, %v2196
        %v2337 = vpack.c.b16 %v2201, %v2197
        %v2338 = vpack.c.b16 %v2206, %v2202
        %v2339 = vpack.c.b16 %v2207, %v2203
        %v2340 = vpack.c.b16 %v2208, %v2204
        %v2341 = vpack.c.b16 %v2209, %v2205
        %v2342 = vpack.c.b16 %v2214, %v2210
        %v2343 = vpack.c.b16 %v2215, %v2211
        %v2344 = vpack.c.b16 %v2216, %v2212
        %v2345 = vpack.c.b16 %v2217, %v2213
        %2474 = vmatprep.subr.bf16.mxu0 %v2219
        %2475 = vmatpush1.bf16.msra.mxu0 %v2218
        %2476 = vmatprep.subr.bf16.mxu0 %v2223
        %2477 = vmatpush1.bf16.msra.mxu0 %v2222
        %2478 = vmatprep.subr.bf16.mxu0 %v2227
        %2479 = vmatpush1.bf16.msra.mxu0 %v2226
        %2480 = vmatprep.subr.bf16.mxu0 %v2231
        %2481 = vmatpush1.bf16.msra.mxu0 %v2230
        %2482 = vmatprep.subr.bf16.mxu0 %v2235
        %2483 = vmatpush1.bf16.msra.mxu0 %v2234
        %2484 = vmatprep.subr.bf16.mxu0 %v2239
        %2485 = vmatpush1.bf16.msra.mxu0 %v2238
        %2486 = vmatprep.subr.bf16.mxu0 %v2243
        %2487 = vmatpush1.bf16.msra.mxu0 %v2242
        %2488 = vmatprep.subr.bf16.mxu0 %v2247
        %2489 = vmatpush1.bf16.msra.mxu0 %v2246
        %2490 = vmatprep.subr.bf16.mxu0 %v2251
        %2491 = vmatpush1.bf16.msra.mxu0 %v2250
        %2492 = vmatprep.subr.bf16.mxu0 %v2255
        %2493 = vmatpush1.bf16.msra.mxu0 %v2254
        %2494 = vmatprep.subr.bf16.mxu0 %v2259
        %2495 = vmatpush1.bf16.msra.mxu0 %v2258
        %2496 = vmatprep.subr.bf16.mxu0 %v2263
        %2497 = vmatpush1.bf16.msra.mxu0 %v2262
        %2498 = vmatprep.subr.bf16.mxu0 %v2267
        %2499 = vmatpush1.bf16.msra.mxu0 %v2266
        %2500 = vmatprep.subr.bf16.mxu0 %v2271
        %2501 = vmatpush1.bf16.msra.mxu0 %v2270
        %2502 = vmatprep.subr.bf16.mxu0 %v2275
        %2503 = vmatpush1.bf16.msra.mxu0 %v2274
        %2504 = vmatprep.subr.bf16.mxu0 %v2279
        %2505 = vmatpush1.bf16.msra.mxu0 %v2278
        %2506 = vmatprep.mubr.bf16.mxu0 %v715
        %2507 = vmatmul.mubr.bf16.gmra.mrb[0].mxu0 %v714
        %v2508 = vpop.f32.mrb[0].mxu0
        %v2509 = vadd.f32 %v1817, %v2508
        %v2510 = vpop.f32.mrb[0].mxu0
        %v2511 = vadd.f32 %v1821, %v2510
        %v2512 = vpop.f32.mrb[0].mxu0
        %v2513 = vpop.f32.mrb[0].mxu0
        %2514 = vdwg.mxu0
        %2515 = vmatprep.subr.bf16.mxu0 %v2283
        %2516 = vmatpush1.bf16.msra.mxu0 %v2282
        %2517 = vmatprep.subr.bf16.mxu0 %v2287
        %2518 = vmatpush1.bf16.msra.mxu0 %v2286
        %2519 = vmatprep.subr.bf16.mxu0 %v2291
        %2520 = vmatpush1.bf16.msra.mxu0 %v2290
        %2521 = vmatprep.subr.bf16.mxu0 %v2295
        %2522 = vmatpush1.bf16.msra.mxu0 %v2294
        %2523 = vmatprep.subr.bf16.mxu0 %v2299
        %2524 = vmatpush1.bf16.msra.mxu0 %v2298
        %2525 = vmatprep.subr.bf16.mxu0 %v2303
        %2526 = vmatpush1.bf16.msra.mxu0 %v2302
        %2527 = vmatprep.subr.bf16.mxu0 %v2307
        %2528 = vmatpush1.bf16.msra.mxu0 %v2306
        %2529 = vmatprep.subr.bf16.mxu0 %v2311
        %2530 = vmatpush1.bf16.msra.mxu0 %v2310
        %2531 = vmatprep.subr.bf16.mxu0 %v2315
        %2532 = vmatpush1.bf16.msra.mxu0 %v2314
        %2533 = vmatprep.subr.bf16.mxu0 %v2319
        %2534 = vmatpush1.bf16.msra.mxu0 %v2318
        %2535 = vmatprep.subr.bf16.mxu0 %v2323
        %2536 = vmatpush1.bf16.msra.mxu0 %v2322
        %2537 = vmatprep.subr.bf16.mxu0 %v2327
        %2538 = vmatpush1.bf16.msra.mxu0 %v2326
        %2539 = vmatprep.subr.bf16.mxu0 %v2331
        %2540 = vmatpush1.bf16.msra.mxu0 %v2330
        %2541 = vmatprep.subr.bf16.mxu0 %v2335
        %2542 = vmatpush1.bf16.msra.mxu0 %v2334
        %2543 = vmatprep.subr.bf16.mxu0 %v2339
        %2544 = vmatpush1.bf16.msra.mxu0 %v2338
        %2545 = vmatprep.subr.bf16.mxu0 %v2343
        %2546 = vmatpush1.bf16.msra.mxu0 %v2342
        %2547 = vmatprep.mubr.bf16.mxu0 %v717
        %2548 = vmatmul.mubr.bf16.gmra.mrb[0].mxu0 %v716
        %v2549 = vpop.f32.mrb[0].mxu0
        %v2550 = vadd.f32 %v2509, %v2549
        %v2551 = vpop.f32.mrb[0].mxu0
        %v2552 = vadd.f32 %v2511, %v2551
        %v2553 = vpop.f32.mrb[0].mxu0
        %v2554 = vpop.f32.mrb[0].mxu0
        %2555 = vdwg.mxu0
        %2556 = vmatprep.subr.bf16.mxu0 %v2221
        %2557 = vmatpush1.bf16.msra.mxu0 %v2220
        %2558 = vmatprep.subr.bf16.mxu0 %v2225
        %2559 = vmatpush1.bf16.msra.mxu0 %v2224
        %2560 = vmatprep.subr.bf16.mxu0 %v2229
        %2561 = vmatpush1.bf16.msra.mxu0 %v2228
        %2562 = vmatprep.subr.bf16.mxu0 %v2233
        %2563 = vmatpush1.bf16.msra.mxu0 %v2232
        %2564 = vmatprep.subr.bf16.mxu0 %v2237
        %2565 = vmatpush1.bf16.msra.mxu0 %v2236
        %2566 = vmatprep.subr.bf16.mxu0 %v2241
        %2567 = vmatpush1.bf16.msra.mxu0 %v2240
        %2568 = vmatprep.subr.bf16.mxu0 %v2245
        %2569 = vmatpush1.bf16.msra.mxu0 %v2244
        %2570 = vmatprep.subr.bf16.mxu0 %v2249
        %2571 = vmatpush1.bf16.msra.mxu0 %v2248
        %2572 = vmatprep.subr.bf16.mxu0 %v2253
        %2573 = vmatpush1.bf16.msra.mxu0 %v2252
        %2574 = vmatprep.subr.bf16.mxu0 %v2257
        %2575 = vmatpush1.bf16.msra.mxu0 %v2256
        %2576 = vmatprep.subr.bf16.mxu0 %v2261
        %2577 = vmatpush1.bf16.msra.mxu0 %v2260
        %2578 = vmatprep.subr.bf16.mxu0 %v2265
        %2579 = vmatpush1.bf16.msra.mxu0 %v2264
        %2580 = vmatprep.subr.bf16.mxu0 %v2269
        %2581 = vmatpush1.bf16.msra.mxu0 %v2268
        %2582 = vmatprep.subr.bf16.mxu0 %v2273
        %2583 = vmatpush1.bf16.msra.mxu0 %v2272
        %2584 = vmatprep.subr.bf16.mxu0 %v2277
        %2585 = vmatpush1.bf16.msra.mxu0 %v2276
        %2586 = vmatprep.subr.bf16.mxu0 %v2281
        %2587 = vmatpush1.bf16.msra.mxu0 %v2280
        %2588 = vmatprep.mubr.bf16.mxu0 %v715
        %2589 = vmatmul.mubr.bf16.gmra.mrb[0].mxu0 %v714
        %v2590 = vpop.f32.mrb[0].mxu0
        %v2591 = vadd.f32 %v1825, %v2590
        %v2592 = vpop.f32.mrb[0].mxu0
        %v2593 = vadd.f32 %v1829, %v2592
        %v2594 = vpop.f32.mrb[0].mxu0
        %v2595 = vpop.f32.mrb[0].mxu0
        %2596 = vdwg.mxu0
        %2597 = vmatprep.subr.bf16.mxu0 %v2285
        %2598 = vmatpush1.bf16.msra.mxu0 %v2284
        %2599 = vmatprep.subr.bf16.mxu0 %v2289
        %2600 = vmatpush1.bf16.msra.mxu0 %v2288
        %2601 = vmatprep.subr.bf16.mxu0 %v2293
        %2602 = vmatpush1.bf16.msra.mxu0 %v2292
        %2603 = vmatprep.subr.bf16.mxu0 %v2297
        %2604 = vmatpush1.bf16.msra.mxu0 %v2296
        %2605 = vmatprep.subr.bf16.mxu0 %v2301
        %2606 = vmatpush1.bf16.msra.mxu0 %v2300
        %2607 = vmatprep.subr.bf16.mxu0 %v2305
        %2608 = vmatpush1.bf16.msra.mxu0 %v2304
        %2609 = vmatprep.subr.bf16.mxu0 %v2309
        %2610 = vmatpush1.bf16.msra.mxu0 %v2308
        %2611 = vmatprep.subr.bf16.mxu0 %v2313
        %2612 = vmatpush1.bf16.msra.mxu0 %v2312
        %2613 = vmatprep.subr.bf16.mxu0 %v2317
        %2614 = vmatpush1.bf16.msra.mxu0 %v2316
        %2615 = vmatprep.subr.bf16.mxu0 %v2321
        %2616 = vmatpush1.bf16.msra.mxu0 %v2320
        %2617 = vmatprep.subr.bf16.mxu0 %v2325
        %2618 = vmatpush1.bf16.msra.mxu0 %v2324
        %2619 = vmatprep.subr.bf16.mxu0 %v2329
        %2620 = vmatpush1.bf16.msra.mxu0 %v2328
        %2621 = vmatprep.subr.bf16.mxu0 %v2333
        %2622 = vmatpush1.bf16.msra.mxu0 %v2332
        %2623 = vmatprep.subr.bf16.mxu0 %v2337
        %2624 = vmatpush1.bf16.msra.mxu0 %v2336
        %2625 = vmatprep.subr.bf16.mxu0 %v2341
        %2626 = vmatpush1.bf16.msra.mxu0 %v2340
        %2627 = vmatprep.subr.bf16.mxu0 %v2345
        %2628 = vmatpush1.bf16.msra.mxu0 %v2344
        %2629 = vmatprep.mubr.bf16.mxu0 %v717
        %2630 = vmatmul.mubr.bf16.gmra.mrb[0].mxu0 %v716
        %v2631 = vpop.f32.mrb[0].mxu0
        %v2632 = vadd.f32 %v2591, %v2631
        %v2633 = vpop.f32.mrb[0].mxu0
        %v2634 = vadd.f32 %v2593, %v2633
        %v2635 = vpop.f32.mrb[0].mxu0
        %v2636 = vpop.f32.mrb[0].mxu0
        %2637 = vdwg.mxu0
        %v2638 = vpack.c.bf16 %v2550, %v2550
        %v2639 = vpack.c.bf16 %v2552, %v2552
        %v2640 = vpack.c.bf16 %v2632, %v2632
        %v2641 = vpack.c.bf16 %v2634, %v2634
        %v2642 = vld [vmem:[#allocation15] sm:$0xff]
        %v2643 = vld [vmem:[#allocation15 + $0x8] sm:$0xff]
        %v2644 = vld [vmem:[#allocation15 + $0x10] sm:$0xff]
        %v2645 = vld [vmem:[#allocation15 + $0x18] sm:$0xff]
        %v2646 = vld [vmem:[#allocation15 + $0x20] sm:$0xff]
        %v2647 = vld [vmem:[#allocation15 + $0x28] sm:$0xff]
        %v2648 = vld [vmem:[#allocation15 + $0x30] sm:$0xff]
        %v2649 = vld [vmem:[#allocation15 + $0x38] sm:$0xff]
        %v2650 = vld [vmem:[#allocation15 + $0x40] sm:$0xff]
        %v2651 = vld [vmem:[#allocation15 + $0x48] sm:$0xff]
        %v2652 = vld [vmem:[#allocation15 + $0x50] sm:$0xff]
        %v2653 = vld [vmem:[#allocation15 + $0x58] sm:$0xff]
        %v2654 = vld [vmem:[#allocation15 + $0x60] sm:$0xff]
        %v2655 = vld [vmem:[#allocation15 + $0x68] sm:$0xff]
        %v2656 = vld [vmem:[#allocation15 + $0x70] sm:$0xff]
        %v2657 = vld [vmem:[#allocation15 + $0x78] sm:$0xff]
        %v2658 = vld [vmem:[#allocation15 + $0x80] sm:$0xff]
        %v2659 = vld [vmem:[#allocation15 + $0x88] sm:$0xff]
        %v2660 = vld [vmem:[#allocation15 + $0x90] sm:$0xff]
        %v2661 = vld [vmem:[#allocation15 + $0x98] sm:$0xff]
        %v2662 = vld [vmem:[#allocation15 + $0xa0] sm:$0xff]
        %v2663 = vld [vmem:[#allocation15 + $0xa8] sm:$0xff]
        %v2664 = vld [vmem:[#allocation15 + $0xb0] sm:$0xff]
        %v2665 = vld [vmem:[#allocation15 + $0xb8] sm:$0xff]
        %v2666 = vld [vmem:[#allocation15 + $0xc0] sm:$0xff]
        %v2667 = vld [vmem:[#allocation15 + $0xc8] sm:$0xff]
        %v2668 = vld [vmem:[#allocation15 + $0xd0] sm:$0xff]
        %v2669 = vld [vmem:[#allocation15 + $0xd8] sm:$0xff]
        %v2670 = vld [vmem:[#allocation15 + $0xe0] sm:$0xff]
        %v2671 = vld [vmem:[#allocation15 + $0xe8] sm:$0xff]
        %v2672 = vld [vmem:[#allocation15 + $0xf0] sm:$0xff]
        %v2673 = vld [vmem:[#allocation15 + $0xf8] sm:$0xff]
        %v2674 = vld [vmem:[#allocation15 + $0x100] sm:$0xff]
        %v2675 = vld [vmem:[#allocation15 + $0x108] sm:$0xff]
        %v2676 = vld [vmem:[#allocation15 + $0x110] sm:$0xff]
        %v2677 = vld [vmem:[#allocation15 + $0x118] sm:$0xff]
        %v2678 = vld [vmem:[#allocation15 + $0x120] sm:$0xff]
        %v2679 = vld [vmem:[#allocation15 + $0x128] sm:$0xff]
        %v2680 = vld [vmem:[#allocation15 + $0x130] sm:$0xff]
        %v2681 = vld [vmem:[#allocation15 + $0x138] sm:$0xff]
        %v2682 = vld [vmem:[#allocation15 + $0x140] sm:$0xff]
        %v2683 = vld [vmem:[#allocation15 + $0x148] sm:$0xff]
        %v2684 = vld [vmem:[#allocation15 + $0x150] sm:$0xff]
        %v2685 = vld [vmem:[#allocation15 + $0x158] sm:$0xff]
        %v2686 = vld [vmem:[#allocation15 + $0x160] sm:$0xff]
        %v2687 = vld [vmem:[#allocation15 + $0x168] sm:$0xff]
        %v2688 = vld [vmem:[#allocation15 + $0x170] sm:$0xff]
        %v2689 = vld [vmem:[#allocation15 + $0x178] sm:$0xff]
        %v2690 = vld [vmem:[#allocation15 + $0x180] sm:$0xff]
        %v2691 = vld [vmem:[#allocation15 + $0x188] sm:$0xff]
        %v2692 = vld [vmem:[#allocation15 + $0x190] sm:$0xff]
        %v2693 = vld [vmem:[#allocation15 + $0x198] sm:$0xff]
        %v2694 = vld [vmem:[#allocation15 + $0x1a0] sm:$0xff]
        %v2695 = vld [vmem:[#allocation15 + $0x1a8] sm:$0xff]
        %v2696 = vld [vmem:[#allocation15 + $0x1b0] sm:$0xff]
        %v2697 = vld [vmem:[#allocation15 + $0x1b8] sm:$0xff]
        %v2698 = vld [vmem:[#allocation15 + $0x1c0] sm:$0xff]
        %v2699 = vld [vmem:[#allocation15 + $0x1c8] sm:$0xff]
        %v2700 = vld [vmem:[#allocation15 + $0x1d0] sm:$0xff]
        %v2701 = vld [vmem:[#allocation15 + $0x1d8] sm:$0xff]
        %v2702 = vld [vmem:[#allocation15 + $0x1e0] sm:$0xff]
        %v2703 = vld [vmem:[#allocation15 + $0x1e8] sm:$0xff]
        %v2704 = vld [vmem:[#allocation15 + $0x1f0] sm:$0xff]
        %v2705 = vld [vmem:[#allocation15 + $0x1f8] sm:$0xff]
        %v2706 = vld [vmem:[#allocation15 + $0x200] sm:$0xff]
        %v2707 = vld [vmem:[#allocation15 + $0x208] sm:$0xff]
        %v2708 = vld [vmem:[#allocation15 + $0x210] sm:$0xff]
        %v2709 = vld [vmem:[#allocation15 + $0x218] sm:$0xff]
        %v2710 = vld [vmem:[#allocation15 + $0x220] sm:$0xff]
        %v2711 = vld [vmem:[#allocation15 + $0x228] sm:$0xff]
        %v2712 = vld [vmem:[#allocation15 + $0x230] sm:$0xff]
        %v2713 = vld [vmem:[#allocation15 + $0x238] sm:$0xff]
        %v2714 = vld [vmem:[#allocation15 + $0x240] sm:$0xff]
        %v2715 = vld [vmem:[#allocation15 + $0x248] sm:$0xff]
        %v2716 = vld [vmem:[#allocation15 + $0x250] sm:$0xff]
        %v2717 = vld [vmem:[#allocation15 + $0x258] sm:$0xff]
        %v2718 = vld [vmem:[#allocation15 + $0x260] sm:$0xff]
        %v2719 = vld [vmem:[#allocation15 + $0x268] sm:$0xff]
        %v2720 = vld [vmem:[#allocation15 + $0x270] sm:$0xff]
        %v2721 = vld [vmem:[#allocation15 + $0x278] sm:$0xff]
        %v2722 = vld [vmem:[#allocation15 + $0x280] sm:$0xff]
        %v2723 = vld [vmem:[#allocation15 + $0x288] sm:$0xff]
        %v2724 = vld [vmem:[#allocation15 + $0x290] sm:$0xff]
        %v2725 = vld [vmem:[#allocation15 + $0x298] sm:$0xff]
        %v2726 = vld [vmem:[#allocation15 + $0x2a0] sm:$0xff]
        %v2727 = vld [vmem:[#allocation15 + $0x2a8] sm:$0xff]
        %v2728 = vld [vmem:[#allocation15 + $0x2b0] sm:$0xff]
        %v2729 = vld [vmem:[#allocation15 + $0x2b8] sm:$0xff]
        %v2730 = vld [vmem:[#allocation15 + $0x2c0] sm:$0xff]
        %v2731 = vld [vmem:[#allocation15 + $0x2c8] sm:$0xff]
        %v2732 = vld [vmem:[#allocation15 + $0x2d0] sm:$0xff]
        %v2733 = vld [vmem:[#allocation15 + $0x2d8] sm:$0xff]
        %v2734 = vld [vmem:[#allocation15 + $0x2e0] sm:$0xff]
        %v2735 = vld [vmem:[#allocation15 + $0x2e8] sm:$0xff]
        %v2736 = vld [vmem:[#allocation15 + $0x2f0] sm:$0xff]
        %v2737 = vld [vmem:[#allocation15 + $0x2f8] sm:$0xff]
        %v2738 = vld [vmem:[#allocation15 + $0x300] sm:$0xff]
        %v2739 = vld [vmem:[#allocation15 + $0x308] sm:$0xff]
        %v2740 = vld [vmem:[#allocation15 + $0x310] sm:$0xff]
        %v2741 = vld [vmem:[#allocation15 + $0x318] sm:$0xff]
        %v2742 = vld [vmem:[#allocation15 + $0x320] sm:$0xff]
        %v2743 = vld [vmem:[#allocation15 + $0x328] sm:$0xff]
        %v2744 = vld [vmem:[#allocation15 + $0x330] sm:$0xff]
        %v2745 = vld [vmem:[#allocation15 + $0x338] sm:$0xff]
        %v2746 = vld [vmem:[#allocation15 + $0x340] sm:$0xff]
        %v2747 = vld [vmem:[#allocation15 + $0x348] sm:$0xff]
        %v2748 = vld [vmem:[#allocation15 + $0x350] sm:$0xff]
        %v2749 = vld [vmem:[#allocation15 + $0x358] sm:$0xff]
        %v2750 = vld [vmem:[#allocation15 + $0x360] sm:$0xff]
        %v2751 = vld [vmem:[#allocation15 + $0x368] sm:$0xff]
        %v2752 = vld [vmem:[#allocation15 + $0x370] sm:$0xff]
        %v2753 = vld [vmem:[#allocation15 + $0x378] sm:$0xff]
        %v2754 = vld [vmem:[#allocation15 + $0x380] sm:$0xff]
        %v2755 = vld [vmem:[#allocation15 + $0x388] sm:$0xff]
        %v2756 = vld [vmem:[#allocation15 + $0x390] sm:$0xff]
        %v2757 = vld [vmem:[#allocation15 + $0x398] sm:$0xff]
        %v2758 = vld [vmem:[#allocation15 + $0x3a0] sm:$0xff]
        %v2759 = vld [vmem:[#allocation15 + $0x3a8] sm:$0xff]
        %v2760 = vld [vmem:[#allocation15 + $0x3b0] sm:$0xff]
        %v2761 = vld [vmem:[#allocation15 + $0x3b8] sm:$0xff]
        %v2762 = vld [vmem:[#allocation15 + $0x3c0] sm:$0xff]
        %v2763 = vld [vmem:[#allocation15 + $0x3c8] sm:$0xff]
        %v2764 = vld [vmem:[#allocation15 + $0x3d0] sm:$0xff]
        %v2765 = vld [vmem:[#allocation15 + $0x3d8] sm:$0xff]
        %v2766 = vld [vmem:[#allocation15 + $0x3e0] sm:$0xff]
        %v2767 = vld [vmem:[#allocation15 + $0x3e8] sm:$0xff]
        %v2768 = vld [vmem:[#allocation15 + $0x3f0] sm:$0xff]
        %v2769 = vld [vmem:[#allocation15 + $0x3f8] sm:$0xff]
        %v2770 = vld [vmem:[#allocation17] sm:$0xf]
        %v2772 = vlaneseq
        %v2773 = vshrl.u32 %v2772, 7
        %v2774 = vsub.s32 0, %v2773
        %v2775 = vrot.slane %v2770, %v2774
        %v2776 = vlaneseq
        %v2777 = vshrl.u32 %v2776, 7
        %v2778 = vsub.s32 1, %v2777
        %v2779 = vrot.slane %v2770, %v2778
        %v2780 = vlaneseq
        %v2781 = vshrl.u32 %v2780, 7
        %v2782 = vsub.s32 2, %v2781
        %v2783 = vrot.slane %v2770, %v2782
        %v2784 = vlaneseq
        %v2785 = vshrl.u32 %v2784, 7
        %v2786 = vsub.s32 3, %v2785
        %v2787 = vrot.slane %v2770, %v2786
        %v2920 = vunpack.c.l.b16 %v2642
        %v2921 = vunpack.c.h.b16 %v2642
        %v2922 = vunpack.c.l.b16 %v2643
        %v2923 = vunpack.c.h.b16 %v2643
        %v2924 = vunpack.c.l.b16 %v2644
        %v2925 = vunpack.c.h.b16 %v2644
        %v2926 = vunpack.c.l.b16 %v2645
        %v2927 = vunpack.c.h.b16 %v2645
        %v2928 = vunpack.c.l.b16 %v2646
        %v2929 = vunpack.c.h.b16 %v2646
        %v2930 = vunpack.c.l.b16 %v2647
        %v2931 = vunpack.c.h.b16 %v2647
        %v2932 = vunpack.c.l.b16 %v2648
        %v2933 = vunpack.c.h.b16 %v2648
        %v2934 = vunpack.c.l.b16 %v2649
        %v2935 = vunpack.c.h.b16 %v2649
        %v2936 = vunpack.c.l.b16 %v2650
        %v2937 = vunpack.c.h.b16 %v2650
        %v2938 = vunpack.c.l.b16 %v2651
        %v2939 = vunpack.c.h.b16 %v2651
        %v2940 = vunpack.c.l.b16 %v2652
        %v2941 = vunpack.c.h.b16 %v2652
        %v2942 = vunpack.c.l.b16 %v2653
        %v2943 = vunpack.c.h.b16 %v2653
        %v2944 = vunpack.c.l.b16 %v2654
        %v2945 = vunpack.c.h.b16 %v2654
        %v2946 = vunpack.c.l.b16 %v2655
        %v2947 = vunpack.c.h.b16 %v2655
        %v2948 = vunpack.c.l.b16 %v2656
        %v2949 = vunpack.c.h.b16 %v2656
        %v2950 = vunpack.c.l.b16 %v2657
        %v2951 = vunpack.c.h.b16 %v2657
        %v2952 = vunpack.c.l.b16 %v2658
        %v2953 = vunpack.c.h.b16 %v2658
        %v2954 = vunpack.c.l.b16 %v2659
        %v2955 = vunpack.c.h.b16 %v2659
        %v2956 = vunpack.c.l.b16 %v2660
        %v2957 = vunpack.c.h.b16 %v2660
        %v2958 = vunpack.c.l.b16 %v2661
        %v2959 = vunpack.c.h.b16 %v2661
        %v2960 = vunpack.c.l.b16 %v2662
        %v2961 = vunpack.c.h.b16 %v2662
        %v2962 = vunpack.c.l.b16 %v2663
        %v2963 = vunpack.c.h.b16 %v2663
        %v2964 = vunpack.c.l.b16 %v2664
        %v2965 = vunpack.c.h.b16 %v2664
        %v2966 = vunpack.c.l.b16 %v2665
        %v2967 = vunpack.c.h.b16 %v2665
        %v2968 = vunpack.c.l.b16 %v2666
        %v2969 = vunpack.c.h.b16 %v2666
        %v2970 = vunpack.c.l.b16 %v2667
        %v2971 = vunpack.c.h.b16 %v2667
        %v2972 = vunpack.c.l.b16 %v2668
        %v2973 = vunpack.c.h.b16 %v2668
        %v2974 = vunpack.c.l.b16 %v2669
        %v2975 = vunpack.c.h.b16 %v2669
        %v2976 = vunpack.c.l.b16 %v2670
        %v2977 = vunpack.c.h.b16 %v2670
        %v2978 = vunpack.c.l.b16 %v2671
        %v2979 = vunpack.c.h.b16 %v2671
        %v2980 = vunpack.c.l.b16 %v2672
        %v2981 = vunpack.c.h.b16 %v2672
        %v2982 = vunpack.c.l.b16 %v2673
        %v2983 = vunpack.c.h.b16 %v2673
        %v2984 = vunpack.c.l.b16 %v2674
        %v2985 = vunpack.c.h.b16 %v2674
        %v2986 = vunpack.c.l.b16 %v2675
        %v2987 = vunpack.c.h.b16 %v2675
        %v2988 = vunpack.c.l.b16 %v2676
        %v2989 = vunpack.c.h.b16 %v2676
        %v2990 = vunpack.c.l.b16 %v2677
        %v2991 = vunpack.c.h.b16 %v2677
        %v2992 = vunpack.c.l.b16 %v2678
        %v2993 = vunpack.c.h.b16 %v2678
        %v2994 = vunpack.c.l.b16 %v2679
        %v2995 = vunpack.c.h.b16 %v2679
        %v2996 = vunpack.c.l.b16 %v2680
        %v2997 = vunpack.c.h.b16 %v2680
        %v2998 = vunpack.c.l.b16 %v2681
        %v2999 = vunpack.c.h.b16 %v2681
        %v3000 = vunpack.c.l.b16 %v2682
        %v3001 = vunpack.c.h.b16 %v2682
        %v3002 = vunpack.c.l.b16 %v2683
        %v3003 = vunpack.c.h.b16 %v2683
        %v3004 = vunpack.c.l.b16 %v2684
        %v3005 = vunpack.c.h.b16 %v2684
        %v3006 = vunpack.c.l.b16 %v2685
        %v3007 = vunpack.c.h.b16 %v2685
        %v3008 = vunpack.c.l.b16 %v2686
        %v3009 = vunpack.c.h.b16 %v2686
        %v3010 = vunpack.c.l.b16 %v2687
        %v3011 = vunpack.c.h.b16 %v2687
        %v3012 = vunpack.c.l.b16 %v2688
        %v3013 = vunpack.c.h.b16 %v2688
        %v3014 = vunpack.c.l.b16 %v2689
        %v3015 = vunpack.c.h.b16 %v2689
        %v3016 = vunpack.c.l.b16 %v2690
        %v3017 = vunpack.c.h.b16 %v2690
        %v3018 = vunpack.c.l.b16 %v2691
        %v3019 = vunpack.c.h.b16 %v2691
        %v3020 = vunpack.c.l.b16 %v2692
        %v3021 = vunpack.c.h.b16 %v2692
        %v3022 = vunpack.c.l.b16 %v2693
        %v3023 = vunpack.c.h.b16 %v2693
        %v3024 = vunpack.c.l.b16 %v2694
        %v3025 = vunpack.c.h.b16 %v2694
        %v3026 = vunpack.c.l.b16 %v2695
        %v3027 = vunpack.c.h.b16 %v2695
        %v3028 = vunpack.c.l.b16 %v2696
        %v3029 = vunpack.c.h.b16 %v2696
        %v3030 = vunpack.c.l.b16 %v2697
        %v3031 = vunpack.c.h.b16 %v2697
        %v3032 = vunpack.c.l.b16 %v2698
        %v3033 = vunpack.c.h.b16 %v2698
        %v3034 = vunpack.c.l.b16 %v2699
        %v3035 = vunpack.c.h.b16 %v2699
        %v3036 = vunpack.c.l.b16 %v2700
        %v3037 = vunpack.c.h.b16 %v2700
        %v3038 = vunpack.c.l.b16 %v2701
        %v3039 = vunpack.c.h.b16 %v2701
        %v3040 = vunpack.c.l.b16 %v2702
        %v3041 = vunpack.c.h.b16 %v2702
        %v3042 = vunpack.c.l.b16 %v2703
        %v3043 = vunpack.c.h.b16 %v2703
        %v3044 = vunpack.c.l.b16 %v2704
        %v3045 = vunpack.c.h.b16 %v2704
        %v3046 = vunpack.c.l.b16 %v2705
        %v3047 = vunpack.c.h.b16 %v2705
        %v3048 = vunpack.c.l.b16 %v2706
        %v3049 = vunpack.c.h.b16 %v2706
        %v3050 = vunpack.c.l.b16 %v2707
        %v3051 = vunpack.c.h.b16 %v2707
        %v3052 = vunpack.c.l.b16 %v2708
        %v3053 = vunpack.c.h.b16 %v2708
        %v3054 = vunpack.c.l.b16 %v2709
        %v3055 = vunpack.c.h.b16 %v2709
        %v3056 = vunpack.c.l.b16 %v2710
        %v3057 = vunpack.c.h.b16 %v2710
        %v3058 = vunpack.c.l.b16 %v2711
        %v3059 = vunpack.c.h.b16 %v2711
        %v3060 = vunpack.c.l.b16 %v2712
        %v3061 = vunpack.c.h.b16 %v2712
        %v3062 = vunpack.c.l.b16 %v2713
        %v3063 = vunpack.c.h.b16 %v2713
        %v3064 = vunpack.c.l.b16 %v2714
        %v3065 = vunpack.c.h.b16 %v2714
        %v3066 = vunpack.c.l.b16 %v2715
        %v3067 = vunpack.c.h.b16 %v2715
        %v3068 = vunpack.c.l.b16 %v2716
        %v3069 = vunpack.c.h.b16 %v2716
        %v3070 = vunpack.c.l.b16 %v2717
        %v3071 = vunpack.c.h.b16 %v2717
        %v3072 = vunpack.c.l.b16 %v2718
        %v3073 = vunpack.c.h.b16 %v2718
        %v3074 = vunpack.c.l.b16 %v2719
        %v3075 = vunpack.c.h.b16 %v2719
        %v3076 = vunpack.c.l.b16 %v2720
        %v3077 = vunpack.c.h.b16 %v2720
        %v3078 = vunpack.c.l.b16 %v2721
        %v3079 = vunpack.c.h.b16 %v2721
        %v3080 = vunpack.c.l.b16 %v2722
        %v3081 = vunpack.c.h.b16 %v2722
        %v3082 = vunpack.c.l.b16 %v2723
        %v3083 = vunpack.c.h.b16 %v2723
        %v3084 = vunpack.c.l.b16 %v2724
        %v3085 = vunpack.c.h.b16 %v2724
        %v3086 = vunpack.c.l.b16 %v2725
        %v3087 = vunpack.c.h.b16 %v2725
        %v3088 = vunpack.c.l.b16 %v2726
        %v3089 = vunpack.c.h.b16 %v2726
        %v3090 = vunpack.c.l.b16 %v2727
        %v3091 = vunpack.c.h.b16 %v2727
        %v3092 = vunpack.c.l.b16 %v2728
        %v3093 = vunpack.c.h.b16 %v2728
        %v3094 = vunpack.c.l.b16 %v2729
        %v3095 = vunpack.c.h.b16 %v2729
        %v3096 = vunpack.c.l.b16 %v2730
        %v3097 = vunpack.c.h.b16 %v2730
        %v3098 = vunpack.c.l.b16 %v2731
        %v3099 = vunpack.c.h.b16 %v2731
        %v3100 = vunpack.c.l.b16 %v2732
        %v3101 = vunpack.c.h.b16 %v2732
        %v3102 = vunpack.c.l.b16 %v2733
        %v3103 = vunpack.c.h.b16 %v2733
        %v3104 = vunpack.c.l.b16 %v2734
        %v3105 = vunpack.c.h.b16 %v2734
        %v3106 = vunpack.c.l.b16 %v2735
        %v3107 = vunpack.c.h.b16 %v2735
        %v3108 = vunpack.c.l.b16 %v2736
        %v3109 = vunpack.c.h.b16 %v2736
        %v3110 = vunpack.c.l.b16 %v2737
        %v3111 = vunpack.c.h.b16 %v2737
        %v3112 = vunpack.c.l.b16 %v2738
        %v3113 = vunpack.c.h.b16 %v2738
        %v3114 = vunpack.c.l.b16 %v2739
        %v3115 = vunpack.c.h.b16 %v2739
        %v3116 = vunpack.c.l.b16 %v2740
        %v3117 = vunpack.c.h.b16 %v2740
        %v3118 = vunpack.c.l.b16 %v2741
        %v3119 = vunpack.c.h.b16 %v2741
        %v3120 = vunpack.c.l.b16 %v2742
        %v3121 = vunpack.c.h.b16 %v2742
        %v3122 = vunpack.c.l.b16 %v2743
        %v3123 = vunpack.c.h.b16 %v2743
        %v3124 = vunpack.c.l.b16 %v2744
        %v3125 = vunpack.c.h.b16 %v2744
        %v3126 = vunpack.c.l.b16 %v2745
        %v3127 = vunpack.c.h.b16 %v2745
        %v3128 = vunpack.c.l.b16 %v2746
        %v3129 = vunpack.c.h.b16 %v2746
        %v3130 = vunpack.c.l.b16 %v2747
        %v3131 = vunpack.c.h.b16 %v2747
        %v3132 = vunpack.c.l.b16 %v2748
        %v3133 = vunpack.c.h.b16 %v2748
        %v3134 = vunpack.c.l.b16 %v2749
        %v3135 = vunpack.c.h.b16 %v2749
        %v3136 = vunpack.c.l.b16 %v2750
        %v3137 = vunpack.c.h.b16 %v2750
        %v3138 = vunpack.c.l.b16 %v2751
        %v3139 = vunpack.c.h.b16 %v2751
        %v3140 = vunpack.c.l.b16 %v2752
        %v3141 = vunpack.c.h.b16 %v2752
        %v3142 = vunpack.c.l.b16 %v2753
        %v3143 = vunpack.c.h.b16 %v2753
        %v3144 = vunpack.c.l.b16 %v2754
        %v3145 = vunpack.c.h.b16 %v2754
        %v3146 = vunpack.c.l.b16 %v2755
        %v3147 = vunpack.c.h.b16 %v2755
        %v3148 = vunpack.c.l.b16 %v2756
        %v3149 = vunpack.c.h.b16 %v2756
        %v3150 = vunpack.c.l.b16 %v2757
        %v3151 = vunpack.c.h.b16 %v2757
        %v3152 = vunpack.c.l.b16 %v2758
        %v3153 = vunpack.c.h.b16 %v2758
        %v3154 = vunpack.c.l.b16 %v2759
        %v3155 = vunpack.c.h.b16 %v2759
        %v3156 = vunpack.c.l.b16 %v2760
        %v3157 = vunpack.c.h.b16 %v2760
        %v3158 = vunpack.c.l.b16 %v2761
        %v3159 = vunpack.c.h.b16 %v2761
        %v3160 = vunpack.c.l.b16 %v2762
        %v3161 = vunpack.c.h.b16 %v2762
        %v3162 = vunpack.c.l.b16 %v2763
        %v3163 = vunpack.c.h.b16 %v2763
        %v3164 = vunpack.c.l.b16 %v2764
        %v3165 = vunpack.c.h.b16 %v2764
        %v3166 = vunpack.c.l.b16 %v2765
        %v3167 = vunpack.c.h.b16 %v2765
        %v3168 = vunpack.c.l.b16 %v2766
        %v3169 = vunpack.c.h.b16 %v2766
        %v3170 = vunpack.c.l.b16 %v2767
        %v3171 = vunpack.c.h.b16 %v2767
        %v3172 = vunpack.c.l.b16 %v2768
        %v3173 = vunpack.c.h.b16 %v2768
        %v3174 = vunpack.c.l.b16 %v2769
        %v3175 = vunpack.c.h.b16 %v2769
        %v3176 = vpack.c.b16 %v2924, %v2920
        %v3177 = vpack.c.b16 %v2925, %v2921
        %v3178 = vpack.c.b16 %v2926, %v2922
        %v3179 = vpack.c.b16 %v2927, %v2923
        %v3180 = vpack.c.b16 %v2932, %v2928
        %v3181 = vpack.c.b16 %v2933, %v2929
        %v3182 = vpack.c.b16 %v2934, %v2930
        %v3183 = vpack.c.b16 %v2935, %v2931
        %v3184 = vpack.c.b16 %v2940, %v2936
        %v3185 = vpack.c.b16 %v2941, %v2937
        %v3186 = vpack.c.b16 %v2942, %v2938
        %v3187 = vpack.c.b16 %v2943, %v2939
        %v3188 = vpack.c.b16 %v2948, %v2944
        %v3189 = vpack.c.b16 %v2949, %v2945
        %v3190 = vpack.c.b16 %v2950, %v2946
        %v3191 = vpack.c.b16 %v2951, %v2947
        %v3192 = vpack.c.b16 %v2956, %v2952
        %v3193 = vpack.c.b16 %v2957, %v2953
        %v3194 = vpack.c.b16 %v2958, %v2954
        %v3195 = vpack.c.b16 %v2959, %v2955
        %v3196 = vpack.c.b16 %v2964, %v2960
        %v3197 = vpack.c.b16 %v2965, %v2961
        %v3198 = vpack.c.b16 %v2966, %v2962
        %v3199 = vpack.c.b16 %v2967, %v2963
        %v3200 = vpack.c.b16 %v2972, %v2968
        %v3201 = vpack.c.b16 %v2973, %v2969
        %v3202 = vpack.c.b16 %v2974, %v2970
        %v3203 = vpack.c.b16 %v2975, %v2971
        %v3204 = vpack.c.b16 %v2980, %v2976
        %v3205 = vpack.c.b16 %v2981, %v2977
        %v3206 = vpack.c.b16 %v2982, %v2978
        %v3207 = vpack.c.b16 %v2983, %v2979
        %v3208 = vpack.c.b16 %v2988, %v2984
        %v3209 = vpack.c.b16 %v2989, %v2985
        %v3210 = vpack.c.b16 %v2990, %v2986
        %v3211 = vpack.c.b16 %v2991, %v2987
        %v3212 = vpack.c.b16 %v2996, %v2992
        %v3213 = vpack.c.b16 %v2997, %v2993
        %v3214 = vpack.c.b16 %v2998, %v2994
        %v3215 = vpack.c.b16 %v2999, %v2995
        %v3216 = vpack.c.b16 %v3004, %v3000
        %v3217 = vpack.c.b16 %v3005, %v3001
        %v3218 = vpack.c.b16 %v3006, %v3002
        %v3219 = vpack.c.b16 %v3007, %v3003
        %v3220 = vpack.c.b16 %v3012, %v3008
        %v3221 = vpack.c.b16 %v3013, %v3009
        %v3222 = vpack.c.b16 %v3014, %v3010
        %v3223 = vpack.c.b16 %v3015, %v3011
        %v3224 = vpack.c.b16 %v3020, %v3016
        %v3225 = vpack.c.b16 %v3021, %v3017
        %v3226 = vpack.c.b16 %v3022, %v3018
        %v3227 = vpack.c.b16 %v3023, %v3019
        %v3228 = vpack.c.b16 %v3028, %v3024
        %v3229 = vpack.c.b16 %v3029, %v3025
        %v3230 = vpack.c.b16 %v3030, %v3026
        %v3231 = vpack.c.b16 %v3031, %v3027
        %v3232 = vpack.c.b16 %v3036, %v3032
        %v3233 = vpack.c.b16 %v3037, %v3033
        %v3234 = vpack.c.b16 %v3038, %v3034
        %v3235 = vpack.c.b16 %v3039, %v3035
        %v3236 = vpack.c.b16 %v3044, %v3040
        %v3237 = vpack.c.b16 %v3045, %v3041
        %v3238 = vpack.c.b16 %v3046, %v3042
        %v3239 = vpack.c.b16 %v3047, %v3043
        %v3240 = vpack.c.b16 %v3052, %v3048
        %v3241 = vpack.c.b16 %v3053, %v3049
        %v3242 = vpack.c.b16 %v3054, %v3050
        %v3243 = vpack.c.b16 %v3055, %v3051
        %v3244 = vpack.c.b16 %v3060, %v3056
        %v3245 = vpack.c.b16 %v3061, %v3057
        %v3246 = vpack.c.b16 %v3062, %v3058
        %v3247 = vpack.c.b16 %v3063, %v3059
        %v3248 = vpack.c.b16 %v3068, %v3064
        %v3249 = vpack.c.b16 %v3069, %v3065
        %v3250 = vpack.c.b16 %v3070, %v3066
        %v3251 = vpack.c.b16 %v3071, %v3067
        %v3252 = vpack.c.b16 %v3076, %v3072
        %v3253 = vpack.c.b16 %v3077, %v3073
        %v3254 = vpack.c.b16 %v3078, %v3074
        %v3255 = vpack.c.b16 %v3079, %v3075
        %v3256 = vpack.c.b16 %v3084, %v3080
        %v3257 = vpack.c.b16 %v3085, %v3081
        %v3258 = vpack.c.b16 %v3086, %v3082
        %v3259 = vpack.c.b16 %v3087, %v3083
        %v3260 = vpack.c.b16 %v3092, %v3088
        %v3261 = vpack.c.b16 %v3093, %v3089
        %v3262 = vpack.c.b16 %v3094, %v3090
        %v3263 = vpack.c.b16 %v3095, %v3091
        %v3264 = vpack.c.b16 %v3100, %v3096
        %v3265 = vpack.c.b16 %v3101, %v3097
        %v3266 = vpack.c.b16 %v3102, %v3098
        %v3267 = vpack.c.b16 %v3103, %v3099
        %v3268 = vpack.c.b16 %v3108, %v3104
        %v3269 = vpack.c.b16 %v3109, %v3105
        %v3270 = vpack.c.b16 %v3110, %v3106
        %v3271 = vpack.c.b16 %v3111, %v3107
        %v3272 = vpack.c.b16 %v3116, %v3112
        %v3273 = vpack.c.b16 %v3117, %v3113
        %v3274 = vpack.c.b16 %v3118, %v3114
        %v3275 = vpack.c.b16 %v3119, %v3115
        %v3276 = vpack.c.b16 %v3124, %v3120
        %v3277 = vpack.c.b16 %v3125, %v3121
        %v3278 = vpack.c.b16 %v3126, %v3122
        %v3279 = vpack.c.b16 %v3127, %v3123
        %v3280 = vpack.c.b16 %v3132, %v3128
        %v3281 = vpack.c.b16 %v3133, %v3129
        %v3282 = vpack.c.b16 %v3134, %v3130
        %v3283 = vpack.c.b16 %v3135, %v3131
        %v3284 = vpack.c.b16 %v3140, %v3136
        %v3285 = vpack.c.b16 %v3141, %v3137
        %v3286 = vpack.c.b16 %v3142, %v3138
        %v3287 = vpack.c.b16 %v3143, %v3139
        %v3288 = vpack.c.b16 %v3148, %v3144
        %v3289 = vpack.c.b16 %v3149, %v3145
        %v3290 = vpack.c.b16 %v3150, %v3146
        %v3291 = vpack.c.b16 %v3151, %v3147
        %v3292 = vpack.c.b16 %v3156, %v3152
        %v3293 = vpack.c.b16 %v3157, %v3153
        %v3294 = vpack.c.b16 %v3158, %v3154
        %v3295 = vpack.c.b16 %v3159, %v3155
        %v3296 = vpack.c.b16 %v3164, %v3160
        %v3297 = vpack.c.b16 %v3165, %v3161
        %v3298 = vpack.c.b16 %v3166, %v3162
        %v3299 = vpack.c.b16 %v3167, %v3163
        %v3300 = vpack.c.b16 %v3172, %v3168
        %v3301 = vpack.c.b16 %v3173, %v3169
        %v3302 = vpack.c.b16 %v3174, %v3170
        %v3303 = vpack.c.b16 %v3175, %v3171
        %3432 = vmatprep.subr.bf16.mxu0 %v3177
        %3433 = vmatpush1.bf16.msra.mxu0 %v3176
        %3434 = vmatprep.subr.bf16.mxu0 %v3181
        %3435 = vmatpush1.bf16.msra.mxu0 %v3180
        %3436 = vmatprep.subr.bf16.mxu0 %v3185
        %3437 = vmatpush1.bf16.msra.mxu0 %v3184
        %3438 = vmatprep.subr.bf16.mxu0 %v3189
        %3439 = vmatpush1.bf16.msra.mxu0 %v3188
        %3440 = vmatprep.subr.bf16.mxu0 %v3193
        %3441 = vmatpush1.bf16.msra.mxu0 %v3192
        %3442 = vmatprep.subr.bf16.mxu0 %v3197
        %3443 = vmatpush1.bf16.msra.mxu0 %v3196
        %3444 = vmatprep.subr.bf16.mxu0 %v3201
        %3445 = vmatpush1.bf16.msra.mxu0 %v3200
        %3446 = vmatprep.subr.bf16.mxu0 %v3205
        %3447 = vmatpush1.bf16.msra.mxu0 %v3204
        %3448 = vmatprep.subr.bf16.mxu0 %v3209
        %3449 = vmatpush1.bf16.msra.mxu0 %v3208
        %3450 = vmatprep.subr.bf16.mxu0 %v3213
        %3451 = vmatpush1.bf16.msra.mxu0 %v3212
        %3452 = vmatprep.subr.bf16.mxu0 %v3217
        %3453 = vmatpush1.bf16.msra.mxu0 %v3216
        %3454 = vmatprep.subr.bf16.mxu0 %v3221
        %3455 = vmatpush1.bf16.msra.mxu0 %v3220
        %3456 = vmatprep.subr.bf16.mxu0 %v3225
        %3457 = vmatpush1.bf16.msra.mxu0 %v3224
        %3458 = vmatprep.subr.bf16.mxu0 %v3229
        %3459 = vmatpush1.bf16.msra.mxu0 %v3228
        %3460 = vmatprep.subr.bf16.mxu0 %v3233
        %3461 = vmatpush1.bf16.msra.mxu0 %v3232
        %3462 = vmatprep.subr.bf16.mxu0 %v3237
        %3463 = vmatpush1.bf16.msra.mxu0 %v3236
        %3464 = vmatprep.mubr.bf16.mxu0 %v723
        %3465 = vmatmul.mubr.bf16.gmra.mrb[0].mxu0 %v722
        %v3466 = vpop.f32.mrb[0].mxu0
        %v3467 = vadd.f32 %v2775, %v3466
        %v3468 = vpop.f32.mrb[0].mxu0
        %v3469 = vadd.f32 %v2779, %v3468
        %v3470 = vpop.f32.mrb[0].mxu0
        %v3471 = vpop.f32.mrb[0].mxu0
        %3472 = vdwg.mxu0
        %3473 = vmatprep.subr.bf16.mxu0 %v3241
        %3474 = vmatpush1.bf16.msra.mxu0 %v3240
        %3475 = vmatprep.subr.bf16.mxu0 %v3245
        %3476 = vmatpush1.bf16.msra.mxu0 %v3244
        %3477 = vmatprep.subr.bf16.mxu0 %v3249
        %3478 = vmatpush1.bf16.msra.mxu0 %v3248
        %3479 = vmatprep.subr.bf16.mxu0 %v3253
        %3480 = vmatpush1.bf16.msra.mxu0 %v3252
        %3481 = vmatprep.subr.bf16.mxu0 %v3257
        %3482 = vmatpush1.bf16.msra.mxu0 %v3256
        %3483 = vmatprep.subr.bf16.mxu0 %v3261
        %3484 = vmatpush1.bf16.msra.mxu0 %v3260
        %3485 = vmatprep.subr.bf16.mxu0 %v3265
        %3486 = vmatpush1.bf16.msra.mxu0 %v3264
        %3487 = vmatprep.subr.bf16.mxu0 %v3269
        %3488 = vmatpush1.bf16.msra.mxu0 %v3268
        %3489 = vmatprep.subr.bf16.mxu0 %v3273
        %3490 = vmatpush1.bf16.msra.mxu0 %v3272
        %3491 = vmatprep.subr.bf16.mxu0 %v3277
        %3492 = vmatpush1.bf16.msra.mxu0 %v3276
        %3493 = vmatprep.subr.bf16.mxu0 %v3281
        %3494 = vmatpush1.bf16.msra.mxu0 %v3280
        %3495 = vmatprep.subr.bf16.mxu0 %v3285
        %3496 = vmatpush1.bf16.msra.mxu0 %v3284
        %3497 = vmatprep.subr.bf16.mxu0 %v3289
        %3498 = vmatpush1.bf16.msra.mxu0 %v3288
        %3499 = vmatprep.subr.bf16.mxu0 %v3293
        %3500 = vmatpush1.bf16.msra.mxu0 %v3292
        %3501 = vmatprep.subr.bf16.mxu0 %v3297
        %3502 = vmatpush1.bf16.msra.mxu0 %v3296
        %3503 = vmatprep.subr.bf16.mxu0 %v3301
        %3504 = vmatpush1.bf16.msra.mxu0 %v3300
        %3505 = vmatprep.mubr.bf16.mxu0 %v725
        %3506 = vmatmul.mubr.bf16.gmra.mrb[0].mxu0 %v724
        %v3507 = vpop.f32.mrb[0].mxu0
        %v3508 = vadd.f32 %v3467, %v3507
        %v3509 = vpop.f32.mrb[0].mxu0
        %v3510 = vadd.f32 %v3469, %v3509
        %v3511 = vpop.f32.mrb[0].mxu0
        %v3512 = vpop.f32.mrb[0].mxu0
        %3513 = vdwg.mxu0
        %3514 = vmatprep.subr.bf16.mxu0 %v3179
        %3515 = vmatpush1.bf16.msra.mxu0 %v3178
        %3516 = vmatprep.subr.bf16.mxu0 %v3183
        %3517 = vmatpush1.bf16.msra.mxu0 %v3182
        %3518 = vmatprep.subr.bf16.mxu0 %v3187
        %3519 = vmatpush1.bf16.msra.mxu0 %v3186
        %3520 = vmatprep.subr.bf16.mxu0 %v3191
        %3521 = vmatpush1.bf16.msra.mxu0 %v3190
        %3522 = vmatprep.subr.bf16.mxu0 %v3195
        %3523 = vmatpush1.bf16.msra.mxu0 %v3194
        %3524 = vmatprep.subr.bf16.mxu0 %v3199
        %3525 = vmatpush1.bf16.msra.mxu0 %v3198
        %3526 = vmatprep.subr.bf16.mxu0 %v3203
        %3527 = vmatpush1.bf16.msra.mxu0 %v3202
        %3528 = vmatprep.subr.bf16.mxu0 %v3207
        %3529 = vmatpush1.bf16.msra.mxu0 %v3206
        %3530 = vmatprep.subr.bf16.mxu0 %v3211
        %3531 = vmatpush1.bf16.msra.mxu0 %v3210
        %3532 = vmatprep.subr.bf16.mxu0 %v3215
        %3533 = vmatpush1.bf16.msra.mxu0 %v3214
        %3534 = vmatprep.subr.bf16.mxu0 %v3219
        %3535 = vmatpush1.bf16.msra.mxu0 %v3218
        %3536 = vmatprep.subr.bf16.mxu0 %v3223
        %3537 = vmatpush1.bf16.msra.mxu0 %v3222
        %3538 = vmatprep.subr.bf16.mxu0 %v3227
        %3539 = vmatpush1.bf16.msra.mxu0 %v3226
        %3540 = vmatprep.subr.bf16.mxu0 %v3231
        %3541 = vmatpush1.bf16.msra.mxu0 %v3230
        %3542 = vmatprep.subr.bf16.mxu0 %v3235
        %3543 = vmatpush1.bf16.msra.mxu0 %v3234
        %3544 = vmatprep.subr.bf16.mxu0 %v3239
        %3545 = vmatpush1.bf16.msra.mxu0 %v3238
        %3546 = vmatprep.mubr.bf16.mxu0 %v723
        %3547 = vmatmul.mubr.bf16.gmra.mrb[0].mxu0 %v722
        %v3548 = vpop.f32.mrb[0].mxu0
        %v3549 = vadd.f32 %v2783, %v3548
        %v3550 = vpop.f32.mrb[0].mxu0
        %v3551 = vadd.f32 %v2787, %v3550
        %v3552 = vpop.f32.mrb[0].mxu0
        %v3553 = vpop.f32.mrb[0].mxu0
        %3554 = vdwg.mxu0
        %3555 = vmatprep.subr.bf16.mxu0 %v3243
        %3556 = vmatpush1.bf16.msra.mxu0 %v3242
        %3557 = vmatprep.subr.bf16.mxu0 %v3247
        %3558 = vmatpush1.bf16.msra.mxu0 %v3246
        %3559 = vmatprep.subr.bf16.mxu0 %v3251
        %3560 = vmatpush1.bf16.msra.mxu0 %v3250
        %3561 = vmatprep.subr.bf16.mxu0 %v3255
        %3562 = vmatpush1.bf16.msra.mxu0 %v3254
        %3563 = vmatprep.subr.bf16.mxu0 %v3259
        %3564 = vmatpush1.bf16.msra.mxu0 %v3258
        %3565 = vmatprep.subr.bf16.mxu0 %v3263
        %3566 = vmatpush1.bf16.msra.mxu0 %v3262
        %3567 = vmatprep.subr.bf16.mxu0 %v3267
        %3568 = vmatpush1.bf16.msra.mxu0 %v3266
        %3569 = vmatprep.subr.bf16.mxu0 %v3271
        %3570 = vmatpush1.bf16.msra.mxu0 %v3270
        %3571 = vmatprep.subr.bf16.mxu0 %v3275
        %3572 = vmatpush1.bf16.msra.mxu0 %v3274
        %3573 = vmatprep.subr.bf16.mxu0 %v3279
        %3574 = vmatpush1.bf16.msra.mxu0 %v3278
        %3575 = vmatprep.subr.bf16.mxu0 %v3283
        %3576 = vmatpush1.bf16.msra.mxu0 %v3282
        %3577 = vmatprep.subr.bf16.mxu0 %v3287
        %3578 = vmatpush1.bf16.msra.mxu0 %v3286
        %3579 = vmatprep.subr.bf16.mxu0 %v3291
        %3580 = vmatpush1.bf16.msra.mxu0 %v3290
        %3581 = vmatprep.subr.bf16.mxu0 %v3295
        %3582 = vmatpush1.bf16.msra.mxu0 %v3294
        %3583 = vmatprep.subr.bf16.mxu0 %v3299
        %3584 = vmatpush1.bf16.msra.mxu0 %v3298
        %3585 = vmatprep.subr.bf16.mxu0 %v3303
        %3586 = vmatpush1.bf16.msra.mxu0 %v3302
        %3587 = vmatprep.mubr.bf16.mxu0 %v725
        %3588 = vmatmul.mubr.bf16.gmra.mrb[0].mxu0 %v724
        %v3589 = vpop.f32.mrb[0].mxu0
        %v3590 = vadd.f32 %v3549, %v3589
        %v3591 = vpop.f32.mrb[0].mxu0
        %v3592 = vadd.f32 %v3551, %v3591
        %v3593 = vpop.f32.mrb[0].mxu0
        %v3594 = vpop.f32.mrb[0].mxu0
        %3595 = vdwg.mxu0
        %v3596 = vpack.c.bf16 %v3508, %v3508
        %v3597 = vpack.c.bf16 %v3510, %v3510
        %v3598 = vpack.c.bf16 %v3590, %v3590
        %v3599 = vpack.c.bf16 %v3592, %v3592
        %vm3600 = vcmask 523264
        %v3602 = vsel %vm3600, %v1680, 0
        %v3605 = vsel %vm3600, %v2638, 0
        %3607 = vmatprep.subr.bf16.mxu0 0
        %3608 = vmatpush1.bf16.xpose.msra.mxu0 %v3605
        %3609 = vmatprep.subr.bf16.mxu0 0
        %3610 = vmatpush1.bf16.xpose.msra.mxu0 0
        %3611 = vmatprep.subr.bf16.mxu0 0
        %3612 = vmatpush1.bf16.xpose.msra.mxu0 0
        %3613 = vmatprep.subr.bf16.mxu0 0
        %3614 = vmatpush1.bf16.xpose.msra.mxu0 0
        %3615 = vmatprep.subr.bf16.mxu0 0
        %3616 = vmatpush1.bf16.xpose.msra.mxu0 0
        %3617 = vmatprep.subr.bf16.mxu0 0
        %3618 = vmatpush1.bf16.xpose.msra.mxu0 0
        %3619 = vmatprep.subr.bf16.mxu0 0
        %3620 = vmatpush1.bf16.xpose.msra.mxu0 0
        %3621 = vmatprep.subr.bf16.mxu0 0
        %3622 = vmatpush1.bf16.xpose.msra.mxu0 0
        %3623 = vmatprep.subr.bf16.mxu0 0
        %3624 = vmatpush1.bf16.xpose.msra.mxu0 0
        %3625 = vmatprep.subr.bf16.mxu0 0
        %3626 = vmatpush1.bf16.xpose.msra.mxu0 0
        %3627 = vmatprep.subr.bf16.mxu0 0
        %3628 = vmatpush1.bf16.xpose.msra.mxu0 0
        %3629 = vmatprep.subr.bf16.mxu0 0
        %3630 = vmatpush1.bf16.xpose.msra.mxu0 0
        %3631 = vmatprep.subr.bf16.mxu0 0
        %3632 = vmatpush1.bf16.xpose.msra.mxu0 0
        %3633 = vmatprep.subr.bf16.mxu0 0
        %3634 = vmatpush1.bf16.xpose.msra.mxu0 0
        %3635 = vmatprep.subr.bf16.mxu0 0
        %3636 = vmatpush1.bf16.xpose.msra.mxu0 0
        %3637 = vmatprep.subr.bf16.mxu0 0
        %3638 = vmatpush1.bf16.xpose.msra.mxu0 0
        %3639 = vmatprep.mubr.bf16.mxu0 0
        %3640 = vmatmul.mubr.bf16.gmra.mrb[0].mxu0 %v3602
        %v3641 = vpop.f32.mrb[0].mxu0
        %v3642 = vadd.f32 0.0, %v3641
        %v3643 = vpop.f32.mrb[0].mxu0
        %v3644 = vpop.f32.mrb[0].mxu0
        %v3645 = vpop.f32.mrb[0].mxu0
        %3646 = vdwg.mxu0
        %vm3647 = vcmask 64512
        %v3648 = vsel %vm3647, %v3642, -inf
        %3649 = vmax.xlane.f32.xlu0 %v3648
        %v3650 = vpop.xlane.xlu0 %3649
        %v3651 = vsub.f32 %v3642, %v3650
        %v3652 = vmul.f32 %v3651, 1.442695
        %v3653 = vpow.pop %v3652
        %v3654 = vsel %vm3647, %v3653, 0.0
        %3655 = vadd.xlane.f32.xlu0 %v3654
        %v3656 = vpop.xlane.xlu0 %3655
        %v3657 = vrcp.pop %v3656
        %v3658 = vmul.f32 %v3653, %v3657
        %3659 = vst.msk [vmem:[%s700] sm:$0xff] %vm3647, %v3658
        %v3660 = vpack.c.bf16 %v3658, %v3658
        %v3662 = vsel %vm3647, %v3660, 0
        %vm3664 = vcmask 1043456
        %v3666 = vsel %vm3664, %v3596, 0
        %3668 = vmatprep.subr.bf16.mxu0 0
        %3669 = vmatpush1.bf16.msra.mxu0 %v3666
        %3670 = vmatprep.subr.bf16.mxu0 0
        %3671 = vmatpush1.bf16.msra.mxu0 0
        %3672 = vmatprep.subr.bf16.mxu0 0
        %3673 = vmatpush1.bf16.msra.mxu0 0
        %3674 = vmatprep.subr.bf16.mxu0 0
        %3675 = vmatpush1.bf16.msra.mxu0 0
        %3676 = vmatprep.subr.bf16.mxu0 0
        %3677 = vmatpush1.bf16.msra.mxu0 0
        %3678 = vmatprep.subr.bf16.mxu0 0
        %3679 = vmatpush1.bf16.msra.mxu0 0
        %3680 = vmatprep.subr.bf16.mxu0 0
        %3681 = vmatpush1.bf16.msra.mxu0 0
        %3682 = vmatprep.subr.bf16.mxu0 0
        %3683 = vmatpush1.bf16.msra.mxu0 0
        %3684 = vmatprep.subr.bf16.mxu0 0
        %3685 = vmatpush1.bf16.msra.mxu0 0
        %3686 = vmatprep.subr.bf16.mxu0 0
        %3687 = vmatpush1.bf16.msra.mxu0 0
        %3688 = vmatprep.subr.bf16.mxu0 0
        %3689 = vmatpush1.bf16.msra.mxu0 0
        %3690 = vmatprep.subr.bf16.mxu0 0
        %3691 = vmatpush1.bf16.msra.mxu0 0
        %3692 = vmatprep.subr.bf16.mxu0 0
        %3693 = vmatpush1.bf16.msra.mxu0 0
        %3694 = vmatprep.subr.bf16.mxu0 0
        %3695 = vmatpush1.bf16.msra.mxu0 0
        %3696 = vmatprep.subr.bf16.mxu0 0
        %3697 = vmatpush1.bf16.msra.mxu0 0
        %3698 = vmatprep.subr.bf16.mxu0 0
        %3699 = vmatpush1.bf16.msra.mxu0 0
        %3700 = vmatprep.mubr.bf16.mxu0 0
        %3701 = vmatmul.mubr.bf16.gmra.mrb[0].mxu0 %v3662
        %v3702 = vpop.f32.mrb[0].mxu0
        %v3703 = vadd.f32 0.0, %v3702
        %v3704 = vpop.f32.mrb[0].mxu0
        %v3705 = vpop.f32.mrb[0].mxu0
        %v3706 = vpop.f32.mrb[0].mxu0
        %3707 = vdwg.mxu0
        %v3708 = vpack.c.bf16 %v3703, %v3703
        %vm3709 = vcmask 519168
        %3710 = vst.msk [vmem:[#allocation2] sm:$0xf] %vm3709, %v3708
        %3712 = vrot.lane.b32.xlu0 %v1680, 64
        %v3713 = vpop.permute.xlu0 %3712
        %3715 = vrot.lane.b32.xlu0 %v2638, 64
        %v3716 = vpop.permute.xlu0 %3715
        %v3718 = vsel %vm3600, %v3713, 0
        %v3721 = vsel %vm3600, %v3716, 0
        %3723 = vmatprep.subr.bf16.mxu0 0
        %3724 = vmatpush1.bf16.xpose.msra.mxu0 %v3721
        %3725 = vmatprep.subr.bf16.mxu0 0
        %3726 = vmatpush1.bf16.xpose.msra.mxu0 0
        %3727 = vmatprep.subr.bf16.mxu0 0
        %3728 = vmatpush1.bf16.xpose.msra.mxu0 0
        %3729 = vmatprep.subr.bf16.mxu0 0
        %3730 = vmatpush1.bf16.xpose.msra.mxu0 0
        %3731 = vmatprep.subr.bf16.mxu0 0
        %3732 = vmatpush1.bf16.xpose.msra.mxu0 0
        %3733 = vmatprep.subr.bf16.mxu0 0
        %3734 = vmatpush1.bf16.xpose.msra.mxu0 0
        %3735 = vmatprep.subr.bf16.mxu0 0
        %3736 = vmatpush1.bf16.xpose.msra.mxu0 0
        %3737 = vmatprep.subr.bf16.mxu0 0
        %3738 = vmatpush1.bf16.xpose.msra.mxu0 0
        %3739 = vmatprep.subr.bf16.mxu0 0
        %3740 = vmatpush1.bf16.xpose.msra.mxu0 0
        %3741 = vmatprep.subr.bf16.mxu0 0
        %3742 = vmatpush1.bf16.xpose.msra.mxu0 0
        %3743 = vmatprep.subr.bf16.mxu0 0
        %3744 = vmatpush1.bf16.xpose.msra.mxu0 0
        %3745 = vmatprep.subr.bf16.mxu0 0
        %3746 = vmatpush1.bf16.xpose.msra.mxu0 0
        %3747 = vmatprep.subr.bf16.mxu0 0
        %3748 = vmatpush1.bf16.xpose.msra.mxu0 0
        %3749 = vmatprep.subr.bf16.mxu0 0
        %3750 = vmatpush1.bf16.xpose.msra.mxu0 0
        %3751 = vmatprep.subr.bf16.mxu0 0
        %3752 = vmatpush1.bf16.xpose.msra.mxu0 0
        %3753 = vmatprep.subr.bf16.mxu0 0
        %3754 = vmatpush1.bf16.xpose.msra.mxu0 0
        %3755 = vmatprep.mubr.bf16.mxu0 0
        %3756 = vmatmul.mubr.bf16.gmra.mrb[0].mxu0 %v3718
        %v3757 = vpop.f32.mrb[0].mxu0
        %v3758 = vadd.f32 0.0, %v3757
        %v3759 = vpop.f32.mrb[0].mxu0
        %v3760 = vpop.f32.mrb[0].mxu0
        %v3761 = vpop.f32.mrb[0].mxu0
        %3762 = vdwg.mxu0
        %v3763 = vsel %vm3647, %v3758, -inf
        %3764 = vmax.xlane.f32.xlu0 %v3763
        %v3765 = vpop.xlane.xlu0 %3764
        %v3766 = vsub.f32 %v3758, %v3765
        %v3767 = vmul.f32 %v3766, 1.442695
        %v3768 = vpow.pop %v3767
        %v3769 = vsel %vm3647, %v3768, 0.0
        %3770 = vadd.xlane.f32.xlu0 %v3769
        %v3771 = vpop.xlane.xlu0 %3770
        %v3772 = vrcp.pop %v3771
        %v3773 = vmul.f32 %v3768, %v3772
        %s3774 = scalar_lea.vmem %s700, 8 [#allocation25]
        %3775 = vst.msk [vmem:[%s3774] sm:$0xff] %vm3647, %v3773
        %v3776 = vpack.c.bf16 %v3773, %v3773
        %3778 = vrot.lane.b32.xlu0 %v3596, 64
        %v3779 = vpop.permute.xlu0 %3778
        %v3781 = vsel %vm3647, %v3776, 0
        %v3784 = vsel %vm3664, %v3779, 0
        %3786 = vmatprep.subr.bf16.mxu0 0
        %3787 = vmatpush1.bf16.msra.mxu0 %v3784
        %3788 = vmatprep.subr.bf16.mxu0 0
        %3789 = vmatpush1.bf16.msra.mxu0 0
        %3790 = vmatprep.subr.bf16.mxu0 0
        %3791 = vmatpush1.bf16.msra.mxu0 0
        %3792 = vmatprep.subr.bf16.mxu0 0
        %3793 = vmatpush1.bf16.msra.mxu0 0
        %3794 = vmatprep.subr.bf16.mxu0 0
        %3795 = vmatpush1.bf16.msra.mxu0 0
        %3796 = vmatprep.subr.bf16.mxu0 0
        %3797 = vmatpush1.bf16.msra.mxu0 0
        %3798 = vmatprep.subr.bf16.mxu0 0
        %3799 = vmatpush1.bf16.msra.mxu0 0
        %3800 = vmatprep.subr.bf16.mxu0 0
        %3801 = vmatpush1.bf16.msra.mxu0 0
        %3802 = vmatprep.subr.bf16.mxu0 0
        %3803 = vmatpush1.bf16.msra.mxu0 0
        %3804 = vmatprep.subr.bf16.mxu0 0
        %3805 = vmatpush1.bf16.msra.mxu0 0
        %3806 = vmatprep.subr.bf16.mxu0 0
        %3807 = vmatpush1.bf16.msra.mxu0 0
        %3808 = vmatprep.subr.bf16.mxu0 0
        %3809 = vmatpush1.bf16.msra.mxu0 0
        %3810 = vmatprep.subr.bf16.mxu0 0
        %3811 = vmatpush1.bf16.msra.mxu0 0
        %3812 = vmatprep.subr.bf16.mxu0 0
        %3813 = vmatpush1.bf16.msra.mxu0 0
        %3814 = vmatprep.subr.bf16.mxu0 0
        %3815 = vmatpush1.bf16.msra.mxu0 0
        %3816 = vmatprep.subr.bf16.mxu0 0
        %3817 = vmatpush1.bf16.msra.mxu0 0
        %3818 = vmatprep.mubr.bf16.mxu0 0
        %3819 = vmatmul.mubr.bf16.gmra.mrb[0].mxu0 %v3781
        %v3820 = vpop.f32.mrb[0].mxu0
        %v3821 = vadd.f32 0.0, %v3820
        %v3822 = vpop.f32.mrb[0].mxu0
        %v3823 = vpop.f32.mrb[0].mxu0
        %v3824 = vpop.f32.mrb[0].mxu0
        %3825 = vdwg.mxu0
        %v3826 = vpack.c.bf16 %v3821, %v3821
        %v3828 = vunpack.c.l.b16 %v3826
        %v3829 = vpack.c.b16 %v3828, %v3828
        %3830 = vrot.lane.b32.xlu0 %v3829, 64
        %v3831 = vpop.permute.xlu0 %3830
        %vm3833 = vcmask 1043968
        %3834 = vst.msk [vmem:[#allocation2] sm:$0xf] %vm3833, %v3831
        %v3836 = vsel %vm3600, %v1681, 0
        %v3839 = vsel %vm3600, %v2639, 0
        %3841 = vmatprep.subr.bf16.mxu0 0
        %3842 = vmatpush1.bf16.xpose.msra.mxu0 %v3839
        %3843 = vmatprep.subr.bf16.mxu0 0
        %3844 = vmatpush1.bf16.xpose.msra.mxu0 0
        %3845 = vmatprep.subr.bf16.mxu0 0
        %3846 = vmatpush1.bf16.xpose.msra.mxu0 0
        %3847 = vmatprep.subr.bf16.mxu0 0
        %3848 = vmatpush1.bf16.xpose.msra.mxu0 0
        %3849 = vmatprep.subr.bf16.mxu0 0
        %3850 = vmatpush1.bf16.xpose.msra.mxu0 0
        %3851 = vmatprep.subr.bf16.mxu0 0
        %3852 = vmatpush1.bf16.xpose.msra.mxu0 0
        %3853 = vmatprep.subr.bf16.mxu0 0
        %3854 = vmatpush1.bf16.xpose.msra.mxu0 0
        %3855 = vmatprep.subr.bf16.mxu0 0
        %3856 = vmatpush1.bf16.xpose.msra.mxu0 0
        %3857 = vmatprep.subr.bf16.mxu0 0
        %3858 = vmatpush1.bf16.xpose.msra.mxu0 0
        %3859 = vmatprep.subr.bf16.mxu0 0
        %3860 = vmatpush1.bf16.xpose.msra.mxu0 0
        %3861 = vmatprep.subr.bf16.mxu0 0
        %3862 = vmatpush1.bf16.xpose.msra.mxu0 0
        %3863 = vmatprep.subr.bf16.mxu0 0
        %3864 = vmatpush1.bf16.xpose.msra.mxu0 0
        %3865 = vmatprep.subr.bf16.mxu0 0
        %3866 = vmatpush1.bf16.xpose.msra.mxu0 0
        %3867 = vmatprep.subr.bf16.mxu0 0
        %3868 = vmatpush1.bf16.xpose.msra.mxu0 0
        %3869 = vmatprep.subr.bf16.mxu0 0
        %3870 = vmatpush1.bf16.xpose.msra.mxu0 0
        %3871 = vmatprep.subr.bf16.mxu0 0
        %3872 = vmatpush1.bf16.xpose.msra.mxu0 0
        %3873 = vmatprep.mubr.bf16.mxu0 0
        %3874 = vmatmul.mubr.bf16.gmra.mrb[0].mxu0 %v3836
        %v3875 = vpop.f32.mrb[0].mxu0
        %v3876 = vadd.f32 0.0, %v3875
        %v3877 = vpop.f32.mrb[0].mxu0
        %v3878 = vpop.f32.mrb[0].mxu0
        %v3879 = vpop.f32.mrb[0].mxu0
        %3880 = vdwg.mxu0
        %v3881 = vsel %vm3647, %v3876, -inf
        %3882 = vmax.xlane.f32.xlu0 %v3881
        %v3883 = vpop.xlane.xlu0 %3882
        %v3884 = vsub.f32 %v3876, %v3883
        %v3885 = vmul.f32 %v3884, 1.442695
        %v3886 = vpow.pop %v3885
        %v3887 = vsel %vm3647, %v3886, 0.0
        %3888 = vadd.xlane.f32.xlu0 %v3887
        %v3889 = vpop.xlane.xlu0 %3888
        %v3890 = vrcp.pop %v3889
        %v3891 = vmul.f32 %v3886, %v3890
        %s3892 = scalar_lea.vmem %s700, 16 [#allocation25]
        %3893 = vst.msk [vmem:[%s3892] sm:$0xff] %vm3647, %v3891
        %v3894 = vpack.c.bf16 %v3891, %v3891
        %v3896 = vsel %vm3647, %v3894, 0
        %v3899 = vsel %vm3664, %v3597, 0
        %3901 = vmatprep.subr.bf16.mxu0 0
        %3902 = vmatpush1.bf16.msra.mxu0 %v3899
        %3903 = vmatprep.subr.bf16.mxu0 0
        %3904 = vmatpush1.bf16.msra.mxu0 0
        %3905 = vmatprep.subr.bf16.mxu0 0
        %3906 = vmatpush1.bf16.msra.mxu0 0
        %3907 = vmatprep.subr.bf16.mxu0 0
        %3908 = vmatpush1.bf16.msra.mxu0 0
        %3909 = vmatprep.subr.bf16.mxu0 0
        %3910 = vmatpush1.bf16.msra.mxu0 0
        %3911 = vmatprep.subr.bf16.mxu0 0
        %3912 = vmatpush1.bf16.msra.mxu0 0
        %3913 = vmatprep.subr.bf16.mxu0 0
        %3914 = vmatpush1.bf16.msra.mxu0 0
        %3915 = vmatprep.subr.bf16.mxu0 0
        %3916 = vmatpush1.bf16.msra.mxu0 0
        %3917 = vmatprep.subr.bf16.mxu0 0
        %3918 = vmatpush1.bf16.msra.mxu0 0
        %3919 = vmatprep.subr.bf16.mxu0 0
        %3920 = vmatpush1.bf16.msra.mxu0 0
        %3921 = vmatprep.subr.bf16.mxu0 0
        %3922 = vmatpush1.bf16.msra.mxu0 0
        %3923 = vmatprep.subr.bf16.mxu0 0
        %3924 = vmatpush1.bf16.msra.mxu0 0
        %3925 = vmatprep.subr.bf16.mxu0 0
        %3926 = vmatpush1.bf16.msra.mxu0 0
        %3927 = vmatprep.subr.bf16.mxu0 0
        %3928 = vmatpush1.bf16.msra.mxu0 0
        %3929 = vmatprep.subr.bf16.mxu0 0
        %3930 = vmatpush1.bf16.msra.mxu0 0
        %3931 = vmatprep.subr.bf16.mxu0 0
        %3932 = vmatpush1.bf16.msra.mxu0 0
        %3933 = vmatprep.mubr.bf16.mxu0 0
        %3934 = vmatmul.mubr.bf16.gmra.mrb[0].mxu0 %v3896
        %v3935 = vpop.f32.mrb[0].mxu0
        %v3936 = vadd.f32 0.0, %v3935
        %v3937 = vpop.f32.mrb[0].mxu0
        %v3938 = vpop.f32.mrb[0].mxu0
        %v3939 = vpop.f32.mrb[0].mxu0
        %3940 = vdwg.mxu0
        %v3941 = vpack.c.bf16 %v3936, %v3936
        %3942 = vst.msk [vmem:[#allocation2 + $0x4] sm:$0xf] %vm3709, %v3941
        %3944 = vrot.lane.b32.xlu0 %v1681, 64
        %v3945 = vpop.permute.xlu0 %3944
        %3947 = vrot.lane.b32.xlu0 %v2639, 64
        %v3948 = vpop.permute.xlu0 %3947
        %v3950 = vsel %vm3600, %v3945, 0
        %v3953 = vsel %vm3600, %v3948, 0
        %3955 = vmatprep.subr.bf16.mxu0 0
        %3956 = vmatpush1.bf16.xpose.msra.mxu0 %v3953
        %3957 = vmatprep.subr.bf16.mxu0 0
        %3958 = vmatpush1.bf16.xpose.msra.mxu0 0
        %3959 = vmatprep.subr.bf16.mxu0 0
        %3960 = vmatpush1.bf16.xpose.msra.mxu0 0
        %3961 = vmatprep.subr.bf16.mxu0 0
        %3962 = vmatpush1.bf16.xpose.msra.mxu0 0
        %3963 = vmatprep.subr.bf16.mxu0 0
        %3964 = vmatpush1.bf16.xpose.msra.mxu0 0
        %3965 = vmatprep.subr.bf16.mxu0 0
        %3966 = vmatpush1.bf16.xpose.msra.mxu0 0
        %3967 = vmatprep.subr.bf16.mxu0 0
        %3968 = vmatpush1.bf16.xpose.msra.mxu0 0
        %3969 = vmatprep.subr.bf16.mxu0 0
        %3970 = vmatpush1.bf16.xpose.msra.mxu0 0
        %3971 = vmatprep.subr.bf16.mxu0 0
        %3972 = vmatpush1.bf16.xpose.msra.mxu0 0
        %3973 = vmatprep.subr.bf16.mxu0 0
        %3974 = vmatpush1.bf16.xpose.msra.mxu0 0
        %3975 = vmatprep.subr.bf16.mxu0 0
        %3976 = vmatpush1.bf16.xpose.msra.mxu0 0
        %3977 = vmatprep.subr.bf16.mxu0 0
        %3978 = vmatpush1.bf16.xpose.msra.mxu0 0
        %3979 = vmatprep.subr.bf16.mxu0 0
        %3980 = vmatpush1.bf16.xpose.msra.mxu0 0
        %3981 = vmatprep.subr.bf16.mxu0 0
        %3982 = vmatpush1.bf16.xpose.msra.mxu0 0
        %3983 = vmatprep.subr.bf16.mxu0 0
        %3984 = vmatpush1.bf16.xpose.msra.mxu0 0
        %3985 = vmatprep.subr.bf16.mxu0 0
        %3986 = vmatpush1.bf16.xpose.msra.mxu0 0
        %3987 = vmatprep.mubr.bf16.mxu0 0
        %3988 = vmatmul.mubr.bf16.gmra.mrb[0].mxu0 %v3950
        %v3989 = vpop.f32.mrb[0].mxu0
        %v3990 = vadd.f32 0.0, %v3989
        %v3991 = vpop.f32.mrb[0].mxu0
        %v3992 = vpop.f32.mrb[0].mxu0
        %v3993 = vpop.f32.mrb[0].mxu0
        %3994 = vdwg.mxu0
        %v3995 = vsel %vm3647, %v3990, -inf
        %3996 = vmax.xlane.f32.xlu0 %v3995
        %v3997 = vpop.xlane.xlu0 %3996
        %v3998 = vsub.f32 %v3990, %v3997
        %v3999 = vmul.f32 %v3998, 1.442695
        %v4000 = vpow.pop %v3999
        %v4001 = vsel %vm3647, %v4000, 0.0
        %4002 = vadd.xlane.f32.xlu0 %v4001
        %v4003 = vpop.xlane.xlu0 %4002
        %v4004 = vrcp.pop %v4003
        %v4005 = vmul.f32 %v4000, %v4004
        %s4006 = scalar_lea.vmem %s700, 24 [#allocation25]
        %4007 = vst.msk [vmem:[%s4006] sm:$0xff] %vm3647, %v4005
        %v4008 = vpack.c.bf16 %v4005, %v4005
        %4010 = vrot.lane.b32.xlu0 %v3597, 64
        %v4011 = vpop.permute.xlu0 %4010
        %v4013 = vsel %vm3647, %v4008, 0
        %v4016 = vsel %vm3664, %v4011, 0
        %4018 = vmatprep.subr.bf16.mxu0 0
        %4019 = vmatpush1.bf16.msra.mxu0 %v4016
        %4020 = vmatprep.subr.bf16.mxu0 0
        %4021 = vmatpush1.bf16.msra.mxu0 0
        %4022 = vmatprep.subr.bf16.mxu0 0
        %4023 = vmatpush1.bf16.msra.mxu0 0
        %4024 = vmatprep.subr.bf16.mxu0 0
        %4025 = vmatpush1.bf16.msra.mxu0 0
        %4026 = vmatprep.subr.bf16.mxu0 0
        %4027 = vmatpush1.bf16.msra.mxu0 0
        %4028 = vmatprep.subr.bf16.mxu0 0
        %4029 = vmatpush1.bf16.msra.mxu0 0
        %4030 = vmatprep.subr.bf16.mxu0 0
        %4031 = vmatpush1.bf16.msra.mxu0 0
        %4032 = vmatprep.subr.bf16.mxu0 0
        %4033 = vmatpush1.bf16.msra.mxu0 0
        %4034 = vmatprep.subr.bf16.mxu0 0
        %4035 = vmatpush1.bf16.msra.mxu0 0
        %4036 = vmatprep.subr.bf16.mxu0 0
        %4037 = vmatpush1.bf16.msra.mxu0 0
        %4038 = vmatprep.subr.bf16.mxu0 0
        %4039 = vmatpush1.bf16.msra.mxu0 0
        %4040 = vmatprep.subr.bf16.mxu0 0
        %4041 = vmatpush1.bf16.msra.mxu0 0
        %4042 = vmatprep.subr.bf16.mxu0 0
        %4043 = vmatpush1.bf16.msra.mxu0 0
        %4044 = vmatprep.subr.bf16.mxu0 0
        %4045 = vmatpush1.bf16.msra.mxu0 0
        %4046 = vmatprep.subr.bf16.mxu0 0
        %4047 = vmatpush1.bf16.msra.mxu0 0
        %4048 = vmatprep.subr.bf16.mxu0 0
        %4049 = vmatpush1.bf16.msra.mxu0 0
        %4050 = vmatprep.mubr.bf16.mxu0 0
        %4051 = vmatmul.mubr.bf16.gmra.mrb[0].mxu0 %v4013
        %v4052 = vpop.f32.mrb[0].mxu0
        %v4053 = vadd.f32 0.0, %v4052
        %v4054 = vpop.f32.mrb[0].mxu0
        %v4055 = vpop.f32.mrb[0].mxu0
        %v4056 = vpop.f32.mrb[0].mxu0
        %4057 = vdwg.mxu0
        %v4058 = vpack.c.bf16 %v4053, %v4053
        %v4060 = vunpack.c.l.b16 %v4058
        %v4061 = vpack.c.b16 %v4060, %v4060
        %4062 = vrot.lane.b32.xlu0 %v4061, 64
        %v4063 = vpop.permute.xlu0 %4062
        %4065 = vst.msk [vmem:[#allocation2 + $0x4] sm:$0xf] %vm3833, %v4063
        %v4067 = vsel %vm3600, %v1682, 0
        %v4070 = vsel %vm3600, %v2640, 0
        %4072 = vmatprep.subr.bf16.mxu0 0
        %4073 = vmatpush1.bf16.xpose.msra.mxu0 %v4070
        %4074 = vmatprep.subr.bf16.mxu0 0
        %4075 = vmatpush1.bf16.xpose.msra.mxu0 0
        %4076 = vmatprep.subr.bf16.mxu0 0
        %4077 = vmatpush1.bf16.xpose.msra.mxu0 0
        %4078 = vmatprep.subr.bf16.mxu0 0
        %4079 = vmatpush1.bf16.xpose.msra.mxu0 0
        %4080 = vmatprep.subr.bf16.mxu0 0
        %4081 = vmatpush1.bf16.xpose.msra.mxu0 0
        %4082 = vmatprep.subr.bf16.mxu0 0
        %4083 = vmatpush1.bf16.xpose.msra.mxu0 0
        %4084 = vmatprep.subr.bf16.mxu0 0
        %4085 = vmatpush1.bf16.xpose.msra.mxu0 0
        %4086 = vmatprep.subr.bf16.mxu0 0
        %4087 = vmatpush1.bf16.xpose.msra.mxu0 0
        %4088 = vmatprep.subr.bf16.mxu0 0
        %4089 = vmatpush1.bf16.xpose.msra.mxu0 0
        %4090 = vmatprep.subr.bf16.mxu0 0
        %4091 = vmatpush1.bf16.xpose.msra.mxu0 0
        %4092 = vmatprep.subr.bf16.mxu0 0
        %4093 = vmatpush1.bf16.xpose.msra.mxu0 0
        %4094 = vmatprep.subr.bf16.mxu0 0
        %4095 = vmatpush1.bf16.xpose.msra.mxu0 0
        %4096 = vmatprep.subr.bf16.mxu0 0
        %4097 = vmatpush1.bf16.xpose.msra.mxu0 0
        %4098 = vmatprep.subr.bf16.mxu0 0
        %4099 = vmatpush1.bf16.xpose.msra.mxu0 0
        %4100 = vmatprep.subr.bf16.mxu0 0
        %4101 = vmatpush1.bf16.xpose.msra.mxu0 0
        %4102 = vmatprep.subr.bf16.mxu0 0
        %4103 = vmatpush1.bf16.xpose.msra.mxu0 0
        %4104 = vmatprep.mubr.bf16.mxu0 0
        %4105 = vmatmul.mubr.bf16.gmra.mrb[0].mxu0 %v4067
        %v4106 = vpop.f32.mrb[0].mxu0
        %v4107 = vadd.f32 0.0, %v4106
        %v4108 = vpop.f32.mrb[0].mxu0
        %v4109 = vpop.f32.mrb[0].mxu0
        %v4110 = vpop.f32.mrb[0].mxu0
        %4111 = vdwg.mxu0
        %v4112 = vsel %vm3647, %v4107, -inf
        %4113 = vmax.xlane.f32.xlu0 %v4112
        %v4114 = vpop.xlane.xlu0 %4113
        %v4115 = vsub.f32 %v4107, %v4114
        %v4116 = vmul.f32 %v4115, 1.442695
        %v4117 = vpow.pop %v4116
        %v4118 = vsel %vm3647, %v4117, 0.0
        %4119 = vadd.xlane.f32.xlu0 %v4118
        %v4120 = vpop.xlane.xlu0 %4119
        %v4121 = vrcp.pop %v4120
        %v4122 = vmul.f32 %v4117, %v4121
        %s4123 = scalar_lea.vmem %s700, 32 [#allocation25]
        %4124 = vst.msk [vmem:[%s4123] sm:$0xff] %vm3647, %v4122
        %v4125 = vpack.c.bf16 %v4122, %v4122
        %v4127 = vsel %vm3647, %v4125, 0
        %v4130 = vsel %vm3664, %v3598, 0
        %4132 = vmatprep.subr.bf16.mxu0 0
        %4133 = vmatpush1.bf16.msra.mxu0 %v4130
        %4134 = vmatprep.subr.bf16.mxu0 0
        %4135 = vmatpush1.bf16.msra.mxu0 0
        %4136 = vmatprep.subr.bf16.mxu0 0
        %4137 = vmatpush1.bf16.msra.mxu0 0
        %4138 = vmatprep.subr.bf16.mxu0 0
        %4139 = vmatpush1.bf16.msra.mxu0 0
        %4140 = vmatprep.subr.bf16.mxu0 0
        %4141 = vmatpush1.bf16.msra.mxu0 0
        %4142 = vmatprep.subr.bf16.mxu0 0
        %4143 = vmatpush1.bf16.msra.mxu0 0
        %4144 = vmatprep.subr.bf16.mxu0 0
        %4145 = vmatpush1.bf16.msra.mxu0 0
        %4146 = vmatprep.subr.bf16.mxu0 0
        %4147 = vmatpush1.bf16.msra.mxu0 0
        %4148 = vmatprep.subr.bf16.mxu0 0
        %4149 = vmatpush1.bf16.msra.mxu0 0
        %4150 = vmatprep.subr.bf16.mxu0 0
        %4151 = vmatpush1.bf16.msra.mxu0 0
        %4152 = vmatprep.subr.bf16.mxu0 0
        %4153 = vmatpush1.bf16.msra.mxu0 0
        %4154 = vmatprep.subr.bf16.mxu0 0
        %4155 = vmatpush1.bf16.msra.mxu0 0
        %4156 = vmatprep.subr.bf16.mxu0 0
        %4157 = vmatpush1.bf16.msra.mxu0 0
        %4158 = vmatprep.subr.bf16.mxu0 0
        %4159 = vmatpush1.bf16.msra.mxu0 0
        %4160 = vmatprep.subr.bf16.mxu0 0
        %4161 = vmatpush1.bf16.msra.mxu0 0
        %4162 = vmatprep.subr.bf16.mxu0 0
        %4163 = vmatpush1.bf16.msra.mxu0 0
        %4164 = vmatprep.mubr.bf16.mxu0 0
        %4165 = vmatmul.mubr.bf16.gmra.mrb[0].mxu0 %v4127
        %v4166 = vpop.f32.mrb[0].mxu0
        %v4167 = vadd.f32 0.0, %v4166
        %v4168 = vpop.f32.mrb[0].mxu0
        %v4169 = vpop.f32.mrb[0].mxu0
        %v4170 = vpop.f32.mrb[0].mxu0
        %4171 = vdwg.mxu0
        %v4172 = vpack.c.bf16 %v4167, %v4167
        %4173 = vst.msk [vmem:[#allocation2 + $0x8] sm:$0xf] %vm3709, %v4172
        %4175 = vrot.lane.b32.xlu0 %v1682, 64
        %v4176 = vpop.permute.xlu0 %4175
        %4178 = vrot.lane.b32.xlu0 %v2640, 64
        %v4179 = vpop.permute.xlu0 %4178
        %v4181 = vsel %vm3600, %v4176, 0
        %v4184 = vsel %vm3600, %v4179, 0
        %4186 = vmatprep.subr.bf16.mxu0 0
        %4187 = vmatpush1.bf16.xpose.msra.mxu0 %v4184
        %4188 = vmatprep.subr.bf16.mxu0 0
        %4189 = vmatpush1.bf16.xpose.msra.mxu0 0
        %4190 = vmatprep.subr.bf16.mxu0 0
        %4191 = vmatpush1.bf16.xpose.msra.mxu0 0
        %4192 = vmatprep.subr.bf16.mxu0 0
        %4193 = vmatpush1.bf16.xpose.msra.mxu0 0
        %4194 = vmatprep.subr.bf16.mxu0 0
        %4195 = vmatpush1.bf16.xpose.msra.mxu0 0
        %4196 = vmatprep.subr.bf16.mxu0 0
        %4197 = vmatpush1.bf16.xpose.msra.mxu0 0
        %4198 = vmatprep.subr.bf16.mxu0 0
        %4199 = vmatpush1.bf16.xpose.msra.mxu0 0
        %4200 = vmatprep.subr.bf16.mxu0 0
        %4201 = vmatpush1.bf16.xpose.msra.mxu0 0
        %4202 = vmatprep.subr.bf16.mxu0 0
        %4203 = vmatpush1.bf16.xpose.msra.mxu0 0
        %4204 = vmatprep.subr.bf16.mxu0 0
        %4205 = vmatpush1.bf16.xpose.msra.mxu0 0
        %4206 = vmatprep.subr.bf16.mxu0 0
        %4207 = vmatpush1.bf16.xpose.msra.mxu0 0
        %4208 = vmatprep.subr.bf16.mxu0 0
        %4209 = vmatpush1.bf16.xpose.msra.mxu0 0
        %4210 = vmatprep.subr.bf16.mxu0 0
        %4211 = vmatpush1.bf16.xpose.msra.mxu0 0
        %4212 = vmatprep.subr.bf16.mxu0 0
        %4213 = vmatpush1.bf16.xpose.msra.mxu0 0
        %4214 = vmatprep.subr.bf16.mxu0 0
        %4215 = vmatpush1.bf16.xpose.msra.mxu0 0
        %4216 = vmatprep.subr.bf16.mxu0 0
        %4217 = vmatpush1.bf16.xpose.msra.mxu0 0
        %4218 = vmatprep.mubr.bf16.mxu0 0
        %4219 = vmatmul.mubr.bf16.gmra.mrb[0].mxu0 %v4181
        %v4220 = vpop.f32.mrb[0].mxu0
        %v4221 = vadd.f32 0.0, %v4220
        %v4222 = vpop.f32.mrb[0].mxu0
        %v4223 = vpop.f32.mrb[0].mxu0
        %v4224 = vpop.f32.mrb[0].mxu0
        %4225 = vdwg.mxu0
        %v4226 = vsel %vm3647, %v4221, -inf
        %4227 = vmax.xlane.f32.xlu0 %v4226
        %v4228 = vpop.xlane.xlu0 %4227
        %v4229 = vsub.f32 %v4221, %v4228
        %v4230 = vmul.f32 %v4229, 1.442695
        %v4231 = vpow.pop %v4230
        %v4232 = vsel %vm3647, %v4231, 0.0
        %4233 = vadd.xlane.f32.xlu0 %v4232
        %v4234 = vpop.xlane.xlu0 %4233
        %v4235 = vrcp.pop %v4234
        %v4236 = vmul.f32 %v4231, %v4235
        %s4237 = scalar_lea.vmem %s700, 40 [#allocation25]
        %4238 = vst.msk [vmem:[%s4237] sm:$0xff] %vm3647, %v4236
        %v4239 = vpack.c.bf16 %v4236, %v4236
        %4241 = vrot.lane.b32.xlu0 %v3598, 64
        %v4242 = vpop.permute.xlu0 %4241
        %v4244 = vsel %vm3647, %v4239, 0
        %v4247 = vsel %vm3664, %v4242, 0
        %4249 = vmatprep.subr.bf16.mxu0 0
        %4250 = vmatpush1.bf16.msra.mxu0 %v4247
        %4251 = vmatprep.subr.bf16.mxu0 0
        %4252 = vmatpush1.bf16.msra.mxu0 0
        %4253 = vmatprep.subr.bf16.mxu0 0
        %4254 = vmatpush1.bf16.msra.mxu0 0
        %4255 = vmatprep.subr.bf16.mxu0 0
        %4256 = vmatpush1.bf16.msra.mxu0 0
        %4257 = vmatprep.subr.bf16.mxu0 0
        %4258 = vmatpush1.bf16.msra.mxu0 0
        %4259 = vmatprep.subr.bf16.mxu0 0
        %4260 = vmatpush1.bf16.msra.mxu0 0
        %4261 = vmatprep.subr.bf16.mxu0 0
        %4262 = vmatpush1.bf16.msra.mxu0 0
        %4263 = vmatprep.subr.bf16.mxu0 0
        %4264 = vmatpush1.bf16.msra.mxu0 0
        %4265 = vmatprep.subr.bf16.mxu0 0
        %4266 = vmatpush1.bf16.msra.mxu0 0
        %4267 = vmatprep.subr.bf16.mxu0 0
        %4268 = vmatpush1.bf16.msra.mxu0 0
        %4269 = vmatprep.subr.bf16.mxu0 0
        %4270 = vmatpush1.bf16.msra.mxu0 0
        %4271 = vmatprep.subr.bf16.mxu0 0
        %4272 = vmatpush1.bf16.msra.mxu0 0
        %4273 = vmatprep.subr.bf16.mxu0 0
        %4274 = vmatpush1.bf16.msra.mxu0 0
        %4275 = vmatprep.subr.bf16.mxu0 0
        %4276 = vmatpush1.bf16.msra.mxu0 0
        %4277 = vmatprep.subr.bf16.mxu0 0
        %4278 = vmatpush1.bf16.msra.mxu0 0
        %4279 = vmatprep.subr.bf16.mxu0 0
        %4280 = vmatpush1.bf16.msra.mxu0 0
        %4281 = vmatprep.mubr.bf16.mxu0 0
        %4282 = vmatmul.mubr.bf16.gmra.mrb[0].mxu0 %v4244
        %v4283 = vpop.f32.mrb[0].mxu0
        %v4284 = vadd.f32 0.0, %v4283
        %v4285 = vpop.f32.mrb[0].mxu0
        %v4286 = vpop.f32.mrb[0].mxu0
        %v4287 = vpop.f32.mrb[0].mxu0
        %4288 = vdwg.mxu0
        %v4289 = vpack.c.bf16 %v4284, %v4284
        %v4291 = vunpack.c.l.b16 %v4289
        %v4292 = vpack.c.b16 %v4291, %v4291
        %4293 = vrot.lane.b32.xlu0 %v4292, 64
        %v4294 = vpop.permute.xlu0 %4293
        %4296 = vst.msk [vmem:[#allocation2 + $0x8] sm:$0xf] %vm3833, %v4294
        %v4298 = vsel %vm3600, %v1683, 0
        %v4301 = vsel %vm3600, %v2641, 0
        %4303 = vmatprep.subr.bf16.mxu0 0
        %4304 = vmatpush1.bf16.xpose.msra.mxu0 %v4301
        %4305 = vmatprep.subr.bf16.mxu0 0
        %4306 = vmatpush1.bf16.xpose.msra.mxu0 0
        %4307 = vmatprep.subr.bf16.mxu0 0
        %4308 = vmatpush1.bf16.xpose.msra.mxu0 0
        %4309 = vmatprep.subr.bf16.mxu0 0
        %4310 = vmatpush1.bf16.xpose.msra.mxu0 0
        %4311 = vmatprep.subr.bf16.mxu0 0
        %4312 = vmatpush1.bf16.xpose.msra.mxu0 0
        %4313 = vmatprep.subr.bf16.mxu0 0
        %4314 = vmatpush1.bf16.xpose.msra.mxu0 0
        %4315 = vmatprep.subr.bf16.mxu0 0
        %4316 = vmatpush1.bf16.xpose.msra.mxu0 0
        %4317 = vmatprep.subr.bf16.mxu0 0
        %4318 = vmatpush1.bf16.xpose.msra.mxu0 0
        %4319 = vmatprep.subr.bf16.mxu0 0
        %4320 = vmatpush1.bf16.xpose.msra.mxu0 0
        %4321 = vmatprep.subr.bf16.mxu0 0
        %4322 = vmatpush1.bf16.xpose.msra.mxu0 0
        %4323 = vmatprep.subr.bf16.mxu0 0
        %4324 = vmatpush1.bf16.xpose.msra.mxu0 0
        %4325 = vmatprep.subr.bf16.mxu0 0
        %4326 = vmatpush1.bf16.xpose.msra.mxu0 0
        %4327 = vmatprep.subr.bf16.mxu0 0
        %4328 = vmatpush1.bf16.xpose.msra.mxu0 0
        %4329 = vmatprep.subr.bf16.mxu0 0
        %4330 = vmatpush1.bf16.xpose.msra.mxu0 0
        %4331 = vmatprep.subr.bf16.mxu0 0
        %4332 = vmatpush1.bf16.xpose.msra.mxu0 0
        %4333 = vmatprep.subr.bf16.mxu0 0
        %4334 = vmatpush1.bf16.xpose.msra.mxu0 0
        %4335 = vmatprep.mubr.bf16.mxu0 0
        %4336 = vmatmul.mubr.bf16.gmra.mrb[0].mxu0 %v4298
        %v4337 = vpop.f32.mrb[0].mxu0
        %v4338 = vadd.f32 0.0, %v4337
        %v4339 = vpop.f32.mrb[0].mxu0
        %v4340 = vpop.f32.mrb[0].mxu0
        %v4341 = vpop.f32.mrb[0].mxu0
        %4342 = vdwg.mxu0
        %v4343 = vsel %vm3647, %v4338, -inf
        %4344 = vmax.xlane.f32.xlu0 %v4343
        %v4345 = vpop.xlane.xlu0 %4344
        %v4346 = vsub.f32 %v4338, %v4345
        %v4347 = vmul.f32 %v4346, 1.442695
        %v4348 = vpow.pop %v4347
        %v4349 = vsel %vm3647, %v4348, 0.0
        %4350 = vadd.xlane.f32.xlu0 %v4349
        %v4351 = vpop.xlane.xlu0 %4350
        %v4352 = vrcp.pop %v4351
        %v4353 = vmul.f32 %v4348, %v4352
        %s4354 = scalar_lea.vmem %s700, 48 [#allocation25]
        %4355 = vst.msk [vmem:[%s4354] sm:$0xff] %vm3647, %v4353
        %v4356 = vpack.c.bf16 %v4353, %v4353
        %v4358 = vsel %vm3647, %v4356, 0
        %v4361 = vsel %vm3664, %v3599, 0
        %4363 = vmatprep.subr.bf16.mxu0 0
        %4364 = vmatpush1.bf16.msra.mxu0 %v4361
        %4365 = vmatprep.subr.bf16.mxu0 0
        %4366 = vmatpush1.bf16.msra.mxu0 0
        %4367 = vmatprep.subr.bf16.mxu0 0
        %4368 = vmatpush1.bf16.msra.mxu0 0
        %4369 = vmatprep.subr.bf16.mxu0 0
        %4370 = vmatpush1.bf16.msra.mxu0 0
        %4371 = vmatprep.subr.bf16.mxu0 0
        %4372 = vmatpush1.bf16.msra.mxu0 0
        %4373 = vmatprep.subr.bf16.mxu0 0
        %4374 = vmatpush1.bf16.msra.mxu0 0
        %4375 = vmatprep.subr.bf16.mxu0 0
        %4376 = vmatpush1.bf16.msra.mxu0 0
        %4377 = vmatprep.subr.bf16.mxu0 0
        %4378 = vmatpush1.bf16.msra.mxu0 0
        %4379 = vmatprep.subr.bf16.mxu0 0
        %4380 = vmatpush1.bf16.msra.mxu0 0
        %4381 = vmatprep.subr.bf16.mxu0 0
        %4382 = vmatpush1.bf16.msra.mxu0 0
        %4383 = vmatprep.subr.bf16.mxu0 0
        %4384 = vmatpush1.bf16.msra.mxu0 0
        %4385 = vmatprep.subr.bf16.mxu0 0
        %4386 = vmatpush1.bf16.msra.mxu0 0
        %4387 = vmatprep.subr.bf16.mxu0 0
        %4388 = vmatpush1.bf16.msra.mxu0 0
        %4389 = vmatprep.subr.bf16.mxu0 0
        %4390 = vmatpush1.bf16.msra.mxu0 0
        %4391 = vmatprep.subr.bf16.mxu0 0
        %4392 = vmatpush1.bf16.msra.mxu0 0
        %4393 = vmatprep.subr.bf16.mxu0 0
        %4394 = vmatpush1.bf16.msra.mxu0 0
        %4395 = vmatprep.mubr.bf16.mxu0 0
        %4396 = vmatmul.mubr.bf16.gmra.mrb[0].mxu0 %v4358
        %v4397 = vpop.f32.mrb[0].mxu0
        %v4398 = vadd.f32 0.0, %v4397
        %v4399 = vpop.f32.mrb[0].mxu0
        %v4400 = vpop.f32.mrb[0].mxu0
        %v4401 = vpop.f32.mrb[0].mxu0
        %4402 = vdwg.mxu0
        %v4403 = vpack.c.bf16 %v4398, %v4398
        %4404 = vst.msk [vmem:[#allocation2 + $0xc] sm:$0xf] %vm3709, %v4403
        %4406 = vrot.lane.b32.xlu0 %v1683, 64
        %v4407 = vpop.permute.xlu0 %4406
        %4409 = vrot.lane.b32.xlu0 %v2641, 64
        %v4410 = vpop.permute.xlu0 %4409
        %v4412 = vsel %vm3600, %v4407, 0
        %v4415 = vsel %vm3600, %v4410, 0
        %4417 = vmatprep.subr.bf16.mxu0 0
        %4418 = vmatpush1.bf16.xpose.msra.mxu0 %v4415
        %4419 = vmatprep.subr.bf16.mxu0 0
        %4420 = vmatpush1.bf16.xpose.msra.mxu0 0
        %4421 = vmatprep.subr.bf16.mxu0 0
        %4422 = vmatpush1.bf16.xpose.msra.mxu0 0
        %4423 = vmatprep.subr.bf16.mxu0 0
        %4424 = vmatpush1.bf16.xpose.msra.mxu0 0
        %4425 = vmatprep.subr.bf16.mxu0 0
        %4426 = vmatpush1.bf16.xpose.msra.mxu0 0
        %4427 = vmatprep.subr.bf16.mxu0 0
        %4428 = vmatpush1.bf16.xpose.msra.mxu0 0
        %4429 = vmatprep.subr.bf16.mxu0 0
        %4430 = vmatpush1.bf16.xpose.msra.mxu0 0
        %4431 = vmatprep.subr.bf16.mxu0 0
        %4432 = vmatpush1.bf16.xpose.msra.mxu0 0
        %4433 = vmatprep.subr.bf16.mxu0 0
        %4434 = vmatpush1.bf16.xpose.msra.mxu0 0
        %4435 = vmatprep.subr.bf16.mxu0 0
        %4436 = vmatpush1.bf16.xpose.msra.mxu0 0
        %4437 = vmatprep.subr.bf16.mxu0 0
        %4438 = vmatpush1.bf16.xpose.msra.mxu0 0
        %4439 = vmatprep.subr.bf16.mxu0 0
        %4440 = vmatpush1.bf16.xpose.msra.mxu0 0
        %4441 = vmatprep.subr.bf16.mxu0 0
        %4442 = vmatpush1.bf16.xpose.msra.mxu0 0
        %4443 = vmatprep.subr.bf16.mxu0 0
        %4444 = vmatpush1.bf16.xpose.msra.mxu0 0
        %4445 = vmatprep.subr.bf16.mxu0 0
        %4446 = vmatpush1.bf16.xpose.msra.mxu0 0
        %4447 = vmatprep.subr.bf16.mxu0 0
        %4448 = vmatpush1.bf16.xpose.msra.mxu0 0
        %4449 = vmatprep.mubr.bf16.mxu0 0
        %4450 = vmatmul.mubr.bf16.gmra.mrb[0].mxu0 %v4412
        %v4451 = vpop.f32.mrb[0].mxu0
        %v4452 = vadd.f32 0.0, %v4451
        %v4453 = vpop.f32.mrb[0].mxu0
        %v4454 = vpop.f32.mrb[0].mxu0
        %v4455 = vpop.f32.mrb[0].mxu0
        %4456 = vdwg.mxu0
        %v4457 = vsel %vm3647, %v4452, -inf
        %4458 = vmax.xlane.f32.xlu0 %v4457
        %v4459 = vpop.xlane.xlu0 %4458
        %v4460 = vsub.f32 %v4452, %v4459
        %v4461 = vmul.f32 %v4460, 1.442695
        %v4462 = vpow.pop %v4461
        %v4463 = vsel %vm3647, %v4462, 0.0
        %4464 = vadd.xlane.f32.xlu0 %v4463
        %v4465 = vpop.xlane.xlu0 %4464
        %v4466 = vrcp.pop %v4465
        %v4467 = vmul.f32 %v4462, %v4466
        %s4468 = scalar_lea.vmem %s700, 56 [#allocation25]
        %4469 = vst.msk [vmem:[%s4468] sm:$0xff] %vm3647, %v4467
        %v4470 = vpack.c.bf16 %v4467, %v4467
        %4472 = vrot.lane.b32.xlu0 %v3599, 64
        %v4473 = vpop.permute.xlu0 %4472
        %v4475 = vsel %vm3647, %v4470, 0
        %v4478 = vsel %vm3664, %v4473, 0
        %4480 = vmatprep.subr.bf16.mxu0 0
        %4481 = vmatpush1.bf16.msra.mxu0 %v4478
        %4482 = vmatprep.subr.bf16.mxu0 0
        %4483 = vmatpush1.bf16.msra.mxu0 0
        %4484 = vmatprep.subr.bf16.mxu0 0
        %4485 = vmatpush1.bf16.msra.mxu0 0
        %4486 = vmatprep.subr.bf16.mxu0 0
        %4487 = vmatpush1.bf16.msra.mxu0 0
        %4488 = vmatprep.subr.bf16.mxu0 0
        %4489 = vmatpush1.bf16.msra.mxu0 0
        %4490 = vmatprep.subr.bf16.mxu0 0
        %4491 = vmatpush1.bf16.msra.mxu0 0
        %4492 = vmatprep.subr.bf16.mxu0 0
        %4493 = vmatpush1.bf16.msra.mxu0 0
        %4494 = vmatprep.subr.bf16.mxu0 0
        %4495 = vmatpush1.bf16.msra.mxu0 0
        %4496 = vmatprep.subr.bf16.mxu0 0
        %4497 = vmatpush1.bf16.msra.mxu0 0
        %4498 = vmatprep.subr.bf16.mxu0 0
        %4499 = vmatpush1.bf16.msra.mxu0 0
        %4500 = vmatprep.subr.bf16.mxu0 0
        %4501 = vmatpush1.bf16.msra.mxu0 0
        %4502 = vmatprep.subr.bf16.mxu0 0
        %4503 = vmatpush1.bf16.msra.mxu0 0
        %4504 = vmatprep.subr.bf16.mxu0 0
        %4505 = vmatpush1.bf16.msra.mxu0 0
        %4506 = vmatprep.subr.bf16.mxu0 0
        %4507 = vmatpush1.bf16.msra.mxu0 0
        %4508 = vmatprep.subr.bf16.mxu0 0
        %4509 = vmatpush1.bf16.msra.mxu0 0
        %4510 = vmatprep.subr.bf16.mxu0 0
        %4511 = vmatpush1.bf16.msra.mxu0 0
        %4512 = vmatprep.mubr.bf16.mxu0 0
        %4513 = vmatmul.mubr.bf16.gmra.mrb[0].mxu0 %v4475
        %v4514 = vpop.f32.mrb[0].mxu0
        %v4515 = vadd.f32 0.0, %v4514
        %v4516 = vpop.f32.mrb[0].mxu0
        %v4517 = vpop.f32.mrb[0].mxu0
        %v4518 = vpop.f32.mrb[0].mxu0
        %4519 = vdwg.mxu0
        %v4520 = vpack.c.bf16 %v4515, %v4515
        %v4522 = vunpack.c.l.b16 %v4520
        %v4523 = vpack.c.b16 %v4522, %v4522
        %4524 = vrot.lane.b32.xlu0 %v4523, 64
        %v4525 = vpop.permute.xlu0 %4524
        %4527 = vst.msk [vmem:[#allocation2 + $0xc] sm:$0xf] %vm3833, %v4525
        %v4528 = vld [vmem:[#allocation2] sm:$0xff]
        %v4529 = vld [vmem:[#allocation2 + $0x8] sm:$0xff]
        %v4530 = vld [vmem:[#allocation18] sm:$0xff]
        %v4531 = vld [vmem:[#allocation18 + $0x8] sm:$0xff]
        %v4532 = vld [vmem:[#allocation18 + $0x10] sm:$0xff]
        %v4533 = vld [vmem:[#allocation18 + $0x18] sm:$0xff]
        %v4534 = vld [vmem:[#allocation18 + $0x20] sm:$0xff]
        %v4535 = vld [vmem:[#allocation18 + $0x28] sm:$0xff]
        %v4536 = vld [vmem:[#allocation18 + $0x30] sm:$0xff]
        %v4537 = vld [vmem:[#allocation18 + $0x38] sm:$0xff]
        %v4538 = vld [vmem:[#allocation18 + $0x40] sm:$0xff]
        %v4539 = vld [vmem:[#allocation18 + $0x48] sm:$0xff]
        %v4540 = vld [vmem:[#allocation18 + $0x50] sm:$0xff]
        %v4541 = vld [vmem:[#allocation18 + $0x58] sm:$0xff]
        %v4542 = vld [vmem:[#allocation18 + $0x60] sm:$0xff]
        %v4543 = vld [vmem:[#allocation18 + $0x68] sm:$0xff]
        %v4544 = vld [vmem:[#allocation18 + $0x70] sm:$0xff]
        %v4545 = vld [vmem:[#allocation18 + $0x78] sm:$0xff]
        %v4546 = vld [vmem:[#allocation18 + $0x80] sm:$0xff]
        %v4547 = vld [vmem:[#allocation18 + $0x88] sm:$0xff]
        %v4548 = vld [vmem:[#allocation18 + $0x90] sm:$0xff]
        %v4549 = vld [vmem:[#allocation18 + $0x98] sm:$0xff]
        %v4550 = vld [vmem:[#allocation18 + $0xa0] sm:$0xff]
        %v4551 = vld [vmem:[#allocation18 + $0xa8] sm:$0xff]
        %v4552 = vld [vmem:[#allocation18 + $0xb0] sm:$0xff]
        %v4553 = vld [vmem:[#allocation18 + $0xb8] sm:$0xff]
        %v4554 = vld [vmem:[#allocation18 + $0xc0] sm:$0xff]
        %v4555 = vld [vmem:[#allocation18 + $0xc8] sm:$0xff]
        %v4556 = vld [vmem:[#allocation18 + $0xd0] sm:$0xff]
        %v4557 = vld [vmem:[#allocation18 + $0xd8] sm:$0xff]
        %v4558 = vld [vmem:[#allocation18 + $0xe0] sm:$0xff]
        %v4559 = vld [vmem:[#allocation18 + $0xe8] sm:$0xff]
        %v4560 = vld [vmem:[#allocation18 + $0xf0] sm:$0xff]
        %v4561 = vld [vmem:[#allocation18 + $0xf8] sm:$0xff]
        %v4562 = vld [vmem:[#allocation18 + $0x100] sm:$0xff]
        %v4563 = vld [vmem:[#allocation18 + $0x108] sm:$0xff]
        %v4564 = vld [vmem:[#allocation18 + $0x110] sm:$0xff]
        %v4565 = vld [vmem:[#allocation18 + $0x118] sm:$0xff]
        %v4566 = vld [vmem:[#allocation18 + $0x120] sm:$0xff]
        %v4567 = vld [vmem:[#allocation18 + $0x128] sm:$0xff]
        %v4568 = vld [vmem:[#allocation18 + $0x130] sm:$0xff]
        %v4569 = vld [vmem:[#allocation18 + $0x138] sm:$0xff]
        %v4570 = vld [vmem:[#allocation18 + $0x140] sm:$0xff]
        %v4571 = vld [vmem:[#allocation18 + $0x148] sm:$0xff]
        %v4572 = vld [vmem:[#allocation18 + $0x150] sm:$0xff]
        %v4573 = vld [vmem:[#allocation18 + $0x158] sm:$0xff]
        %v4574 = vld [vmem:[#allocation18 + $0x160] sm:$0xff]
        %v4575 = vld [vmem:[#allocation18 + $0x168] sm:$0xff]
        %v4576 = vld [vmem:[#allocation18 + $0x170] sm:$0xff]
        %v4577 = vld [vmem:[#allocation18 + $0x178] sm:$0xff]
        %v4578 = vld [vmem:[#allocation18 + $0x180] sm:$0xff]
        %v4579 = vld [vmem:[#allocation18 + $0x188] sm:$0xff]
        %v4580 = vld [vmem:[#allocation18 + $0x190] sm:$0xff]
        %v4581 = vld [vmem:[#allocation18 + $0x198] sm:$0xff]
        %v4582 = vld [vmem:[#allocation18 + $0x1a0] sm:$0xff]
        %v4583 = vld [vmem:[#allocation18 + $0x1a8] sm:$0xff]
        %v4584 = vld [vmem:[#allocation18 + $0x1b0] sm:$0xff]
        %v4585 = vld [vmem:[#allocation18 + $0x1b8] sm:$0xff]
        %v4586 = vld [vmem:[#allocation18 + $0x1c0] sm:$0xff]
        %v4587 = vld [vmem:[#allocation18 + $0x1c8] sm:$0xff]
        %v4588 = vld [vmem:[#allocation18 + $0x1d0] sm:$0xff]
        %v4589 = vld [vmem:[#allocation18 + $0x1d8] sm:$0xff]
        %v4590 = vld [vmem:[#allocation18 + $0x1e0] sm:$0xff]
        %v4591 = vld [vmem:[#allocation18 + $0x1e8] sm:$0xff]
        %v4592 = vld [vmem:[#allocation18 + $0x1f0] sm:$0xff]
        %v4593 = vld [vmem:[#allocation18 + $0x1f8] sm:$0xff]
        %v4594 = vld [vmem:[#allocation18 + $0x200] sm:$0xff]
        %v4595 = vld [vmem:[#allocation18 + $0x208] sm:$0xff]
        %v4596 = vld [vmem:[#allocation18 + $0x210] sm:$0xff]
        %v4597 = vld [vmem:[#allocation18 + $0x218] sm:$0xff]
        %v4598 = vld [vmem:[#allocation18 + $0x220] sm:$0xff]
        %v4599 = vld [vmem:[#allocation18 + $0x228] sm:$0xff]
        %v4600 = vld [vmem:[#allocation18 + $0x230] sm:$0xff]
        %v4601 = vld [vmem:[#allocation18 + $0x238] sm:$0xff]
        %v4602 = vld [vmem:[#allocation18 + $0x240] sm:$0xff]
        %v4603 = vld [vmem:[#allocation18 + $0x248] sm:$0xff]
        %v4604 = vld [vmem:[#allocation18 + $0x250] sm:$0xff]
        %v4605 = vld [vmem:[#allocation18 + $0x258] sm:$0xff]
        %v4606 = vld [vmem:[#allocation18 + $0x260] sm:$0xff]
        %v4607 = vld [vmem:[#allocation18 + $0x268] sm:$0xff]
        %v4608 = vld [vmem:[#allocation18 + $0x270] sm:$0xff]
        %v4609 = vld [vmem:[#allocation18 + $0x278] sm:$0xff]
        %v4610 = vld [vmem:[#allocation18 + $0x280] sm:$0xff]
        %v4611 = vld [vmem:[#allocation18 + $0x288] sm:$0xff]
        %v4612 = vld [vmem:[#allocation18 + $0x290] sm:$0xff]
        %v4613 = vld [vmem:[#allocation18 + $0x298] sm:$0xff]
        %v4614 = vld [vmem:[#allocation18 + $0x2a0] sm:$0xff]
        %v4615 = vld [vmem:[#allocation18 + $0x2a8] sm:$0xff]
        %v4616 = vld [vmem:[#allocation18 + $0x2b0] sm:$0xff]
        %v4617 = vld [vmem:[#allocation18 + $0x2b8] sm:$0xff]
        %v4618 = vld [vmem:[#allocation18 + $0x2c0] sm:$0xff]
        %v4619 = vld [vmem:[#allocation18 + $0x2c8] sm:$0xff]
        %v4620 = vld [vmem:[#allocation18 + $0x2d0] sm:$0xff]
        %v4621 = vld [vmem:[#allocation18 + $0x2d8] sm:$0xff]
        %v4622 = vld [vmem:[#allocation18 + $0x2e0] sm:$0xff]
        %v4623 = vld [vmem:[#allocation18 + $0x2e8] sm:$0xff]
        %v4624 = vld [vmem:[#allocation18 + $0x2f0] sm:$0xff]
        %v4625 = vld [vmem:[#allocation18 + $0x2f8] sm:$0xff]
        %v4626 = vld [vmem:[#allocation18 + $0x300] sm:$0xff]
        %v4627 = vld [vmem:[#allocation18 + $0x308] sm:$0xff]
        %v4628 = vld [vmem:[#allocation18 + $0x310] sm:$0xff]
        %v4629 = vld [vmem:[#allocation18 + $0x318] sm:$0xff]
        %v4630 = vld [vmem:[#allocation18 + $0x320] sm:$0xff]
        %v4631 = vld [vmem:[#allocation18 + $0x328] sm:$0xff]
        %v4632 = vld [vmem:[#allocation18 + $0x330] sm:$0xff]
        %v4633 = vld [vmem:[#allocation18 + $0x338] sm:$0xff]
        %v4634 = vld [vmem:[#allocation18 + $0x340] sm:$0xff]
        %v4635 = vld [vmem:[#allocation18 + $0x348] sm:$0xff]
        %v4636 = vld [vmem:[#allocation18 + $0x350] sm:$0xff]
        %v4637 = vld [vmem:[#allocation18 + $0x358] sm:$0xff]
        %v4638 = vld [vmem:[#allocation18 + $0x360] sm:$0xff]
        %v4639 = vld [vmem:[#allocation18 + $0x368] sm:$0xff]
        %v4640 = vld [vmem:[#allocation18 + $0x370] sm:$0xff]
        %v4641 = vld [vmem:[#allocation18 + $0x378] sm:$0xff]
        %v4642 = vld [vmem:[#allocation18 + $0x380] sm:$0xff]
        %v4643 = vld [vmem:[#allocation18 + $0x388] sm:$0xff]
        %v4644 = vld [vmem:[#allocation18 + $0x390] sm:$0xff]
        %v4645 = vld [vmem:[#allocation18 + $0x398] sm:$0xff]
        %v4646 = vld [vmem:[#allocation18 + $0x3a0] sm:$0xff]
        %v4647 = vld [vmem:[#allocation18 + $0x3a8] sm:$0xff]
        %v4648 = vld [vmem:[#allocation18 + $0x3b0] sm:$0xff]
        %v4649 = vld [vmem:[#allocation18 + $0x3b8] sm:$0xff]
        %v4650 = vld [vmem:[#allocation18 + $0x3c0] sm:$0xff]
        %v4651 = vld [vmem:[#allocation18 + $0x3c8] sm:$0xff]
        %v4652 = vld [vmem:[#allocation18 + $0x3d0] sm:$0xff]
        %v4653 = vld [vmem:[#allocation18 + $0x3d8] sm:$0xff]
        %v4654 = vld [vmem:[#allocation18 + $0x3e0] sm:$0xff]
        %v4655 = vld [vmem:[#allocation18 + $0x3e8] sm:$0xff]
        %v4656 = vld [vmem:[#allocation18 + $0x3f0] sm:$0xff]
        %v4657 = vld [vmem:[#allocation18 + $0x3f8] sm:$0xff]
        %v4658 = vld [vmem:[#allocation20] sm:$0xf]
        %v4660 = vlaneseq
        %v4661 = vshrl.u32 %v4660, 7
        %v4662 = vsub.s32 0, %v4661
        %v4663 = vrot.slane %v4658, %v4662
        %v4664 = vlaneseq
        %v4665 = vshrl.u32 %v4664, 7
        %v4666 = vsub.s32 1, %v4665
        %v4667 = vrot.slane %v4658, %v4666
        %v4668 = vlaneseq
        %v4669 = vshrl.u32 %v4668, 7
        %v4670 = vsub.s32 2, %v4669
        %v4671 = vrot.slane %v4658, %v4670
        %v4672 = vlaneseq
        %v4673 = vshrl.u32 %v4672, 7
        %v4674 = vsub.s32 3, %v4673
        %v4675 = vrot.slane %v4658, %v4674
        %v4682 = vunpack.c.l.b16 %v4528
        %v4683 = vunpack.c.h.b16 %v4528
        %v4684 = vunpack.c.l.b16 %v4529
        %v4685 = vunpack.c.h.b16 %v4529
        %v4686 = vpack.c.b16 %v4682, %v4682
        %v4687 = vpack.c.b16 %v4683, %v4683
        %v4688 = vpack.c.b16 %v4684, %v4684
        %v4689 = vpack.c.b16 %v4685, %v4685
        %v4822 = vunpack.c.l.b16 %v4530
        %v4823 = vunpack.c.h.b16 %v4530
        %v4824 = vunpack.c.l.b16 %v4531
        %v4825 = vunpack.c.h.b16 %v4531
        %v4826 = vunpack.c.l.b16 %v4532
        %v4827 = vunpack.c.h.b16 %v4532
        %v4828 = vunpack.c.l.b16 %v4533
        %v4829 = vunpack.c.h.b16 %v4533
        %v4830 = vunpack.c.l.b16 %v4534
        %v4831 = vunpack.c.h.b16 %v4534
        %v4832 = vunpack.c.l.b16 %v4535
        %v4833 = vunpack.c.h.b16 %v4535
        %v4834 = vunpack.c.l.b16 %v4536
        %v4835 = vunpack.c.h.b16 %v4536
        %v4836 = vunpack.c.l.b16 %v4537
        %v4837 = vunpack.c.h.b16 %v4537
        %v4838 = vunpack.c.l.b16 %v4538
        %v4839 = vunpack.c.h.b16 %v4538
        %v4840 = vunpack.c.l.b16 %v4539
        %v4841 = vunpack.c.h.b16 %v4539
        %v4842 = vunpack.c.l.b16 %v4540
        %v4843 = vunpack.c.h.b16 %v4540
        %v4844 = vunpack.c.l.b16 %v4541
        %v4845 = vunpack.c.h.b16 %v4541
        %v4846 = vunpack.c.l.b16 %v4542
        %v4847 = vunpack.c.h.b16 %v4542
        %v4848 = vunpack.c.l.b16 %v4543
        %v4849 = vunpack.c.h.b16 %v4543
        %v4850 = vunpack.c.l.b16 %v4544
        %v4851 = vunpack.c.h.b16 %v4544
        %v4852 = vunpack.c.l.b16 %v4545
        %v4853 = vunpack.c.h.b16 %v4545
        %v4854 = vunpack.c.l.b16 %v4546
        %v4855 = vunpack.c.h.b16 %v4546
        %v4856 = vunpack.c.l.b16 %v4547
        %v4857 = vunpack.c.h.b16 %v4547
        %v4858 = vunpack.c.l.b16 %v4548
        %v4859 = vunpack.c.h.b16 %v4548
        %v4860 = vunpack.c.l.b16 %v4549
        %v4861 = vunpack.c.h.b16 %v4549
        %v4862 = vunpack.c.l.b16 %v4550
        %v4863 = vunpack.c.h.b16 %v4550
        %v4864 = vunpack.c.l.b16 %v4551
        %v4865 = vunpack.c.h.b16 %v4551
        %v4866 = vunpack.c.l.b16 %v4552
        %v4867 = vunpack.c.h.b16 %v4552
        %v4868 = vunpack.c.l.b16 %v4553
        %v4869 = vunpack.c.h.b16 %v4553
        %v4870 = vunpack.c.l.b16 %v4554
        %v4871 = vunpack.c.h.b16 %v4554
        %v4872 = vunpack.c.l.b16 %v4555
        %v4873 = vunpack.c.h.b16 %v4555
        %v4874 = vunpack.c.l.b16 %v4556
        %v4875 = vunpack.c.h.b16 %v4556
        %v4876 = vunpack.c.l.b16 %v4557
        %v4877 = vunpack.c.h.b16 %v4557
        %v4878 = vunpack.c.l.b16 %v4558
        %v4879 = vunpack.c.h.b16 %v4558
        %v4880 = vunpack.c.l.b16 %v4559
        %v4881 = vunpack.c.h.b16 %v4559
        %v4882 = vunpack.c.l.b16 %v4560
        %v4883 = vunpack.c.h.b16 %v4560
        %v4884 = vunpack.c.l.b16 %v4561
        %v4885 = vunpack.c.h.b16 %v4561
        %v4886 = vunpack.c.l.b16 %v4562
        %v4887 = vunpack.c.h.b16 %v4562
        %v4888 = vunpack.c.l.b16 %v4563
        %v4889 = vunpack.c.h.b16 %v4563
        %v4890 = vunpack.c.l.b16 %v4564
        %v4891 = vunpack.c.h.b16 %v4564
        %v4892 = vunpack.c.l.b16 %v4565
        %v4893 = vunpack.c.h.b16 %v4565
        %v4894 = vunpack.c.l.b16 %v4566
        %v4895 = vunpack.c.h.b16 %v4566
        %v4896 = vunpack.c.l.b16 %v4567
        %v4897 = vunpack.c.h.b16 %v4567
        %v4898 = vunpack.c.l.b16 %v4568
        %v4899 = vunpack.c.h.b16 %v4568
        %v4900 = vunpack.c.l.b16 %v4569
        %v4901 = vunpack.c.h.b16 %v4569
        %v4902 = vunpack.c.l.b16 %v4570
        %v4903 = vunpack.c.h.b16 %v4570
        %v4904 = vunpack.c.l.b16 %v4571
        %v4905 = vunpack.c.h.b16 %v4571
        %v4906 = vunpack.c.l.b16 %v4572
        %v4907 = vunpack.c.h.b16 %v4572
        %v4908 = vunpack.c.l.b16 %v4573
        %v4909 = vunpack.c.h.b16 %v4573
        %v4910 = vunpack.c.l.b16 %v4574
        %v4911 = vunpack.c.h.b16 %v4574
        %v4912 = vunpack.c.l.b16 %v4575
        %v4913 = vunpack.c.h.b16 %v4575
        %v4914 = vunpack.c.l.b16 %v4576
        %v4915 = vunpack.c.h.b16 %v4576
        %v4916 = vunpack.c.l.b16 %v4577
        %v4917 = vunpack.c.h.b16 %v4577
        %v4918 = vunpack.c.l.b16 %v4578
        %v4919 = vunpack.c.h.b16 %v4578
        %v4920 = vunpack.c.l.b16 %v4579
        %v4921 = vunpack.c.h.b16 %v4579
        %v4922 = vunpack.c.l.b16 %v4580
        %v4923 = vunpack.c.h.b16 %v4580
        %v4924 = vunpack.c.l.b16 %v4581
        %v4925 = vunpack.c.h.b16 %v4581
        %v4926 = vunpack.c.l.b16 %v4582
        %v4927 = vunpack.c.h.b16 %v4582
        %v4928 = vunpack.c.l.b16 %v4583
        %v4929 = vunpack.c.h.b16 %v4583
        %v4930 = vunpack.c.l.b16 %v4584
        %v4931 = vunpack.c.h.b16 %v4584
        %v4932 = vunpack.c.l.b16 %v4585
        %v4933 = vunpack.c.h.b16 %v4585
        %v4934 = vunpack.c.l.b16 %v4586
        %v4935 = vunpack.c.h.b16 %v4586
        %v4936 = vunpack.c.l.b16 %v4587
        %v4937 = vunpack.c.h.b16 %v4587
        %v4938 = vunpack.c.l.b16 %v4588
        %v4939 = vunpack.c.h.b16 %v4588
        %v4940 = vunpack.c.l.b16 %v4589
        %v4941 = vunpack.c.h.b16 %v4589
        %v4942 = vunpack.c.l.b16 %v4590
        %v4943 = vunpack.c.h.b16 %v4590
        %v4944 = vunpack.c.l.b16 %v4591
        %v4945 = vunpack.c.h.b16 %v4591
        %v4946 = vunpack.c.l.b16 %v4592
        %v4947 = vunpack.c.h.b16 %v4592
        %v4948 = vunpack.c.l.b16 %v4593
        %v4949 = vunpack.c.h.b16 %v4593
        %v4950 = vunpack.c.l.b16 %v4594
        %v4951 = vunpack.c.h.b16 %v4594
        %v4952 = vunpack.c.l.b16 %v4595
        %v4953 = vunpack.c.h.b16 %v4595
        %v4954 = vunpack.c.l.b16 %v4596
        %v4955 = vunpack.c.h.b16 %v4596
        %v4956 = vunpack.c.l.b16 %v4597
        %v4957 = vunpack.c.h.b16 %v4597
        %v4958 = vunpack.c.l.b16 %v4598
        %v4959 = vunpack.c.h.b16 %v4598
        %v4960 = vunpack.c.l.b16 %v4599
        %v4961 = vunpack.c.h.b16 %v4599
        %v4962 = vunpack.c.l.b16 %v4600
        %v4963 = vunpack.c.h.b16 %v4600
        %v4964 = vunpack.c.l.b16 %v4601
        %v4965 = vunpack.c.h.b16 %v4601
        %v4966 = vunpack.c.l.b16 %v4602
        %v4967 = vunpack.c.h.b16 %v4602
        %v4968 = vunpack.c.l.b16 %v4603
        %v4969 = vunpack.c.h.b16 %v4603
        %v4970 = vunpack.c.l.b16 %v4604
        %v4971 = vunpack.c.h.b16 %v4604
        %v4972 = vunpack.c.l.b16 %v4605
        %v4973 = vunpack.c.h.b16 %v4605
        %v4974 = vunpack.c.l.b16 %v4606
        %v4975 = vunpack.c.h.b16 %v4606
        %v4976 = vunpack.c.l.b16 %v4607
        %v4977 = vunpack.c.h.b16 %v4607
        %v4978 = vunpack.c.l.b16 %v4608
        %v4979 = vunpack.c.h.b16 %v4608
        %v4980 = vunpack.c.l.b16 %v4609
        %v4981 = vunpack.c.h.b16 %v4609
        %v4982 = vunpack.c.l.b16 %v4610
        %v4983 = vunpack.c.h.b16 %v4610
        %v4984 = vunpack.c.l.b16 %v4611
        %v4985 = vunpack.c.h.b16 %v4611
        %v4986 = vunpack.c.l.b16 %v4612
        %v4987 = vunpack.c.h.b16 %v4612
        %v4988 = vunpack.c.l.b16 %v4613
        %v4989 = vunpack.c.h.b16 %v4613
        %v4990 = vunpack.c.l.b16 %v4614
        %v4991 = vunpack.c.h.b16 %v4614
        %v4992 = vunpack.c.l.b16 %v4615
        %v4993 = vunpack.c.h.b16 %v4615
        %v4994 = vunpack.c.l.b16 %v4616
        %v4995 = vunpack.c.h.b16 %v4616
        %v4996 = vunpack.c.l.b16 %v4617
        %v4997 = vunpack.c.h.b16 %v4617
        %v4998 = vunpack.c.l.b16 %v4618
        %v4999 = vunpack.c.h.b16 %v4618
        %v5000 = vunpack.c.l.b16 %v4619
        %v5001 = vunpack.c.h.b16 %v4619
        %v5002 = vunpack.c.l.b16 %v4620
        %v5003 = vunpack.c.h.b16 %v4620
        %v5004 = vunpack.c.l.b16 %v4621
        %v5005 = vunpack.c.h.b16 %v4621
        %v5006 = vunpack.c.l.b16 %v4622
        %v5007 = vunpack.c.h.b16 %v4622
        %v5008 = vunpack.c.l.b16 %v4623
        %v5009 = vunpack.c.h.b16 %v4623
        %v5010 = vunpack.c.l.b16 %v4624
        %v5011 = vunpack.c.h.b16 %v4624
        %v5012 = vunpack.c.l.b16 %v4625
        %v5013 = vunpack.c.h.b16 %v4625
        %v5014 = vunpack.c.l.b16 %v4626
        %v5015 = vunpack.c.h.b16 %v4626
        %v5016 = vunpack.c.l.b16 %v4627
        %v5017 = vunpack.c.h.b16 %v4627
        %v5018 = vunpack.c.l.b16 %v4628
        %v5019 = vunpack.c.h.b16 %v4628
        %v5020 = vunpack.c.l.b16 %v4629
        %v5021 = vunpack.c.h.b16 %v4629
        %v5022 = vunpack.c.l.b16 %v4630
        %v5023 = vunpack.c.h.b16 %v4630
        %v5024 = vunpack.c.l.b16 %v4631
        %v5025 = vunpack.c.h.b16 %v4631
        %v5026 = vunpack.c.l.b16 %v4632
        %v5027 = vunpack.c.h.b16 %v4632
        %v5028 = vunpack.c.l.b16 %v4633
        %v5029 = vunpack.c.h.b16 %v4633
        %v5030 = vunpack.c.l.b16 %v4634
        %v5031 = vunpack.c.h.b16 %v4634
        %v5032 = vunpack.c.l.b16 %v4635
        %v5033 = vunpack.c.h.b16 %v4635
        %v5034 = vunpack.c.l.b16 %v4636
        %v5035 = vunpack.c.h.b16 %v4636
        %v5036 = vunpack.c.l.b16 %v4637
        %v5037 = vunpack.c.h.b16 %v4637
        %v5038 = vunpack.c.l.b16 %v4638
        %v5039 = vunpack.c.h.b16 %v4638
        %v5040 = vunpack.c.l.b16 %v4639
        %v5041 = vunpack.c.h.b16 %v4639
        %v5042 = vunpack.c.l.b16 %v4640
        %v5043 = vunpack.c.h.b16 %v4640
        %v5044 = vunpack.c.l.b16 %v4641
        %v5045 = vunpack.c.h.b16 %v4641
        %v5046 = vunpack.c.l.b16 %v4642
        %v5047 = vunpack.c.h.b16 %v4642
        %v5048 = vunpack.c.l.b16 %v4643
        %v5049 = vunpack.c.h.b16 %v4643
        %v5050 = vunpack.c.l.b16 %v4644
        %v5051 = vunpack.c.h.b16 %v4644
        %v5052 = vunpack.c.l.b16 %v4645
        %v5053 = vunpack.c.h.b16 %v4645
        %v5054 = vunpack.c.l.b16 %v4646
        %v5055 = vunpack.c.h.b16 %v4646
        %v5056 = vunpack.c.l.b16 %v4647
        %v5057 = vunpack.c.h.b16 %v4647
        %v5058 = vunpack.c.l.b16 %v4648
        %v5059 = vunpack.c.h.b16 %v4648
        %v5060 = vunpack.c.l.b16 %v4649
        %v5061 = vunpack.c.h.b16 %v4649
        %v5062 = vunpack.c.l.b16 %v4650
        %v5063 = vunpack.c.h.b16 %v4650
        %v5064 = vunpack.c.l.b16 %v4651
        %v5065 = vunpack.c.h.b16 %v4651
        %v5066 = vunpack.c.l.b16 %v4652
        %v5067 = vunpack.c.h.b16 %v4652
        %v5068 = vunpack.c.l.b16 %v4653
        %v5069 = vunpack.c.h.b16 %v4653
        %v5070 = vunpack.c.l.b16 %v4654
        %v5071 = vunpack.c.h.b16 %v4654
        %v5072 = vunpack.c.l.b16 %v4655
        %v5073 = vunpack.c.h.b16 %v4655
        %v5074 = vunpack.c.l.b16 %v4656
        %v5075 = vunpack.c.h.b16 %v4656
        %v5076 = vunpack.c.l.b16 %v4657
        %v5077 = vunpack.c.h.b16 %v4657
        %v5078 = vpack.c.b16 %v4826, %v4822
        %v5079 = vpack.c.b16 %v4827, %v4823
        %v5080 = vpack.c.b16 %v4828, %v4824
        %v5081 = vpack.c.b16 %v4829, %v4825
        %v5082 = vpack.c.b16 %v4834, %v4830
        %v5083 = vpack.c.b16 %v4835, %v4831
        %v5084 = vpack.c.b16 %v4836, %v4832
        %v5085 = vpack.c.b16 %v4837, %v4833
        %v5086 = vpack.c.b16 %v4842, %v4838
        %v5087 = vpack.c.b16 %v4843, %v4839
        %v5088 = vpack.c.b16 %v4844, %v4840
        %v5089 = vpack.c.b16 %v4845, %v4841
        %v5090 = vpack.c.b16 %v4850, %v4846
        %v5091 = vpack.c.b16 %v4851, %v4847
        %v5092 = vpack.c.b16 %v4852, %v4848
        %v5093 = vpack.c.b16 %v4853, %v4849
        %v5094 = vpack.c.b16 %v4858, %v4854
        %v5095 = vpack.c.b16 %v4859, %v4855
        %v5096 = vpack.c.b16 %v4860, %v4856
        %v5097 = vpack.c.b16 %v4861, %v4857
        %v5098 = vpack.c.b16 %v4866, %v4862
        %v5099 = vpack.c.b16 %v4867, %v4863
        %v5100 = vpack.c.b16 %v4868, %v4864
        %v5101 = vpack.c.b16 %v4869, %v4865
        %v5102 = vpack.c.b16 %v4874, %v4870
        %v5103 = vpack.c.b16 %v4875, %v4871
        %v5104 = vpack.c.b16 %v4876, %v4872
        %v5105 = vpack.c.b16 %v4877, %v4873
        %v5106 = vpack.c.b16 %v4882, %v4878
        %v5107 = vpack.c.b16 %v4883, %v4879
        %v5108 = vpack.c.b16 %v4884, %v4880
        %v5109 = vpack.c.b16 %v4885, %v4881
        %v5110 = vpack.c.b16 %v4890, %v4886
        %v5111 = vpack.c.b16 %v4891, %v4887
        %v5112 = vpack.c.b16 %v4892, %v4888
        %v5113 = vpack.c.b16 %v4893, %v4889
        %v5114 = vpack.c.b16 %v4898, %v4894
        %v5115 = vpack.c.b16 %v4899, %v4895
        %v5116 = vpack.c.b16 %v4900, %v4896
        %v5117 = vpack.c.b16 %v4901, %v4897
        %v5118 = vpack.c.b16 %v4906, %v4902
        %v5119 = vpack.c.b16 %v4907, %v4903
        %v5120 = vpack.c.b16 %v4908, %v4904
        %v5121 = vpack.c.b16 %v4909, %v4905
        %v5122 = vpack.c.b16 %v4914, %v4910
        %v5123 = vpack.c.b16 %v4915, %v4911
        %v5124 = vpack.c.b16 %v4916, %v4912
        %v5125 = vpack.c.b16 %v4917, %v4913
        %v5126 = vpack.c.b16 %v4922, %v4918
        %v5127 = vpack.c.b16 %v4923, %v4919
        %v5128 = vpack.c.b16 %v4924, %v4920
        %v5129 = vpack.c.b16 %v4925, %v4921
        %v5130 = vpack.c.b16 %v4930, %v4926
        %v5131 = vpack.c.b16 %v4931, %v4927
        %v5132 = vpack.c.b16 %v4932, %v4928
        %v5133 = vpack.c.b16 %v4933, %v4929
        %v5134 = vpack.c.b16 %v4938, %v4934
        %v5135 = vpack.c.b16 %v4939, %v4935
        %v5136 = vpack.c.b16 %v4940, %v4936
        %v5137 = vpack.c.b16 %v4941, %v4937
        %v5138 = vpack.c.b16 %v4946, %v4942
        %v5139 = vpack.c.b16 %v4947, %v4943
        %v5140 = vpack.c.b16 %v4948, %v4944
        %v5141 = vpack.c.b16 %v4949, %v4945
        %v5142 = vpack.c.b16 %v4954, %v4950
        %v5143 = vpack.c.b16 %v4955, %v4951
        %v5144 = vpack.c.b16 %v4956, %v4952
        %v5145 = vpack.c.b16 %v4957, %v4953
        %v5146 = vpack.c.b16 %v4962, %v4958
        %v5147 = vpack.c.b16 %v4963, %v4959
        %v5148 = vpack.c.b16 %v4964, %v4960
        %v5149 = vpack.c.b16 %v4965, %v4961
        %v5150 = vpack.c.b16 %v4970, %v4966
        %v5151 = vpack.c.b16 %v4971, %v4967
        %v5152 = vpack.c.b16 %v4972, %v4968
        %v5153 = vpack.c.b16 %v4973, %v4969
        %v5154 = vpack.c.b16 %v4978, %v4974
        %v5155 = vpack.c.b16 %v4979, %v4975
        %v5156 = vpack.c.b16 %v4980, %v4976
        %v5157 = vpack.c.b16 %v4981, %v4977
        %v5158 = vpack.c.b16 %v4986, %v4982
        %v5159 = vpack.c.b16 %v4987, %v4983
        %v5160 = vpack.c.b16 %v4988, %v4984
        %v5161 = vpack.c.b16 %v4989, %v4985
        %v5162 = vpack.c.b16 %v4994, %v4990
        %v5163 = vpack.c.b16 %v4995, %v4991
        %v5164 = vpack.c.b16 %v4996, %v4992
        %v5165 = vpack.c.b16 %v4997, %v4993
        %v5166 = vpack.c.b16 %v5002, %v4998
        %v5167 = vpack.c.b16 %v5003, %v4999
        %v5168 = vpack.c.b16 %v5004, %v5000
        %v5169 = vpack.c.b16 %v5005, %v5001
        %v5170 = vpack.c.b16 %v5010, %v5006
        %v5171 = vpack.c.b16 %v5011, %v5007
        %v5172 = vpack.c.b16 %v5012, %v5008
        %v5173 = vpack.c.b16 %v5013, %v5009
        %v5174 = vpack.c.b16 %v5018, %v5014
        %v5175 = vpack.c.b16 %v5019, %v5015
        %v5176 = vpack.c.b16 %v5020, %v5016
        %v5177 = vpack.c.b16 %v5021, %v5017
        %v5178 = vpack.c.b16 %v5026, %v5022
        %v5179 = vpack.c.b16 %v5027, %v5023
        %v5180 = vpack.c.b16 %v5028, %v5024
        %v5181 = vpack.c.b16 %v5029, %v5025
        %v5182 = vpack.c.b16 %v5034, %v5030
        %v5183 = vpack.c.b16 %v5035, %v5031
        %v5184 = vpack.c.b16 %v5036, %v5032
        %v5185 = vpack.c.b16 %v5037, %v5033
        %v5186 = vpack.c.b16 %v5042, %v5038
        %v5187 = vpack.c.b16 %v5043, %v5039
        %v5188 = vpack.c.b16 %v5044, %v5040
        %v5189 = vpack.c.b16 %v5045, %v5041
        %v5190 = vpack.c.b16 %v5050, %v5046
        %v5191 = vpack.c.b16 %v5051, %v5047
        %v5192 = vpack.c.b16 %v5052, %v5048
        %v5193 = vpack.c.b16 %v5053, %v5049
        %v5194 = vpack.c.b16 %v5058, %v5054
        %v5195 = vpack.c.b16 %v5059, %v5055
        %v5196 = vpack.c.b16 %v5060, %v5056
        %v5197 = vpack.c.b16 %v5061, %v5057
        %v5198 = vpack.c.b16 %v5066, %v5062
        %v5199 = vpack.c.b16 %v5067, %v5063
        %v5200 = vpack.c.b16 %v5068, %v5064
        %v5201 = vpack.c.b16 %v5069, %v5065
        %v5202 = vpack.c.b16 %v5074, %v5070
        %v5203 = vpack.c.b16 %v5075, %v5071
        %v5204 = vpack.c.b16 %v5076, %v5072
        %v5205 = vpack.c.b16 %v5077, %v5073
        %5334 = vmatprep.subr.bf16.mxu0 %v5079
        %5335 = vmatpush1.bf16.msra.mxu0 %v5078
        %5336 = vmatprep.subr.bf16.mxu0 %v5083
        %5337 = vmatpush1.bf16.msra.mxu0 %v5082
        %5338 = vmatprep.subr.bf16.mxu0 %v5087
        %5339 = vmatpush1.bf16.msra.mxu0 %v5086
        %5340 = vmatprep.subr.bf16.mxu0 %v5091
        %5341 = vmatpush1.bf16.msra.mxu0 %v5090
        %5342 = vmatprep.subr.bf16.mxu0 %v5095
        %5343 = vmatpush1.bf16.msra.mxu0 %v5094
        %5344 = vmatprep.subr.bf16.mxu0 %v5099
        %5345 = vmatpush1.bf16.msra.mxu0 %v5098
        %5346 = vmatprep.subr.bf16.mxu0 %v5103
        %5347 = vmatpush1.bf16.msra.mxu0 %v5102
        %5348 = vmatprep.subr.bf16.mxu0 %v5107
        %5349 = vmatpush1.bf16.msra.mxu0 %v5106
        %5350 = vmatprep.subr.bf16.mxu0 %v5111
        %5351 = vmatpush1.bf16.msra.mxu0 %v5110
        %5352 = vmatprep.subr.bf16.mxu0 %v5115
        %5353 = vmatpush1.bf16.msra.mxu0 %v5114
        %5354 = vmatprep.subr.bf16.mxu0 %v5119
        %5355 = vmatpush1.bf16.msra.mxu0 %v5118
        %5356 = vmatprep.subr.bf16.mxu0 %v5123
        %5357 = vmatpush1.bf16.msra.mxu0 %v5122
        %5358 = vmatprep.subr.bf16.mxu0 %v5127
        %5359 = vmatpush1.bf16.msra.mxu0 %v5126
        %5360 = vmatprep.subr.bf16.mxu0 %v5131
        %5361 = vmatpush1.bf16.msra.mxu0 %v5130
        %5362 = vmatprep.subr.bf16.mxu0 %v5135
        %5363 = vmatpush1.bf16.msra.mxu0 %v5134
        %5364 = vmatprep.subr.bf16.mxu0 %v5139
        %5365 = vmatpush1.bf16.msra.mxu0 %v5138
        %5366 = vmatprep.mubr.bf16.mxu0 %v4687
        %5367 = vmatmul.mubr.bf16.gmra.mrb[0].mxu0 %v4686
        %v5368 = vpop.f32.mrb[0].mxu0
        %v5369 = vadd.f32 %v4663, %v5368
        %v5370 = vpop.f32.mrb[0].mxu0
        %v5371 = vadd.f32 %v4667, %v5370
        %v5372 = vpop.f32.mrb[0].mxu0
        %v5373 = vpop.f32.mrb[0].mxu0
        %5374 = vdwg.mxu0
        %5375 = vmatprep.subr.bf16.mxu0 %v5143
        %5376 = vmatpush1.bf16.msra.mxu0 %v5142
        %5377 = vmatprep.subr.bf16.mxu0 %v5147
        %5378 = vmatpush1.bf16.msra.mxu0 %v5146
        %5379 = vmatprep.subr.bf16.mxu0 %v5151
        %5380 = vmatpush1.bf16.msra.mxu0 %v5150
        %5381 = vmatprep.subr.bf16.mxu0 %v5155
        %5382 = vmatpush1.bf16.msra.mxu0 %v5154
        %5383 = vmatprep.subr.bf16.mxu0 %v5159
        %5384 = vmatpush1.bf16.msra.mxu0 %v5158
        %5385 = vmatprep.subr.bf16.mxu0 %v5163
        %5386 = vmatpush1.bf16.msra.mxu0 %v5162
        %5387 = vmatprep.subr.bf16.mxu0 %v5167
        %5388 = vmatpush1.bf16.msra.mxu0 %v5166
        %5389 = vmatprep.subr.bf16.mxu0 %v5171
        %5390 = vmatpush1.bf16.msra.mxu0 %v5170
        %5391 = vmatprep.subr.bf16.mxu0 %v5175
        %5392 = vmatpush1.bf16.msra.mxu0 %v5174
        %5393 = vmatprep.subr.bf16.mxu0 %v5179
        %5394 = vmatpush1.bf16.msra.mxu0 %v5178
        %5395 = vmatprep.subr.bf16.mxu0 %v5183
        %5396 = vmatpush1.bf16.msra.mxu0 %v5182
        %5397 = vmatprep.subr.bf16.mxu0 %v5187
        %5398 = vmatpush1.bf16.msra.mxu0 %v5186
        %5399 = vmatprep.subr.bf16.mxu0 %v5191
        %5400 = vmatpush1.bf16.msra.mxu0 %v5190
        %5401 = vmatprep.subr.bf16.mxu0 %v5195
        %5402 = vmatpush1.bf16.msra.mxu0 %v5194
        %5403 = vmatprep.subr.bf16.mxu0 %v5199
        %5404 = vmatpush1.bf16.msra.mxu0 %v5198
        %5405 = vmatprep.subr.bf16.mxu0 %v5203
        %5406 = vmatpush1.bf16.msra.mxu0 %v5202
        %5407 = vmatprep.mubr.bf16.mxu0 %v4689
        %5408 = vmatmul.mubr.bf16.gmra.mrb[0].mxu0 %v4688
        %v5409 = vpop.f32.mrb[0].mxu0
        %v5410 = vadd.f32 %v5369, %v5409
        %v5411 = vpop.f32.mrb[0].mxu0
        %v5412 = vadd.f32 %v5371, %v5411
        %v5413 = vpop.f32.mrb[0].mxu0
        %v5414 = vpop.f32.mrb[0].mxu0
        %5415 = vdwg.mxu0
        %5416 = vmatprep.subr.bf16.mxu0 %v5081
        %5417 = vmatpush1.bf16.msra.mxu0 %v5080
        %5418 = vmatprep.subr.bf16.mxu0 %v5085
        %5419 = vmatpush1.bf16.msra.mxu0 %v5084
        %5420 = vmatprep.subr.bf16.mxu0 %v5089
        %5421 = vmatpush1.bf16.msra.mxu0 %v5088
        %5422 = vmatprep.subr.bf16.mxu0 %v5093
        %5423 = vmatpush1.bf16.msra.mxu0 %v5092
        %5424 = vmatprep.subr.bf16.mxu0 %v5097
        %5425 = vmatpush1.bf16.msra.mxu0 %v5096
        %5426 = vmatprep.subr.bf16.mxu0 %v5101
        %5427 = vmatpush1.bf16.msra.mxu0 %v5100
        %5428 = vmatprep.subr.bf16.mxu0 %v5105
        %5429 = vmatpush1.bf16.msra.mxu0 %v5104
        %5430 = vmatprep.subr.bf16.mxu0 %v5109
        %5431 = vmatpush1.bf16.msra.mxu0 %v5108
        %5432 = vmatprep.subr.bf16.mxu0 %v5113
        %5433 = vmatpush1.bf16.msra.mxu0 %v5112
        %5434 = vmatprep.subr.bf16.mxu0 %v5117
        %5435 = vmatpush1.bf16.msra.mxu0 %v5116
        %5436 = vmatprep.subr.bf16.mxu0 %v5121
        %5437 = vmatpush1.bf16.msra.mxu0 %v5120
        %5438 = vmatprep.subr.bf16.mxu0 %v5125
        %5439 = vmatpush1.bf16.msra.mxu0 %v5124
        %5440 = vmatprep.subr.bf16.mxu0 %v5129
        %5441 = vmatpush1.bf16.msra.mxu0 %v5128
        %5442 = vmatprep.subr.bf16.mxu0 %v5133
        %5443 = vmatpush1.bf16.msra.mxu0 %v5132
        %5444 = vmatprep.subr.bf16.mxu0 %v5137
        %5445 = vmatpush1.bf16.msra.mxu0 %v5136
        %5446 = vmatprep.subr.bf16.mxu0 %v5141
        %5447 = vmatpush1.bf16.msra.mxu0 %v5140
        %5448 = vmatprep.mubr.bf16.mxu0 %v4687
        %5449 = vmatmul.mubr.bf16.gmra.mrb[0].mxu0 %v4686
        %v5450 = vpop.f32.mrb[0].mxu0
        %v5451 = vadd.f32 %v4671, %v5450
        %v5452 = vpop.f32.mrb[0].mxu0
        %v5453 = vadd.f32 %v4675, %v5452
        %v5454 = vpop.f32.mrb[0].mxu0
        %v5455 = vpop.f32.mrb[0].mxu0
        %5456 = vdwg.mxu0
        %5457 = vmatprep.subr.bf16.mxu0 %v5145
        %5458 = vmatpush1.bf16.msra.mxu0 %v5144
        %5459 = vmatprep.subr.bf16.mxu0 %v5149
        %5460 = vmatpush1.bf16.msra.mxu0 %v5148
        %5461 = vmatprep.subr.bf16.mxu0 %v5153
        %5462 = vmatpush1.bf16.msra.mxu0 %v5152
        %5463 = vmatprep.subr.bf16.mxu0 %v5157
        %5464 = vmatpush1.bf16.msra.mxu0 %v5156
        %5465 = vmatprep.subr.bf16.mxu0 %v5161
        %5466 = vmatpush1.bf16.msra.mxu0 %v5160
        %5467 = vmatprep.subr.bf16.mxu0 %v5165
        %5468 = vmatpush1.bf16.msra.mxu0 %v5164
        %5469 = vmatprep.subr.bf16.mxu0 %v5169
        %5470 = vmatpush1.bf16.msra.mxu0 %v5168
        %5471 = vmatprep.subr.bf16.mxu0 %v5173
        %5472 = vmatpush1.bf16.msra.mxu0 %v5172
        %5473 = vmatprep.subr.bf16.mxu0 %v5177
        %5474 = vmatpush1.bf16.msra.mxu0 %v5176
        %5475 = vmatprep.subr.bf16.mxu0 %v5181
        %5476 = vmatpush1.bf16.msra.mxu0 %v5180
        %5477 = vmatprep.subr.bf16.mxu0 %v5185
        %5478 = vmatpush1.bf16.msra.mxu0 %v5184
        %5479 = vmatprep.subr.bf16.mxu0 %v5189
        %5480 = vmatpush1.bf16.msra.mxu0 %v5188
        %5481 = vmatprep.subr.bf16.mxu0 %v5193
        %5482 = vmatpush1.bf16.msra.mxu0 %v5192
        %5483 = vmatprep.subr.bf16.mxu0 %v5197
        %5484 = vmatpush1.bf16.msra.mxu0 %v5196
        %5485 = vmatprep.subr.bf16.mxu0 %v5201
        %5486 = vmatpush1.bf16.msra.mxu0 %v5200
        %5487 = vmatprep.subr.bf16.mxu0 %v5205
        %5488 = vmatpush1.bf16.msra.mxu0 %v5204
        %5489 = vmatprep.mubr.bf16.mxu0 %v4689
        %5490 = vmatmul.mubr.bf16.gmra.mrb[0].mxu0 %v4688
        %v5491 = vpop.f32.mrb[0].mxu0
        %v5492 = vadd.f32 %v5451, %v5491
        %v5493 = vpop.f32.mrb[0].mxu0
        %v5494 = vadd.f32 %v5453, %v5493
        %v5495 = vpop.f32.mrb[0].mxu0
        %v5496 = vpop.f32.mrb[0].mxu0
        %5497 = vdwg.mxu0
        %v5498 = vadd.f32 %v5410, %v702
        %v5499 = vadd.f32 %v5412, %v703
        %v5500 = vadd.f32 %v5492, %v704
        %v5501 = vadd.f32 %v5494, %v705
        %v5502 = vadd.f32 %v5498, %v5499
        %v5503 = vadd.f32 %v5502, %v5500
        %v5504 = vadd.f32 %v5503, %v5501
        %5505 = vadd.xlane.f32.xlu0 %v5504
        %v5506 = vpop.xlane.xlu0 %5505
        %v5507 = vrcp.pop 512.0
        %v5508 = vmul.f32 %v5506, %v5507
        %v5509 = vsub.f32 %v5498, %v5508
        %v5510 = vsub.f32 %v5499, %v5508
        %v5511 = vsub.f32 %v5500, %v5508
        %v5512 = vsub.f32 %v5501, %v5508
        %v5513 = vmul.f32 %v5509, %v5509
        %v5514 = vmul.f32 %v5510, %v5510
        %v5515 = vmul.f32 %v5511, %v5511
        %v5516 = vmul.f32 %v5512, %v5512
        %v5517 = vadd.f32 %v5513, %v5514
        %v5518 = vadd.f32 %v5517, %v5515
        %v5519 = vadd.f32 %v5518, %v5516
        %5520 = vadd.xlane.f32.xlu0 %v5519
        %v5521 = vpop.xlane.xlu0 %5520
        %v5522 = vmul.f32 %v5521, %v5507
        %v5523 = vadd.f32 %v5522, 1e-05
        %v5524 = vrsqrt.pop %v5523
        %v5525 = vmul.f32 %v5509, %v5524
        %v5526 = vmul.f32 %v5510, %v5524
        %v5527 = vmul.f32 %v5511, %v5524
        %v5528 = vmul.f32 %v5512, %v5524
        %v5529 = vld [vmem:[#allocation21] sm:$0xf]
        %v5531 = vlaneseq
        %v5532 = vshrl.u32 %v5531, 7
        %v5533 = vsub.s32 0, %v5532
        %v5534 = vrot.slane %v5529, %v5533
        %v5535 = vlaneseq
        %v5536 = vshrl.u32 %v5535, 7
        %v5537 = vsub.s32 1, %v5536
        %v5538 = vrot.slane %v5529, %v5537
        %v5539 = vlaneseq
        %v5540 = vshrl.u32 %v5539, 7
        %v5541 = vsub.s32 2, %v5540
        %v5542 = vrot.slane %v5529, %v5541
        %v5543 = vlaneseq
        %v5544 = vshrl.u32 %v5543, 7
        %v5545 = vsub.s32 3, %v5544
        %v5546 = vrot.slane %v5529, %v5545
        %v5551 = vmul.f32 %v5525, %v5534
        %v5552 = vmul.f32 %v5526, %v5538
        %v5553 = vmul.f32 %v5527, %v5542
        %v5554 = vmul.f32 %v5528, %v5546
        %v5555 = vld [vmem:[#allocation23] sm:$0xf]
        %v5557 = vlaneseq
        %v5558 = vshrl.u32 %v5557, 7
        %v5559 = vsub.s32 0, %v5558
        %v5560 = vrot.slane %v5555, %v5559
        %v5561 = vlaneseq
        %v5562 = vshrl.u32 %v5561, 7
        %v5563 = vsub.s32 1, %v5562
        %v5564 = vrot.slane %v5555, %v5563
        %v5565 = vlaneseq
        %v5566 = vshrl.u32 %v5565, 7
        %v5567 = vsub.s32 2, %v5566
        %v5568 = vrot.slane %v5555, %v5567
        %v5569 = vlaneseq
        %v5570 = vshrl.u32 %v5569, 7
        %v5571 = vsub.s32 3, %v5570
        %v5572 = vrot.slane %v5555, %v5571
        %v5577 = vadd.f32 %v5551, %v5560
        %v5578 = vadd.f32 %v5552, %v5564
        %v5579 = vadd.f32 %v5553, %v5568
        %v5580 = vadd.f32 %v5554, %v5572
        %5581 = vst [vmem:[%s693] sm:$0xff] %v5577
        %5582 = vst [vmem:[%s693 + $0x8] sm:$0xff] %v5578
        %5583 = vst [vmem:[%s693 + $0x10] sm:$0xff] %v5579
        %5584 = vst [vmem:[%s693 + $0x18] sm:$0xff] %v5580
        %s5585 = sand.u32 %s339, 1
        %s5586 = scalar_lea.sflag [#allocation5], %s5585
        %s5587 = sand.u32 %s339, 1
        %s5588 = smul.addr %s5587, 32
        %s5589 = scalar_lea.vmem [#allocation24], %s5588
        %s5590 = sand.u32 %s365, 1
        %s5591 = scalar_lea.sflag [#allocation26], %s5590
        %s5592 = sand.u32 %s365, 1
        %s5593 = smul.addr %s5592, 64
        %s5594 = scalar_lea.vmem [#allocation25], %s5593
        // Predicated region
        $region125: #{tpu_custom_call.1} parent=71 // pred_check
          %p5595 = pneg %p349
        $region126: #{tpu_custom_call.1} parent=71 // pred_check_branch
          %5597 = sbr.rel (%p5595) target = $region128
        $region127: #{tpu_custom_call.1} parent=71 // pred_region
          %s5599 = ssub.s32 512, 512
          %5600 = vsyncadd %s5586, %s5599
          %s5601 = smul.addr %s43, 4
          %s5602 = smul.addr %s5601, 128
          %s5603 = scalar_lea.hbm %s13, %s5602
          %s5605 = sshll.u32 %s5589, 4
          %s5606 = int_to_ptr.vmem [resolvable:$true] %s5605
          %5608 = dma.vmem_to_hbm [thread:$0]  %s5606, 512, %s5603, %s5586
        $region128: #{tpu_custom_call.1} parent=71 // pred_fallthru
          _
        // Predicated region
        $region129: #{tpu_custom_call.1} parent=71 // pred_check
          %p5609 = pneg %p375
        $region130: #{tpu_custom_call.1} parent=71 // pred_check_branch
          %5611 = sbr.rel (%p5609) target = $region132
        $region131: #{tpu_custom_call.1} parent=71 // pred_region
          %s5613 = ssub.s32 1024, 1024
          %5614 = vsyncadd %s5591, %s5613
          %s5615 = smul.addr %s43, 8
          %s5616 = smul.addr %s5615, 128
          %s5617 = scalar_lea.hbm %s14, %s5616
          %s5618 = sshll.u32 %s5594, 4
          %s5619 = int_to_ptr.vmem [resolvable:$true] %s5618
          %5624 = dma.vmem_to_hbm [thread:$0]  %s5619, 1024, %s5617, %s5591, 128, 128, 8
        $region132: #{tpu_custom_call.1} parent=71 // pred_fallthru
          _
      $region72: #{tpu_custom_call.1} parent=5 // pred_fallthru
        _
      %p5625 = scmp.le.s32.totalorder 2, %s38
      // Predicated region
      $region133: #{tpu_custom_call.1} parent=5 // pred_check
        %p5626 = pneg %p5625
      $region134: #{tpu_custom_call.1} parent=5 // pred_check_branch
        %5628 = sbr.rel (%p5626) target = $region136
      $region135: #{tpu_custom_call.1} parent=5 // pred_region
        %s5629 = ssub.s32 %s38, 2
        // Predicated region
        $region137: #{tpu_custom_call.1} parent=135 // pred_check
          %p5630 = pneg %p355
        $region138: #{tpu_custom_call.1} parent=135 // pred_check_branch
          %5632 = sbr.rel (%p5630) target = $region140
        $region139: #{tpu_custom_call.1} parent=135 // pred_region
          %s5633 = sand.u32 %s340, 1
          %s5634 = scalar_lea.sflag [#allocation5], %s5633
          %s5635 = sand.u32 %s340, 1
          %s5636 = smul.addr %s5635, 32
          %s5637 = scalar_lea.vmem [#allocation24], %s5636
          %5638 = dma.done %s5634, 512
        $region140: #{tpu_custom_call.1} parent=135 // pred_fallthru
          _
        // Predicated region
        $region141: #{tpu_custom_call.1} parent=135 // pred_check
          %p5639 = pneg %p381
        $region142: #{tpu_custom_call.1} parent=135 // pred_check_branch
          %5641 = sbr.rel (%p5639) target = $region144
        $region143: #{tpu_custom_call.1} parent=135 // pred_region
          %s5642 = sand.u32 %s366, 1
          %s5643 = scalar_lea.sflag [#allocation26], %s5642
          %s5644 = sand.u32 %s366, 1
          %s5645 = smul.addr %s5644, 64
          %s5646 = scalar_lea.vmem [#allocation25], %s5645
          %5647 = dma.done %s5643, 1024
        $region144: #{tpu_custom_call.1} parent=135 // pred_fallthru
          _
      $region136: #{tpu_custom_call.1} parent=5 // pred_fallthru
        _
    $region6: #{tpu_custom_call.1} parent=1 // loop_footer
      %s42 = sadd.s32 1, %s38
    $region7: #{tpu_custom_call.1} parent=1 // loop_footer_branch
      %37 = sbr.rel target = $region3
    $region8: #{tpu_custom_call.1} parent=1 // loop_exit
      _
    %5648 = vsyncpa [#allocation4], 1
    %s5649 = scalar_lea.sflag [#allocation4], 1
    %5650 = vsyncpa %s5649, 1
    %5651 = vsyncpa [#allocation7], 1
    %s5652 = scalar_lea.sflag [#allocation7], 1
    %5653 = vsyncpa %s5652, 1
    %5654 = vsyncpa [#allocation10], 1
    %5655 = vsyncpa [#allocation13], 1
    %5656 = vsyncpa [#allocation16], 1
    %5657 = vsyncpa [#allocation19], 1
    %5658 = vsyncpa [#allocation22], 1
    %5659 = vsyncpa [#allocation5], 1
    %s5660 = scalar_lea.sflag [#allocation5], 1
    %5661 = vsyncpa %s5660, 1
    %5662 = vsyncpa [#allocation26], 1
    %s5663 = scalar_lea.sflag [#allocation26], 1
    %5664 = vsyncpa %s5663, 1

</llo_original>
